<compile_context>
chip_gen: v7x
topology: tpu7x:2x2x1
jax: 0.10.0
libtpu: 0.0.40
codegen_flags: <defaults>
</compile_context>

<pallas_src>
import functools

import jax
import jax.numpy as jnp
from jax import lax
from jax.experimental import pallas as pl
from jax.experimental.pallas import tpu as pltpu


def _round_up(x, m):
    return (x + m - 1) // m * m


def _plan_tiles(q, wp2, cin_p, cp, tm_req, budget):
    """Pick the largest M-tile (rows of conv output per grid step) whose pass-1
    working set fits the VMEM budget.
    Returns (tm, n_row_tiles, q_padded, window_len, input_rows_per_image)."""
    q8 = _round_up(q, 8)
    cands = [tm_req] + [t for t in (2048, 1024, 512, 256, 128) if t < tm_req]
    cands = sorted({min(q8, _round_up(t, 8)) for t in cands}, reverse=True)
    plan = None
    for t in cands:
        n_r = pl.cdiv(q, t)
        q_t = n_r * t
        win = _round_up(t + 2 * wp2 + 2, 8)         # halo'd input window per tile
        r_in = (n_r - 1) * t + win                  # flattened padded-input rows kept/image
        vmem = (2 * r_in * cin_p * 2                # image block (double-buffered, bf16)
                + 9 * cin_p * cp * 2                # resident weights (single-buffered)
                + 2 * t * cp * 2                    # conv out tile (double-buffered, bf16)
                + 2 * t * cp * 4                    # f32 accumulator + masked copy
                + (win + t) * cin_p * 2             # loaded window + a sliced tap
                + 2 * t * 4 + 4 * cp * 4)           # mask tile + stats tile
        plan = (t, n_r, q_t, win, r_in)
        if vmem <= budget:
            break
    return plan


# ---------------------------------------------------------------------------
# Pass 1: in-kernel im2col conv (9 shifted MXU matmuls) + streaming BN stats
# ---------------------------------------------------------------------------
def _conv_stats_kernel(x_ref, mask_ref, w_ref, conv_ref, stats_ref, *, tm, win_len, offs):
    # x_ref    : (1, R_in, Cin_p)  bf16 flattened padded image (resident per image)
    # mask_ref : (tm, 1)           f32  1.0 on valid output rows, 0.0 on pad/garbage rows
    # w_ref    : (9, Cin_p, Cp)    bf16 per-tap weight matrices (resident)
    # conv_ref : (1, tm, Cp)       bf16 conv output tile
    # stats_ref: (1, 1, 2, Cp)     f32  per-tile [sum, sum-of-squares] of valid rows
    r = pl.program_id(1)
    base = pl.multiple_of(r * tm, tm)
    window = x_ref[0, pl.ds(base, win_len), :]              # aligned halo'd row window
    acc = jnp.dot(window[offs[0]:offs[0] + tm, :], w_ref[0],
                  preferred_element_type=jnp.float32)
    for k in range(1, 9):                                    # 9 static shifted taps
        off = offs[k]
        acc = acc + jnp.dot(window[off:off + tm, :], w_ref[k],
                            preferred_element_type=jnp.float32)
    conv_ref[0] = acc.astype(conv_ref.dtype)
    masked = acc * mask_ref[...]                             # zero out garbage / pad rows
    stats_ref[0, 0, 0:1, :] = jnp.sum(masked, axis=0, keepdims=True)
    stats_ref[0, 0, 1:2, :] = jnp.sum(masked * acc, axis=0, keepdims=True)


# ---------------------------------------------------------------------------
# Pass 2: folded BatchNorm scale/shift + ReLU (lane-dense elementwise sweep)
# ---------------------------------------------------------------------------
def _bn_relu_kernel(conv_ref, scale_ref, shift_ref, o_ref):
    # conv_ref: (1, tm, Cp) bf16; scale/shift: (1, Cp) f32; o_ref: (1, tm, Cp) f32
    y = conv_ref[0].astype(jnp.float32) * scale_ref[...] + shift_ref[...]
    o_ref[0] = jnp.maximum(y, 0.0)


@functools.partial(jax.jit, static_argnames=("eps", "tm"))
def conv_block(x_nchw, weight, bias, gamma, beta, *, eps=1e-5, tm=1024):
    """Forward pass of ConvBlock.  x_nchw: (N, Cin, H, W); weight: (Cout, Cin, 3, 3).

    tm: requested max M-tile (conv-output rows per grid step).  The actual tile is
    the largest candidate <= tm that fits a generation-aware VMEM budget (~48 MiB on
    v7x's 64 MiB VMEM, ~96 MiB on v5e/v6e's 128 MiB).  1024 is a good default; 2048
    is worth trying on v5e/v6e for large layers.
    """
    N, Cin, H, W = x_nchw.shape
    Cout, _, KH, KW = weight.shape
    assert KH == 3 and KW == 3, "this build assumes kernel_size=3, stride=1, padding=1"

    wp2 = W + 2                   # flat row stride of the spatially padded image
    Q = H * wp2                   # conv rows computed per image (2 garbage cols / row)
    M = N * H * W                 # valid output pixels (BatchNorm population size)
    Cin_p = _round_up(Cin, 128)   # lane-dense contraction dim
    Cp = _round_up(Cout, 128)     # lane-dense output channels (unmasked vst)

    # --- generation-aware VMEM budget & tile plan ---
    try:
        vmem_cap = int(pltpu.get_tpu_info().vmem_capacity_bytes)
    except Exception:
        vmem_cap = 64 * 1024 * 1024           # conservative fallback (v7x per-core VMEM)
    budget = (vmem_cap * 3) // 4              # ~48 MiB on v7x, ~96 MiB on v5e/v6e
    tm_e, nR, Q_t, win_len, R_in = _plan_tiles(Q, wp2, Cin_p, Cp, tm, budget)

    # --- layout glue: bf16 BEFORE padding/flattening; no patch matrix in HBM ---
    x = jnp.transpose(x_nchw, (0, 2, 3, 1)).astype(jnp.bfloat16)       # NHWC bf16
    xp = jnp.pad(x, ((0, 0), (1, 1), (1, 1), (0, 0)))                  # conv padding=1
    xflat = xp.reshape(N, (H + 2) * wp2, Cin)
    xflat = jnp.pad(xflat, ((0, 0), (0, R_in - (H + 2) * wp2), (0, Cin_p - Cin)))

    # weight (Cout, Cin, 3, 3) -> 9 per-tap (Cin, Cout) matrices -> (9, Cin_p, Cp) bf16
    w9 = jnp.transpose(weight, (2, 3, 1, 0)).reshape(KH * KW, Cin, Cout)
    w9 = jnp.pad(w9, ((0, 0), (0, Cin_p - Cin), (0, Cp - Cout))).astype(jnp.bfloat16)

    # Valid-row mask over flattened (h, w_padded) output rows: row q is a real output
    # pixel iff q < Q and (q mod wp2) < W.  Precomputed so the kernel needs no int mod.
    q_idx = jnp.arange(Q_t)
    mask = ((q_idx < Q) & ((q_idx % wp2) < W)).astype(jnp.float32).reshape(Q_t, 1)

    # Conv bias dropped on purpose: batch-stat BatchNorm subtracts the per-channel
    # mean, which exactly cancels any constant per-channel shift.
    del bias

    # Flat-row shift of each of the 9 conv taps: kh * wp2 + kw.
    offs = tuple(kh * wp2 + kw for kh in range(3) for kw in range(3))

    cparams = pltpu.CompilerParams(
        # TODO(synk): if plain "parallel" does not split the grid across v7x's two
        # TensorCores, switch the row-tile axis to pltpu.CORE_PARALLEL.
        dimension_semantics=("parallel", "parallel"),
        vmem_limit_bytes=int(budget),
    )

    cost1 = pl.CostEstimate(
        flops=2 * 9 * N * Q_t * Cin_p * Cp,
        transcendentals=0,
        bytes_accessed=(N * R_in * Cin_p * 2 + 9 * Cin_p * Cp * 2
                        + N * Q_t * Cp * 2 + N * nR * 2 * Cp * 4 + Q_t * 4))

    conv, stats = pl.pallas_call(
        functools.partial(_conv_stats_kernel, tm=tm_e, win_len=win_len, offs=offs),
        out_shape=(jax.ShapeDtypeStruct((N, Q_t, Cp), jnp.bfloat16),
                   jax.ShapeDtypeStruct((N, nR, 2, Cp), jnp.float32)),
        grid_spec=pltpu.PrefetchScalarGridSpec(
            num_scalar_prefetch=0,
            grid=(N, nR),
            in_specs=[
                # whole flattened image stays resident across the row tiles of image n
                pl.BlockSpec((1, R_in, Cin_p), lambda n, r: (n, 0, 0)),
                pl.BlockSpec((tm_e, 1), lambda n, r: (r, 0)),
                # resident weights: block index never changes -> single buffer
                pl.BlockSpec((9, Cin_p, Cp), lambda n, r: (0, 0, 0),
                             pipeline_mode=pl.Buffered(1)),
            ],
            out_specs=(pl.BlockSpec((1, tm_e, Cp), lambda n, r: (n, r, 0)),
                       pl.BlockSpec((1, 1, 2, Cp), lambda n, r: (n, r, 0, 0)))),
        compiler_params=cparams,
        cost_estimate=cost1,
    )(xflat, mask, w9)

    # --- tiny per-channel glue: reduce partials, fold BN into scale/shift ---
    # TODO(synk): E[x^2]-E[x]^2 in plain f32 can cancel badly if |mean| >> std; use a
    # compensated / mean-shifted accumulation for very large M if that ever matters.
    sums = jnp.sum(stats, axis=(0, 1))                 # (2, Cp)
    mean = sums[0] / M
    var = sums[1] / M - mean * mean                    # biased variance (training-mode BN)
    inv_std = lax.rsqrt(var + eps)
    gamma_p = jnp.pad(gamma.astype(jnp.float32), (0, Cp - Cout))
    beta_p = jnp.pad(beta.astype(jnp.float32), (0, Cp - Cout))
    scale = (gamma_p * inv_std).reshape(1, Cp)
    shift = (beta_p - mean * gamma_p * inv_std).reshape(1, Cp)
    # TODO(synk): running_mean/running_var update (training bookkeeping side effect)
    # is not emitted; mean/var above could be returned if needed.

    cost2 = pl.CostEstimate(
        flops=2 * N * Q_t * Cp, transcendentals=0,
        bytes_accessed=N * Q_t * Cp * (2 + 4) + 2 * Cp * 4)

    out3 = pl.pallas_call(
        _bn_relu_kernel,
        out_shape=jax.ShapeDtypeStruct((N, Q_t, Cp), jnp.float32),
        grid_spec=pltpu.PrefetchScalarGridSpec(
            num_scalar_prefetch=0,
            grid=(N, nR),
            in_specs=[pl.BlockSpec((1, tm_e, Cp), lambda n, r: (n, r, 0)),
                      pl.BlockSpec((1, Cp), lambda n, r: (0, 0)),
                      pl.BlockSpec((1, Cp), lambda n, r: (0, 0))],
            out_specs=pl.BlockSpec((1, tm_e, Cp), lambda n, r: (n, r, 0))),
        compiler_params=cparams,
        cost_estimate=cost2,
    )(conv, scale, shift)

    # --- layout glue: drop pad rows / garbage cols / pad channels, back to NCHW ---
    # TODO(synk): a consumer that accepts NHWC (or the padded (N, Q_t, Cp) layout)
    # can skip this compaction; XLA fuses slice+reshape+transpose into one copy.
    out = out3[:, :Q, :Cout].reshape(N, H, wp2, Cout)[:, :, :W, :]
    return jnp.transpose(out, (0, 3, 1, 2))


def conv_block_reference(x, weight, bias, gamma, beta, *, eps=1e-5):
    """Pure-JAX/XLA reference (NCHW), mirrors PyTorch forward in training mode."""
    conv = lax.conv_general_dilated(
        x, weight, window_strides=(1, 1), padding=((1, 1), (1, 1)),
        dimension_numbers=("NCHW", "OIHW", "NCHW"))
    conv = conv + bias.reshape(1, -1, 1, 1)
    mean = jnp.mean(conv, axis=(0, 2, 3), keepdims=True)
    var = jnp.mean((conv - mean) ** 2, axis=(0, 2, 3), keepdims=True)  # biased
    y = (conv - mean) * lax.rsqrt(var + eps)
    y = y * gamma.reshape(1, -1, 1, 1) + beta.reshape(1, -1, 1, 1)
    return jnp.maximum(y, 0.0)


if __name__ == "__main__":
    key = jax.random.PRNGKey(0)
    k_x, k_w, k_b, k_g, k_be = jax.random.split(key, 5)

    N, Cin, H, W = 2, 4, 16, 16
    Cout, KH, KW = 8, 3, 3

    x = jax.random.normal(k_x, (N, Cin, H, W), dtype=jnp.float32)
    weight = 0.1 * jax.random.normal(k_w, (Cout, Cin, KH, KW), dtype=jnp.float32)
    bias = 0.1 * jax.random.normal(k_b, (Cout,), dtype=jnp.float32)
    gamma = 1.0 + 0.1 * jax.random.normal(k_g, (Cout,), dtype=jnp.float32)
    beta = 0.1 * jax.random.normal(k_be, (Cout,), dtype=jnp.float32)

    out = jax.block_until_ready(conv_block(x, weight, bias, gamma, beta))
    assert out.shape == (N, Cout, H, W), out.shape

    # Precision-matched check: reference fed bf16-rounded conv operands (the kernel
    # feeds the MXU bf16 with f32 accumulation and stores the conv intermediate bf16).
    xq = x.astype(jnp.bfloat16).astype(jnp.float32)
    wq = weight.astype(jnp.bfloat16).astype(jnp.float32)
    ref_matched = jax.block_until_ready(conv_block_reference(xq, wq, bias, gamma, beta))
    err_m = float(jnp.max(jnp.abs(out - ref_matched)))
    assert jnp.allclose(out, ref_matched, rtol=3e-2, atol=3e-2), err_m

    # Loose sanity check against the full-f32 faithful reference (bounds the bf16
    # quantization of the MXU operands plus the bf16 conv intermediate).
    ref_f32 = jax.block_until_ready(conv_block_reference(x, weight, bias, gamma, beta))
    err_f = float(jnp.max(jnp.abs(out - ref_f32)))
    assert jnp.allclose(out, ref_f32, rtol=1e-1, atol=1e-1), err_f

    print("KERNEL_OK")
</pallas_src>

<mosaic_0001>
module attributes {stable_mosaic.version = 11 : i64} {
  func.func @_conv_stats_kernel(%arg0: i32, %arg1: i32, %arg2: memref<1x328x128xbf16, #tpu.memory_space<vmem>>, %arg3: memref<288x1xf32, #tpu.memory_space<vmem>>, %arg4: memref<9x128x128xbf16, #tpu.memory_space<vmem>>, %arg5: memref<1x288x128xbf16, #tpu.memory_space<vmem>>, %arg6: memref<1x1x2x128xf32, #tpu.memory_space<vmem>>) attributes {dimension_semantics = [#tpu.dimension_semantics<parallel>, #tpu.dimension_semantics<parallel>], iteration_bounds = array<i64: 2, 1>, scalar_prefetch = 0 : i64, scratch_operands = 0 : i64, tpu.core_type = #tpu.core_type<tc>, window_params = [{transform_indices = @transform_0, window_bounds = array<i64: 1, 328, 128>}, {transform_indices = @transform_1, window_bounds = array<i64: 288, 1>}, {pipeline_mode = #tpu.pipeline_mode<synchronous>, transform_indices = @transform_2, window_bounds = array<i64: 9, 128, 128>}, {transform_indices = @transform_3, window_bounds = array<i64: 1, 288, 128>}, {transform_indices = @transform_4, window_bounds = array<i64: 1, 1, 2, 128>}]} {
    %c288_i32 = arith.constant 288 : i32
    %0 = arith.muli %arg1, %c288_i32 : i32
    %1 = tpu.assume_multiple %0, 288 : i32
    %c0 = arith.constant 0 : index
    %2 = arith.index_cast %1 : i32 to index
    %c0_0 = arith.constant 0 : index
    %3 = vector.load %arg2[%c0, %2, %c0_0] : memref<1x328x128xbf16, #tpu.memory_space<vmem>>, vector<1x328x128xbf16>
    %4 = vector.shape_cast %3 : vector<1x328x128xbf16> to vector<328x128xbf16>
    %5 = vector.extract_strided_slice %4 {offsets = [0, 0], sizes = [288, 128], strides = [1, 1]} : vector<328x128xbf16> to vector<288x128xbf16>
    %c0_1 = arith.constant 0 : index
    %c0_2 = arith.constant 0 : index
    %c0_3 = arith.constant 0 : index
    %6 = vector.load %arg4[%c0_1, %c0_2, %c0_3] : memref<9x128x128xbf16, #tpu.memory_space<vmem>>, vector<1x128x128xbf16>
    %7 = vector.shape_cast %6 : vector<1x128x128xbf16> to vector<128x128xbf16>
    %cst = arith.constant dense<0.000000e+00> : vector<288x128xf32>
    %8 = tpu.matmul %5, %7, %cst {dimension_numbers = #tpu.dot_dimension_numbers<[1], [0], [0], [1], [0, 0, 1, 1], [], []>} : vector<288x128xbf16>, vector<128x128xbf16>, vector<288x128xf32> -> vector<288x128xf32>
    %9 = vector.extract_strided_slice %4 {offsets = [1, 0], sizes = [288, 128], strides = [1, 1]} : vector<328x128xbf16> to vector<288x128xbf16>
    %c1 = arith.constant 1 : index
    %c0_4 = arith.constant 0 : index
    %c0_5 = arith.constant 0 : index
    %10 = vector.load %arg4[%c1, %c0_4, %c0_5] : memref<9x128x128xbf16, #tpu.memory_space<vmem>>, vector<1x128x128xbf16>
    %11 = vector.shape_cast %10 : vector<1x128x128xbf16> to vector<128x128xbf16>
    %cst_6 = arith.constant dense<0.000000e+00> : vector<288x128xf32>
    %12 = tpu.matmul %9, %11, %cst_6 {dimension_numbers = #tpu.dot_dimension_numbers<[1], [0], [0], [1], [0, 0, 1, 1], [], []>} : vector<288x128xbf16>, vector<128x128xbf16>, vector<288x128xf32> -> vector<288x128xf32>
    %13 = arith.addf %8, %12 : vector<288x128xf32>
    %14 = vector.extract_strided_slice %4 {offsets = [2, 0], sizes = [288, 128], strides = [1, 1]} : vector<328x128xbf16> to vector<288x128xbf16>
    %c2 = arith.constant 2 : index
    %c0_7 = arith.constant 0 : index
    %c0_8 = arith.constant 0 : index
    %15 = vector.load %arg4[%c2, %c0_7, %c0_8] : memref<9x128x128xbf16, #tpu.memory_space<vmem>>, vector<1x128x128xbf16>
    %16 = vector.shape_cast %15 : vector<1x128x128xbf16> to vector<128x128xbf16>
    %cst_9 = arith.constant dense<0.000000e+00> : vector<288x128xf32>
    %17 = tpu.matmul %14, %16, %cst_9 {dimension_numbers = #tpu.dot_dimension_numbers<[1], [0], [0], [1], [0, 0, 1, 1], [], []>} : vector<288x128xbf16>, vector<128x128xbf16>, vector<288x128xf32> -> vector<288x128xf32>
    %18 = arith.addf %13, %17 : vector<288x128xf32>
    %19 = vector.extract_strided_slice %4 {offsets = [18, 0], sizes = [288, 128], strides = [1, 1]} : vector<328x128xbf16> to vector<288x128xbf16>
    %c3 = arith.constant 3 : index
    %c0_10 = arith.constant 0 : index
    %c0_11 = arith.constant 0 : index
    %20 = vector.load %arg4[%c3, %c0_10, %c0_11] : memref<9x128x128xbf16, #tpu.memory_space<vmem>>, vector<1x128x128xbf16>
    %21 = vector.shape_cast %20 : vector<1x128x128xbf16> to vector<128x128xbf16>
    %cst_12 = arith.constant dense<0.000000e+00> : vector<288x128xf32>
    %22 = tpu.matmul %19, %21, %cst_12 {dimension_numbers = #tpu.dot_dimension_numbers<[1], [0], [0], [1], [0, 0, 1, 1], [], []>} : vector<288x128xbf16>, vector<128x128xbf16>, vector<288x128xf32> -> vector<288x128xf32>
    %23 = arith.addf %18, %22 : vector<288x128xf32>
    %24 = vector.extract_strided_slice %4 {offsets = [19, 0], sizes = [288, 128], strides = [1, 1]} : vector<328x128xbf16> to vector<288x128xbf16>
    %c4 = arith.constant 4 : index
    %c0_13 = arith.constant 0 : index
    %c0_14 = arith.constant 0 : index
    %25 = vector.load %arg4[%c4, %c0_13, %c0_14] : memref<9x128x128xbf16, #tpu.memory_space<vmem>>, vector<1x128x128xbf16>
    %26 = vector.shape_cast %25 : vector<1x128x128xbf16> to vector<128x128xbf16>
    %cst_15 = arith.constant dense<0.000000e+00> : vector<288x128xf32>
    %27 = tpu.matmul %24, %26, %cst_15 {dimension_numbers = #tpu.dot_dimension_numbers<[1], [0], [0], [1], [0, 0, 1, 1], [], []>} : vector<288x128xbf16>, vector<128x128xbf16>, vector<288x128xf32> -> vector<288x128xf32>
    %28 = arith.addf %23, %27 : vector<288x128xf32>
    %29 = vector.extract_strided_slice %4 {offsets = [20, 0], sizes = [288, 128], strides = [1, 1]} : vector<328x128xbf16> to vector<288x128xbf16>
    %c5 = arith.constant 5 : index
    %c0_16 = arith.constant 0 : index
    %c0_17 = arith.constant 0 : index
    %30 = vector.load %arg4[%c5, %c0_16, %c0_17] : memref<9x128x128xbf16, #tpu.memory_space<vmem>>, vector<1x128x128xbf16>
    %31 = vector.shape_cast %30 : vector<1x128x128xbf16> to vector<128x128xbf16>
    %cst_18 = arith.constant dense<0.000000e+00> : vector<288x128xf32>
    %32 = tpu.matmul %29, %31, %cst_18 {dimension_numbers = #tpu.dot_dimension_numbers<[1], [0], [0], [1], [0, 0, 1, 1], [], []>} : vector<288x128xbf16>, vector<128x128xbf16>, vector<288x128xf32> -> vector<288x128xf32>
    %33 = arith.addf %28, %32 : vector<288x128xf32>
    %34 = vector.extract_strided_slice %4 {offsets = [36, 0], sizes = [288, 128], strides = [1, 1]} : vector<328x128xbf16> to vector<288x128xbf16>
    %c6 = arith.constant 6 : index
    %c0_19 = arith.constant 0 : index
    %c0_20 = arith.constant 0 : index
    %35 = vector.load %arg4[%c6, %c0_19, %c0_20] : memref<9x128x128xbf16, #tpu.memory_space<vmem>>, vector<1x128x128xbf16>
    %36 = vector.shape_cast %35 : vector<1x128x128xbf16> to vector<128x128xbf16>
    %cst_21 = arith.constant dense<0.000000e+00> : vector<288x128xf32>
    %37 = tpu.matmul %34, %36, %cst_21 {dimension_numbers = #tpu.dot_dimension_numbers<[1], [0], [0], [1], [0, 0, 1, 1], [], []>} : vector<288x128xbf16>, vector<128x128xbf16>, vector<288x128xf32> -> vector<288x128xf32>
    %38 = arith.addf %33, %37 : vector<288x128xf32>
    %39 = vector.extract_strided_slice %4 {offsets = [37, 0], sizes = [288, 128], strides = [1, 1]} : vector<328x128xbf16> to vector<288x128xbf16>
    %c7 = arith.constant 7 : index
    %c0_22 = arith.constant 0 : index
    %c0_23 = arith.constant 0 : index
    %40 = vector.load %arg4[%c7, %c0_22, %c0_23] : memref<9x128x128xbf16, #tpu.memory_space<vmem>>, vector<1x128x128xbf16>
    %41 = vector.shape_cast %40 : vector<1x128x128xbf16> to vector<128x128xbf16>
    %cst_24 = arith.constant dense<0.000000e+00> : vector<288x128xf32>
    %42 = tpu.matmul %39, %41, %cst_24 {dimension_numbers = #tpu.dot_dimension_numbers<[1], [0], [0], [1], [0, 0, 1, 1], [], []>} : vector<288x128xbf16>, vector<128x128xbf16>, vector<288x128xf32> -> vector<288x128xf32>
    %43 = arith.addf %38, %42 : vector<288x128xf32>
    %44 = vector.extract_strided_slice %4 {offsets = [38, 0], sizes = [288, 128], strides = [1, 1]} : vector<328x128xbf16> to vector<288x128xbf16>
    %c8 = arith.constant 8 : index
    %c0_25 = arith.constant 0 : index
    %c0_26 = arith.constant 0 : index
    %45 = vector.load %arg4[%c8, %c0_25, %c0_26] : memref<9x128x128xbf16, #tpu.memory_space<vmem>>, vector<1x128x128xbf16>
    %46 = vector.shape_cast %45 : vector<1x128x128xbf16> to vector<128x128xbf16>
    %cst_27 = arith.constant dense<0.000000e+00> : vector<288x128xf32>
    %47 = tpu.matmul %44, %46, %cst_27 {dimension_numbers = #tpu.dot_dimension_numbers<[1], [0], [0], [1], [0, 0, 1, 1], [], []>} : vector<288x128xbf16>, vector<128x128xbf16>, vector<288x128xf32> -> vector<288x128xf32>
    %48 = arith.addf %43, %47 : vector<288x128xf32>
    %49 = arith.truncf %48 : vector<288x128xf32> to vector<288x128xbf16>
    %c0_28 = arith.constant 0 : index
    %c0_29 = arith.constant 0 : index
    %c0_30 = arith.constant 0 : index
    %50 = vector.load %arg5[%c0_28, %c0_29, %c0_30] : memref<1x288x128xbf16, #tpu.memory_space<vmem>>, vector<1x288x128xbf16>
    %51 = vector.shape_cast %50 : vector<1x288x128xbf16> to vector<288x128xbf16>
    %52 = vector.shape_cast %49 : vector<288x128xbf16> to vector<1x288x128xbf16>
    tpu.vector_store %arg5[%c0_28, %c0_29, %c0_30], %52 {strides = array<i32>} : memref<1x288x128xbf16, #tpu.memory_space<vmem>>, vector<1x288x128xbf16>,
    %c0_31 = arith.constant 0 : index
    %c0_32 = arith.constant 0 : index
    %53 = vector.load %arg3[%c0_31, %c0_32] : memref<288x1xf32, #tpu.memory_space<vmem>>, vector<288x1xf32>
    %54 = vector.broadcast %53 : vector<288x1xf32> to vector<288x128xf32>
    %55 = arith.mulf %48, %54 : vector<288x128xf32>
    %cst_33 = arith.constant dense<0.000000e+00> : vector<128xf32>
    %56 = vector.multi_reduction <add>, %55, %cst_33 [0] : vector<288x128xf32> to vector<128xf32>
    %57 = vector.shape_cast %56 : vector<128xf32> to vector<1x128xf32>
    %c0_34 = arith.constant 0 : index
    %c0_35 = arith.constant 0 : index
    %c0_36 = arith.constant 0 : index
    %c0_37 = arith.constant 0 : index
    %58 = vector.load %arg6[%c0_34, %c0_35, %c0_36, %c0_37] : memref<1x1x2x128xf32, #tpu.memory_space<vmem>>, vector<1x1x1x128xf32>
    %59 = vector.shape_cast %58 : vector<1x1x1x128xf32> to vector<1x128xf32>
    %60 = vector.shape_cast %57 : vector<1x128xf32> to vector<1x1x1x128xf32>
    tpu.vector_store %arg6[%c0_34, %c0_35, %c0_36, %c0_37], %60 {strides = array<i32>} : memref<1x1x2x128xf32, #tpu.memory_space<vmem>>, vector<1x1x1x128xf32>,
    %61 = arith.mulf %55, %48 : vector<288x128xf32>
    %cst_38 = arith.constant dense<0.000000e+00> : vector<128xf32>
    %62 = vector.multi_reduction <add>, %61, %cst_38 [0] : vector<288x128xf32> to vector<128xf32>
    %63 = vector.shape_cast %62 : vector<128xf32> to vector<1x128xf32>
    %c0_39 = arith.constant 0 : index
    %c0_40 = arith.constant 0 : index
    %c1_41 = arith.constant 1 : index
    %c0_42 = arith.constant 0 : index
    %64 = vector.load %arg6[%c0_39, %c0_40, %c1_41, %c0_42] : memref<1x1x2x128xf32, #tpu.memory_space<vmem>>, vector<1x1x1x128xf32>
    %65 = vector.shape_cast %64 : vector<1x1x1x128xf32> to vector<1x128xf32>
    %66 = vector.shape_cast %63 : vector<1x128xf32> to vector<1x1x1x128xf32>
    tpu.vector_store %arg6[%c0_39, %c0_40, %c1_41, %c0_42], %66 {strides = array<i32>} : memref<1x1x2x128xf32, #tpu.memory_space<vmem>>, vector<1x1x1x128xf32>,
    return
  }
  func.func @transform_0(%arg0: i32, %arg1: i32) -> (i32, i32, i32) {
    %c0_i32 = arith.constant 0 : i32
    %c0_i32_0 = arith.constant 0 : i32
    %c0_i32_1 = arith.constant 0 : i32
    return %arg0, %c0_i32, %c0_i32_0 : i32, i32, i32
  }
  func.func @transform_1(%arg0: i32, %arg1: i32) -> (i32, i32) {
    %c0_i32 = arith.constant 0 : i32
    %c0_i32_0 = arith.constant 0 : i32
    return %arg1, %c0_i32 : i32, i32
  }
  func.func @transform_2(%arg0: i32, %arg1: i32) -> (i32, i32, i32) {
    %c0_i32 = arith.constant 0 : i32
    %c0_i32_0 = arith.constant 0 : i32
    %c0_i32_1 = arith.constant 0 : i32
    %c0_i32_2 = arith.constant 0 : i32
    return %c0_i32, %c0_i32_0, %c0_i32_1 : i32, i32, i32
  }
  func.func @transform_3(%arg0: i32, %arg1: i32) -> (i32, i32, i32) {
    %c0_i32 = arith.constant 0 : i32
    %c0_i32_0 = arith.constant 0 : i32
    return %arg0, %arg1, %c0_i32 : i32, i32, i32
  }
  func.func @transform_4(%arg0: i32, %arg1: i32) -> (i32, i32, i32, i32) {
    %c0_i32 = arith.constant 0 : i32
    %c0_i32_0 = arith.constant 0 : i32
    %c0_i32_1 = arith.constant 0 : i32
    return %arg0, %arg1, %c0_i32, %c0_i32_0 : i32, i32, i32, i32
  }
}

module attributes {stable_mosaic.version = 11 : i64} {
  func.func @_bn_relu_kernel(%arg0: i32, %arg1: i32, %arg2: memref<1x288x128xbf16, #tpu.memory_space<vmem>>, %arg3: memref<1x128xf32, #tpu.memory_space<vmem>>, %arg4: memref<1x128xf32, #tpu.memory_space<vmem>>, %arg5: memref<1x288x128xf32, #tpu.memory_space<vmem>>) attributes {dimension_semantics = [#tpu.dimension_semantics<parallel>, #tpu.dimension_semantics<parallel>], iteration_bounds = array<i64: 2, 1>, scalar_prefetch = 0 : i64, scratch_operands = 0 : i64, tpu.core_type = #tpu.core_type<tc>, window_params = [{transform_indices = @transform_0, window_bounds = array<i64: 1, 288, 128>}, {pipeline_mode = #tpu.pipeline_mode<synchronous>, transform_indices = @transform_1, window_bounds = array<i64: 1, 128>}, {pipeline_mode = #tpu.pipeline_mode<synchronous>, transform_indices = @transform_2, window_bounds = array<i64: 1, 128>}, {transform_indices = @transform_3, window_bounds = array<i64: 1, 288, 128>}]} {
    %c0 = arith.constant 0 : index
    %c0_0 = arith.constant 0 : index
    %c0_1 = arith.constant 0 : index
    %0 = vector.load %arg2[%c0, %c0_0, %c0_1] : memref<1x288x128xbf16, #tpu.memory_space<vmem>>, vector<1x288x128xbf16>
    %1 = vector.shape_cast %0 : vector<1x288x128xbf16> to vector<288x128xbf16>
    %2 = arith.extf %1 : vector<288x128xbf16> to vector<288x128xf32>
    %c0_2 = arith.constant 0 : index
    %c0_3 = arith.constant 0 : index
    %3 = vector.load %arg3[%c0_2, %c0_3] : memref<1x128xf32, #tpu.memory_space<vmem>>, vector<1x128xf32>
    %4 = vector.broadcast %3 : vector<1x128xf32> to vector<288x128xf32>
    %5 = arith.mulf %2, %4 : vector<288x128xf32>
    %c0_4 = arith.constant 0 : index
    %c0_5 = arith.constant 0 : index
    %6 = vector.load %arg4[%c0_4, %c0_5] : memref<1x128xf32, #tpu.memory_space<vmem>>, vector<1x128xf32>
    %7 = vector.broadcast %6 : vector<1x128xf32> to vector<288x128xf32>
    %8 = arith.addf %5, %7 : vector<288x128xf32>
    %cst = arith.constant 0.000000e+00 : f32
    %9 = vector.broadcast %cst : f32 to vector<288x128xf32>
    %10 = arith.maximumf %8, %9 : vector<288x128xf32>
    %c0_6 = arith.constant 0 : index
    %c0_7 = arith.constant 0 : index
    %c0_8 = arith.constant 0 : index
    %11 = vector.load %arg5[%c0_6, %c0_7, %c0_8] : memref<1x288x128xf32, #tpu.memory_space<vmem>>, vector<1x288x128xf32>
    %12 = vector.shape_cast %11 : vector<1x288x128xf32> to vector<288x128xf32>
    %13 = vector.shape_cast %10 : vector<288x128xf32> to vector<1x288x128xf32>
    tpu.vector_store %arg5[%c0_6, %c0_7, %c0_8], %13 {strides = array<i32>} : memref<1x288x128xf32, #tpu.memory_space<vmem>>, vector<1x288x128xf32>,
    return
  }
  func.func @transform_0(%arg0: i32, %arg1: i32) -> (i32, i32, i32) {
    %c0_i32 = arith.constant 0 : i32
    %c0_i32_0 = arith.constant 0 : i32
    return %arg0, %arg1, %c0_i32 : i32, i32, i32
  }
  func.func @transform_1(%arg0: i32, %arg1: i32) -> (i32, i32) {
    %c0_i32 = arith.constant 0 : i32
    %c0_i32_0 = arith.constant 0 : i32
    %c0_i32_1 = arith.constant 0 : i32
    return %c0_i32, %c0_i32_0 : i32, i32
  }
  func.func @transform_2(%arg0: i32, %arg1: i32) -> (i32, i32) {
    %c0_i32 = arith.constant 0 : i32
    %c0_i32_0 = arith.constant 0 : i32
    %c0_i32_1 = arith.constant 0 : i32
    return %c0_i32, %c0_i32_0 : i32, i32
  }
  func.func @transform_3(%arg0: i32, %arg1: i32) -> (i32, i32, i32) {
    %c0_i32 = arith.constant 0 : i32
    %c0_i32_0 = arith.constant 0 : i32
    return %arg0, %arg1, %c0_i32 : i32, i32, i32
  }
}

</mosaic_0001>

<llo_original>
// kernel: conv_block.3
$region0: #{conv_block.3}
  #allocation0 [shape = 'u32[]', space=smem, size = 0x4, offset = 0x4, fixed_abs, tag = 'smem constant byte address 0x4 - core index']
  #allocation1 [shape = 'u32[144,128]{1,0:T(1,128)}', space=vmem, size = 0x12000, scoped, tag = 'internal scratch']
  %s0 = inlined_call_operand.vmem [shape: bf16[2,288,128], index: 0, kind: input, shape index: {}]
  %s1 = inlined_call_operand.vmem [shape: f32[1,128], index: 1, kind: input, shape index: {}]
  %s2 = inlined_call_operand.vmem [shape: f32[1,128], index: 2, kind: input, shape index: {}]
  %s3 = inlined_call_operand.vmem [shape: f32[2,288,128], index: 3, kind: output, shape index: {}]
  %s4 = sld [smem:[#allocation0]]
  $region45: #{conv_block.3} parent=0
    _
  %s6 = ssub.s32 1, %s4
  %s7 = scalar_select 0, %s6, %s4
  loop: start=0, step=1, limit=4
  $region2: #{conv_block.3} parent=0 // loop_pre_header
    _
  $region3: #{conv_block.3} parent=0 // loop_header
    %s9 = sphi 0, %s13
    %p10 = scmp.ge.s32.totalorder %s9, 4
    %s16 = sphi 0, %s28
    %s17 = sphi 0, %s24
    %s18 = sphi 0, %s16
    %s19 = sphi 0, %s17
    %s20 = sphi 0, %s18
    %s21 = sphi 0, %s19
    %s33 = sphi 0, %s35
    %s36 = sphi 0, %s33
    %s37 = sphi 0, %s36
    %s53 = sphi 0, %s37
    %s57 = sphi 0, %s57
    %s59 = sphi 0, %s57
    %s60 = sphi 0, %s59
    %s74 = sphi 0, %s60
    %s78 = sphi 0, %s78
    %s80 = sphi 0, %s78
    %s81 = sphi 0, %s80
    %s95 = sphi 0, %s81
    %s103 = sphi 0, %s105
    %s106 = sphi 0, %s103
    %s107 = sphi 0, %s106
    %s123 = sphi 0, %s107
  $region4: #{conv_block.3} parent=0 // loop_header_branch
    %12 = sbr.rel (%p10) target = $region8
  $region5: #{conv_block.3} parent=0 // loop_body
    %s14 = ssub.s32 %s9, 1
    %s15 = ssub.s32 %s9, 2
    %s22 = sadd.s32 1, %s17
    %p23 = scmp.ge.s32.totalorder %s22, 1
    %s24 = scalar_select %p23, 0, %s22
    %s25 = sadd.s32 1, %s16
    %s26 = scalar_select %p23, %s25, %s16
    %p27 = scmp.ge.s32.totalorder %s26, 2
    %s28 = scalar_select %p27, 0, %s26
    %s29 = ssub.s32 %s16, %s28
    %s30 = ssub.s32 %s17, %s24
    %s31 = sor.u32 %s29, %s30
    %p32 = scmp.eq.s32.totalorder %s31, 0
    %s34 = sadd.s32 %s33, 1
    %s35 = scalar_select %p32, %s33, %s34
    %p38 = pneg %p32
    %p39 = scmp.eq.s32.totalorder %s9, 1
    %p40 = por %p38, %p39
    %p41 = scmp.ne.s32.totalorder %s33, %s36
    %p42 = scmp.eq.s32.totalorder %s9, 0
    %p43 = por %p41, %p42
    %p44 = scmp.ne.s32.totalorder %s33, %s36
    %p45 = scmp.eq.s32.totalorder %s14, 1
    %p46 = por %p44, %p45
    %p47 = scmp.ne.s32.totalorder %s36, %s37
    %p48 = scmp.eq.s32.totalorder %s14, 0
    %p49 = por %p47, %p48
    %p50 = scmp.ne.s32.totalorder %s36, %s37
    %p51 = scmp.eq.s32.totalorder %s15, 1
    %p52 = por %p50, %p51
    %p54 = scmp.ne.s32.totalorder %s37, %s53
    %p55 = scmp.eq.s32.totalorder %s15, 0
    %p56 = por %p54, %p55
    %s58 = sadd.s32 %s57, 1
    %p61 = scmp.eq.s32.totalorder %s9, 1
    %p62 = scmp.ne.s32.totalorder %s57, %s59
    %p63 = scmp.eq.s32.totalorder %s9, 0
    %p64 = por %p62, %p63
    %p65 = scmp.ne.s32.totalorder %s57, %s59
    %p66 = scmp.eq.s32.totalorder %s14, 1
    %p67 = por %p65, %p66
    %p68 = scmp.ne.s32.totalorder %s59, %s60
    %p69 = scmp.eq.s32.totalorder %s14, 0
    %p70 = por %p68, %p69
    %p71 = scmp.ne.s32.totalorder %s59, %s60
    %p72 = scmp.eq.s32.totalorder %s15, 1
    %p73 = por %p71, %p72
    %p75 = scmp.ne.s32.totalorder %s60, %s74
    %p76 = scmp.eq.s32.totalorder %s15, 0
    %p77 = por %p75, %p76
    %s79 = sadd.s32 %s78, 1
    %p82 = scmp.eq.s32.totalorder %s9, 1
    %p83 = scmp.ne.s32.totalorder %s78, %s80
    %p84 = scmp.eq.s32.totalorder %s9, 0
    %p85 = por %p83, %p84
    %p86 = scmp.ne.s32.totalorder %s78, %s80
    %p87 = scmp.eq.s32.totalorder %s14, 1
    %p88 = por %p86, %p87
    %p89 = scmp.ne.s32.totalorder %s80, %s81
    %p90 = scmp.eq.s32.totalorder %s14, 0
    %p91 = por %p89, %p90
    %p92 = scmp.ne.s32.totalorder %s80, %s81
    %p93 = scmp.eq.s32.totalorder %s15, 1
    %p94 = por %p92, %p93
    %p96 = scmp.ne.s32.totalorder %s81, %s95
    %p97 = scmp.eq.s32.totalorder %s15, 0
    %p98 = por %p96, %p97
    %s99 = ssub.s32 %s16, %s28
    %s100 = ssub.s32 %s17, %s24
    %s101 = sor.u32 %s99, %s100
    %p102 = scmp.eq.s32.totalorder %s101, 0
    %s104 = sadd.s32 %s103, 1
    %s105 = scalar_select %p102, %s103, %s104
    %p108 = pneg %p102
    %p109 = scmp.eq.s32.totalorder %s9, 1
    %p110 = por %p108, %p109
    %p111 = scmp.ne.s32.totalorder %s103, %s106
    %p112 = scmp.eq.s32.totalorder %s9, 0
    %p113 = por %p111, %p112
    %p114 = scmp.ne.s32.totalorder %s103, %s106
    %p115 = scmp.eq.s32.totalorder %s14, 1
    %p116 = por %p114, %p115
    %p117 = scmp.ne.s32.totalorder %s106, %s107
    %p118 = scmp.eq.s32.totalorder %s14, 0
    %p119 = por %p117, %p118
    %p120 = scmp.ne.s32.totalorder %s106, %s107
    %p121 = scmp.eq.s32.totalorder %s15, 1
    %p122 = por %p120, %p121
    %p124 = scmp.ne.s32.totalorder %s107, %s123
    %p125 = scmp.eq.s32.totalorder %s15, 0
    %p126 = por %p124, %p125
    %p127 = scmp.le.s32.totalorder 1, %s9
    %p128 = scmp.lt.s32.totalorder %s9, 3
    %p129 = pnand %p127, %p128
    %p130 = pneg %p129
    // Predicated region
    $region9: #{conv_block.3} parent=5 // pred_check
      _
    $region10: #{conv_block.3} parent=5 // pred_check_branch
      %132 = sbr.rel (%p129) target = $region12
    $region11: #{conv_block.3} parent=5 // pred_region
      %s133 = ssub.s32 %s9, 1
      // Predicated region
      $region13: #{conv_block.3} parent=11 // pred_check
        %p134 = pneg %p70
      $region14: #{conv_block.3} parent=11 // pred_check_branch
        %136 = sbr.rel (%p134) target = $region16
      $region15: #{conv_block.3} parent=11 // pred_region
        _
      $region16: #{conv_block.3} parent=11 // pred_fallthru
        _
      // Predicated region
      $region17: #{conv_block.3} parent=11 // pred_check
        %p137 = pneg %p91
      $region18: #{conv_block.3} parent=11 // pred_check_branch
        %139 = sbr.rel (%p137) target = $region20
      $region19: #{conv_block.3} parent=11 // pred_region
        _
      $region20: #{conv_block.3} parent=11 // pred_fallthru
        _
    $region12: #{conv_block.3} parent=5 // pred_fallthru
      _
    %p140 = scmp.lt.s32.totalorder %s9, 2
    // Predicated region
    $region21: #{conv_block.3} parent=5 // pred_check
      %p141 = pneg %p140
    $region22: #{conv_block.3} parent=5 // pred_check_branch
      %143 = sbr.rel (%p141) target = $region24
    $region23: #{conv_block.3} parent=5 // pred_region
      // Predicated region
      $region25: #{conv_block.3} parent=23 // pred_check
        %p144 = pneg %p43
      $region26: #{conv_block.3} parent=23 // pred_check_branch
        %146 = sbr.rel (%p144) target = $region28
      $region27: #{conv_block.3} parent=23 // pred_region
        %s147 = smul.u32 36, %s17
        %p148 = scmp.lt.s32.totalorder %s16, 1
        %s149 = scalar_select %p148, %s16, 1
        %p150 = scmp.lt.s32.totalorder %s147, 35
        %s151 = scalar_select %p150, %s147, 35
        %s152 = smul.addr %s149, 36
        %s153 = sadd.s32 %s151, %s152
        %s154 = smul.addr %s153, 4
        %s155 = scalar_lea.vmem %s0, %s154
        %s156 = smul.u32 36, %s17
      $region28: #{conv_block.3} parent=23 // pred_fallthru
        _
    $region24: #{conv_block.3} parent=5 // pred_fallthru
      _
    %p157 = scmp.le.s32.totalorder 1, %s9
    %p158 = scmp.lt.s32.totalorder %s9, 3
    %p159 = pnand %p157, %p158
    %p160 = pneg %p159
    // Predicated region
    $region29: #{conv_block.3} parent=5 // pred_check
      _
    $region30: #{conv_block.3} parent=5 // pred_check_branch
      %162 = sbr.rel (%p159) target = $region32
    $region31: #{conv_block.3} parent=5 // pred_region
      %s163 = ssub.s32 %s9, 1
      %s164 = smul.u32 36, %s19
      %p165 = scmp.lt.s32.totalorder %s18, 1
      %s166 = scalar_select %p165, %s18, 1
      %p167 = scmp.lt.s32.totalorder %s164, 35
      %s168 = scalar_select %p167, %s164, 35
      %s169 = smul.addr %s166, 36
      %s170 = sadd.s32 %s168, %s169
      %s171 = smul.addr %s170, 4
      %s172 = scalar_lea.vmem %s0, %s171
      %p173 = pneg %p49
      %p174 = pneg %p46
      %p175 = pneg %p70
      %p176 = pneg %p67
      %p177 = pneg %p91
      %p178 = pneg %p88
      %p179 = pneg %p119
      %p180 = pneg %p116
      %s181 = smul.u32 36, %s19
      %p182 = scmp.lt.s32.totalorder %s18, 1
      %s183 = scalar_select %p182, %s18, 1
      %p184 = scmp.lt.s32.totalorder %s181, 35
      %s185 = scalar_select %p184, %s181, 35
      %s186 = smul.addr %s183, 36
      %s187 = sadd.s32 %s185, %s186
      %s188 = smul.addr %s187, 8
      %s189 = scalar_lea.vmem %s3, %s188
      %s190 = smul.u32 36, %s19
      %p191 = scmp.lt.s32.totalorder %s18, 1
      %s192 = scalar_select %p191, %s18, 1
      %p193 = scmp.lt.s32.totalorder %s190, 35
      %s194 = scalar_select %p193, %s190, 35
      %s195 = smul.addr %s192, 36
      %s196 = sadd.s32 %s194, %s195
      %s197 = smul.addr %s196, 4
      %s198 = scalar_lea.vmem %s0, %s197
      %s199 = smul.u32 36, %s19
      %s200 = smul.u32 36, %s19
      %p201 = scmp.lt.s32.totalorder %s18, 1
      %s202 = scalar_select %p201, %s18, 1
      %p203 = scmp.lt.s32.totalorder %s200, 35
      %s204 = scalar_select %p203, %s200, 35
      %s205 = smul.addr %s202, 36
      %s206 = sadd.s32 %s204, %s205
      %s207 = smul.addr %s206, 8
      %s208 = scalar_lea.vmem %s3, %s207
      %s209 = smul.u32 36, %s19
      %v210 = vld [vmem:[%s198] sm:$0xf]
      %v211 = vld [vmem:[%s198 + $0x4] sm:$0xf]
      %v212 = vld [vmem:[%s198 + $0x8] sm:$0xf]
      %v213 = vld [vmem:[%s198 + $0xc] sm:$0xf]
      %v214 = vld [vmem:[%s198 + $0x10] sm:$0xf]
      %v215 = vld [vmem:[%s198 + $0x14] sm:$0xf]
      %v216 = vld [vmem:[%s198 + $0x18] sm:$0xf]
      %v217 = vld [vmem:[%s198 + $0x1c] sm:$0xf]
      %v218 = vld [vmem:[%s198 + $0x20] sm:$0xf]
      %v219 = vld [vmem:[%s198 + $0x24] sm:$0xf]
      %v220 = vld [vmem:[%s198 + $0x28] sm:$0xf]
      %v221 = vld [vmem:[%s198 + $0x2c] sm:$0xf]
      %v222 = vld [vmem:[%s198 + $0x30] sm:$0xf]
      %v223 = vld [vmem:[%s198 + $0x34] sm:$0xf]
      %v224 = vld [vmem:[%s198 + $0x38] sm:$0xf]
      %v225 = vld [vmem:[%s198 + $0x3c] sm:$0xf]
      %v226 = vld [vmem:[%s198 + $0x40] sm:$0xf]
      %v227 = vld [vmem:[%s198 + $0x44] sm:$0xf]
      %v228 = vld [vmem:[%s198 + $0x48] sm:$0xf]
      %v229 = vld [vmem:[%s198 + $0x4c] sm:$0xf]
      %v230 = vld [vmem:[%s198 + $0x50] sm:$0xf]
      %v231 = vld [vmem:[%s198 + $0x54] sm:$0xf]
      %v232 = vld [vmem:[%s198 + $0x58] sm:$0xf]
      %v233 = vld [vmem:[%s198 + $0x5c] sm:$0xf]
      %v234 = vld [vmem:[%s198 + $0x60] sm:$0xf]
      %v235 = vld [vmem:[%s198 + $0x64] sm:$0xf]
      %v236 = vld [vmem:[%s198 + $0x68] sm:$0xf]
      %v237 = vld [vmem:[%s198 + $0x6c] sm:$0xf]
      %v238 = vld [vmem:[%s198 + $0x70] sm:$0xf]
      %v239 = vld [vmem:[%s198 + $0x74] sm:$0xf]
      %v240 = vld [vmem:[%s198 + $0x78] sm:$0xf]
      %v241 = vld [vmem:[%s198 + $0x7c] sm:$0xf]
      %v242 = vld [vmem:[%s198 + $0x80] sm:$0xf]
      %v243 = vld [vmem:[%s198 + $0x84] sm:$0xf]
      %v244 = vld [vmem:[%s198 + $0x88] sm:$0xf]
      %v245 = vld [vmem:[%s198 + $0x8c] sm:$0xf]
      %v246 = vunpack.c.l.bf16 %v210
      %v247 = vunpack.c.l.bf16 %v211
      %v248 = vunpack.c.l.bf16 %v212
      %v249 = vunpack.c.l.bf16 %v213
      %v250 = vunpack.c.l.bf16 %v214
      %v251 = vunpack.c.l.bf16 %v215
      %v252 = vunpack.c.l.bf16 %v216
      %v253 = vunpack.c.l.bf16 %v217
      %v254 = vunpack.c.l.bf16 %v218
      %v255 = vunpack.c.l.bf16 %v219
      %v256 = vunpack.c.l.bf16 %v220
      %v257 = vunpack.c.l.bf16 %v221
      %v258 = vunpack.c.l.bf16 %v222
      %v259 = vunpack.c.l.bf16 %v223
      %v260 = vunpack.c.l.bf16 %v224
      %v261 = vunpack.c.l.bf16 %v225
      %v262 = vunpack.c.l.bf16 %v226
      %v263 = vunpack.c.l.bf16 %v227
      %v264 = vunpack.c.l.bf16 %v228
      %v265 = vunpack.c.l.bf16 %v229
      %v266 = vunpack.c.l.bf16 %v230
      %v267 = vunpack.c.l.bf16 %v231
      %v268 = vunpack.c.l.bf16 %v232
      %v269 = vunpack.c.l.bf16 %v233
      %v270 = vunpack.c.l.bf16 %v234
      %v271 = vunpack.c.l.bf16 %v235
      %v272 = vunpack.c.l.bf16 %v236
      %v273 = vunpack.c.l.bf16 %v237
      %v274 = vunpack.c.l.bf16 %v238
      %v275 = vunpack.c.l.bf16 %v239
      %v276 = vunpack.c.l.bf16 %v240
      %v277 = vunpack.c.l.bf16 %v241
      %v278 = vunpack.c.l.bf16 %v242
      %v279 = vunpack.c.l.bf16 %v243
      %v280 = vunpack.c.l.bf16 %v244
      %v281 = vunpack.c.l.bf16 %v245
      %v282 = vld [vmem:[%s1] sm:$0x1]
      %v284 = vlaneseq
      %v285 = vshrl.u32 %v284, 7
      %v286 = vsub.s32 0, %v285
      %v287 = vrot.slane %v282, %v286
      %v289 = vmul.f32 %v246, %v287
      %v290 = vmul.f32 %v247, %v287
      %v291 = vmul.f32 %v248, %v287
      %v292 = vmul.f32 %v249, %v287
      %v293 = vmul.f32 %v250, %v287
      %v294 = vmul.f32 %v251, %v287
      %v295 = vmul.f32 %v252, %v287
      %v296 = vmul.f32 %v253, %v287
      %v297 = vmul.f32 %v254, %v287
      %v298 = vmul.f32 %v255, %v287
      %v299 = vmul.f32 %v256, %v287
      %v300 = vmul.f32 %v257, %v287
      %v301 = vmul.f32 %v258, %v287
      %v302 = vmul.f32 %v259, %v287
      %v303 = vmul.f32 %v260, %v287
      %v304 = vmul.f32 %v261, %v287
      %v305 = vmul.f32 %v262, %v287
      %v306 = vmul.f32 %v263, %v287
      %v307 = vmul.f32 %v264, %v287
      %v308 = vmul.f32 %v265, %v287
      %v309 = vmul.f32 %v266, %v287
      %v310 = vmul.f32 %v267, %v287
      %v311 = vmul.f32 %v268, %v287
      %v312 = vmul.f32 %v269, %v287
      %v313 = vmul.f32 %v270, %v287
      %v314 = vmul.f32 %v271, %v287
      %v315 = vmul.f32 %v272, %v287
      %v316 = vmul.f32 %v273, %v287
      %v317 = vmul.f32 %v274, %v287
      %v318 = vmul.f32 %v275, %v287
      %v319 = vmul.f32 %v276, %v287
      %v320 = vmul.f32 %v277, %v287
      %v321 = vmul.f32 %v278, %v287
      %v322 = vmul.f32 %v279, %v287
      %v323 = vmul.f32 %v280, %v287
      %v324 = vmul.f32 %v281, %v287
      %v325 = vld [vmem:[%s2] sm:$0x1]
      %v327 = vlaneseq
      %v328 = vshrl.u32 %v327, 7
      %v329 = vsub.s32 0, %v328
      %v330 = vrot.slane %v325, %v329
      %v332 = vadd.f32 %v289, %v330
      %v333 = vadd.f32 %v290, %v330
      %v334 = vadd.f32 %v291, %v330
      %v335 = vadd.f32 %v292, %v330
      %v336 = vadd.f32 %v293, %v330
      %v337 = vadd.f32 %v294, %v330
      %v338 = vadd.f32 %v295, %v330
      %v339 = vadd.f32 %v296, %v330
      %v340 = vadd.f32 %v297, %v330
      %v341 = vadd.f32 %v298, %v330
      %v342 = vadd.f32 %v299, %v330
      %v343 = vadd.f32 %v300, %v330
      %v344 = vadd.f32 %v301, %v330
      %v345 = vadd.f32 %v302, %v330
      %v346 = vadd.f32 %v303, %v330
      %v347 = vadd.f32 %v304, %v330
      %v348 = vadd.f32 %v305, %v330
      %v349 = vadd.f32 %v306, %v330
      %v350 = vadd.f32 %v307, %v330
      %v351 = vadd.f32 %v308, %v330
      %v352 = vadd.f32 %v309, %v330
      %v353 = vadd.f32 %v310, %v330
      %v354 = vadd.f32 %v311, %v330
      %v355 = vadd.f32 %v312, %v330
      %v356 = vadd.f32 %v313, %v330
      %v357 = vadd.f32 %v314, %v330
      %v358 = vadd.f32 %v315, %v330
      %v359 = vadd.f32 %v316, %v330
      %v360 = vadd.f32 %v317, %v330
      %v361 = vadd.f32 %v318, %v330
      %v362 = vadd.f32 %v319, %v330
      %v363 = vadd.f32 %v320, %v330
      %v364 = vadd.f32 %v321, %v330
      %v365 = vadd.f32 %v322, %v330
      %v366 = vadd.f32 %v323, %v330
      %v367 = vadd.f32 %v324, %v330
      %v368 = vmax.f32 %v332, 0.0
      %v369 = vmax.f32 %v333, 0.0
      %v370 = vmax.f32 %v334, 0.0
      %v371 = vmax.f32 %v335, 0.0
      %v372 = vmax.f32 %v336, 0.0
      %v373 = vmax.f32 %v337, 0.0
      %v374 = vmax.f32 %v338, 0.0
      %v375 = vmax.f32 %v339, 0.0
      %v376 = vmax.f32 %v340, 0.0
      %v377 = vmax.f32 %v341, 0.0
      %v378 = vmax.f32 %v342, 0.0
      %v379 = vmax.f32 %v343, 0.0
      %v380 = vmax.f32 %v344, 0.0
      %v381 = vmax.f32 %v345, 0.0
      %v382 = vmax.f32 %v346, 0.0
      %v383 = vmax.f32 %v347, 0.0
      %v384 = vmax.f32 %v348, 0.0
      %v385 = vmax.f32 %v349, 0.0
      %v386 = vmax.f32 %v350, 0.0
      %v387 = vmax.f32 %v351, 0.0
      %v388 = vmax.f32 %v352, 0.0
      %v389 = vmax.f32 %v353, 0.0
      %v390 = vmax.f32 %v354, 0.0
      %v391 = vmax.f32 %v355, 0.0
      %v392 = vmax.f32 %v356, 0.0
      %v393 = vmax.f32 %v357, 0.0
      %v394 = vmax.f32 %v358, 0.0
      %v395 = vmax.f32 %v359, 0.0
      %v396 = vmax.f32 %v360, 0.0
      %v397 = vmax.f32 %v361, 0.0
      %v398 = vmax.f32 %v362, 0.0
      %v399 = vmax.f32 %v363, 0.0
      %v400 = vmax.f32 %v364, 0.0
      %v401 = vmax.f32 %v365, 0.0
      %v402 = vmax.f32 %v366, 0.0
      %v403 = vmax.f32 %v367, 0.0
      %404 = vst [vmem:[%s208] sm:$0xff] %v368
      %405 = vst [vmem:[%s208 + $0x8] sm:$0xff] %v369
      %406 = vst [vmem:[%s208 + $0x10] sm:$0xff] %v370
      %407 = vst [vmem:[%s208 + $0x18] sm:$0xff] %v371
      %408 = vst [vmem:[%s208 + $0x20] sm:$0xff] %v372
      %409 = vst [vmem:[%s208 + $0x28] sm:$0xff] %v373
      %410 = vst [vmem:[%s208 + $0x30] sm:$0xff] %v374
      %411 = vst [vmem:[%s208 + $0x38] sm:$0xff] %v375
      %412 = vst [vmem:[%s208 + $0x40] sm:$0xff] %v376
      %413 = vst [vmem:[%s208 + $0x48] sm:$0xff] %v377
      %414 = vst [vmem:[%s208 + $0x50] sm:$0xff] %v378
      %415 = vst [vmem:[%s208 + $0x58] sm:$0xff] %v379
      %416 = vst [vmem:[%s208 + $0x60] sm:$0xff] %v380
      %417 = vst [vmem:[%s208 + $0x68] sm:$0xff] %v381
      %418 = vst [vmem:[%s208 + $0x70] sm:$0xff] %v382
      %419 = vst [vmem:[%s208 + $0x78] sm:$0xff] %v383
      %420 = vst [vmem:[%s208 + $0x80] sm:$0xff] %v384
      %421 = vst [vmem:[%s208 + $0x88] sm:$0xff] %v385
      %422 = vst [vmem:[%s208 + $0x90] sm:$0xff] %v386
      %423 = vst [vmem:[%s208 + $0x98] sm:$0xff] %v387
      %424 = vst [vmem:[%s208 + $0xa0] sm:$0xff] %v388
      %425 = vst [vmem:[%s208 + $0xa8] sm:$0xff] %v389
      %426 = vst [vmem:[%s208 + $0xb0] sm:$0xff] %v390
      %427 = vst [vmem:[%s208 + $0xb8] sm:$0xff] %v391
      %428 = vst [vmem:[%s208 + $0xc0] sm:$0xff] %v392
      %429 = vst [vmem:[%s208 + $0xc8] sm:$0xff] %v393
      %430 = vst [vmem:[%s208 + $0xd0] sm:$0xff] %v394
      %431 = vst [vmem:[%s208 + $0xd8] sm:$0xff] %v395
      %432 = vst [vmem:[%s208 + $0xe0] sm:$0xff] %v396
      %433 = vst [vmem:[%s208 + $0xe8] sm:$0xff] %v397
      %434 = vst [vmem:[%s208 + $0xf0] sm:$0xff] %v398
      %435 = vst [vmem:[%s208 + $0xf8] sm:$0xff] %v399
      %436 = vst [vmem:[%s208 + $0x100] sm:$0xff] %v400
      %437 = vst [vmem:[%s208 + $0x108] sm:$0xff] %v401
      %438 = vst [vmem:[%s208 + $0x110] sm:$0xff] %v402
      %439 = vst [vmem:[%s208 + $0x118] sm:$0xff] %v403
      %s440 = smul.u32 36, %s19
      %p441 = scmp.lt.s32.totalorder %s18, 1
      %s442 = scalar_select %p441, %s18, 1
      %p443 = scmp.lt.s32.totalorder %s440, 35
      %s444 = scalar_select %p443, %s440, 35
      %s445 = smul.addr %s442, 36
      %s446 = sadd.s32 %s444, %s445
      %s447 = smul.addr %s446, 8
      %s448 = scalar_lea.vmem %s3, %s447
      // Predicated region
      $region33: #{conv_block.3} parent=31 // pred_check
        %p449 = pneg %p116
      $region34: #{conv_block.3} parent=31 // pred_check_branch
        %451 = sbr.rel (%p449) target = $region36
      $region35: #{conv_block.3} parent=31 // pred_region
        %s452 = smul.u32 36, %s19
      $region36: #{conv_block.3} parent=31 // pred_fallthru
        _
    $region32: #{conv_block.3} parent=5 // pred_fallthru
      _
    %p453 = scmp.le.s32.totalorder 2, %s9
    // Predicated region
    $region37: #{conv_block.3} parent=5 // pred_check
      %p454 = pneg %p453
    $region38: #{conv_block.3} parent=5 // pred_check_branch
      %456 = sbr.rel (%p454) target = $region40
    $region39: #{conv_block.3} parent=5 // pred_region
      %s457 = ssub.s32 %s9, 2
      // Predicated region
      $region41: #{conv_block.3} parent=39 // pred_check
        %p458 = pneg %p122
      $region42: #{conv_block.3} parent=39 // pred_check_branch
        %460 = sbr.rel (%p458) target = $region44
      $region43: #{conv_block.3} parent=39 // pred_region
        %s461 = smul.u32 36, %s21
        %p462 = scmp.lt.s32.totalorder %s20, 1
        %s463 = scalar_select %p462, %s20, 1
        %p464 = scmp.lt.s32.totalorder %s461, 35
        %s465 = scalar_select %p464, %s461, 35
        %s466 = smul.addr %s463, 36
        %s467 = sadd.s32 %s465, %s466
        %s468 = smul.addr %s467, 8
        %s469 = scalar_lea.vmem %s3, %s468
      $region44: #{conv_block.3} parent=39 // pred_fallthru
        _
    $region40: #{conv_block.3} parent=5 // pred_fallthru
      _
  $region6: #{conv_block.3} parent=0 // loop_footer
    %s13 = sadd.s32 1, %s9
  $region7: #{conv_block.3} parent=0 // loop_footer_branch
    %8 = sbr.rel target = $region3
  $region8: #{conv_block.3} parent=0 // loop_exit
    _

// kernel: conv_block.2
$region0: #{conv_block.2}
  #allocation0 [shape = 'u32[]', space=smem, size = 0x4, offset = 0x4, fixed_abs, tag = 'smem constant byte address 0x4 - core index']
  #allocation1 [shape = 'u32[144,128]{1,0:T(1,128)}', space=vmem, size = 0x12000, scoped, tag = 'internal scratch']
  %s0 = inlined_call_operand.vmem [shape: bf16[2,328,128], index: 0, kind: input, shape index: {}]
  %s1 = inlined_call_operand.vmem [shape: f32[288,1], index: 1, kind: input, shape index: {}]
  %s2 = inlined_call_operand.vmem [shape: bf16[9,128,128], index: 2, kind: input, shape index: {}]
  %s3 = inlined_call_operand.vmem [shape: bf16[2,288,128], index: 3, kind: output, shape index: {0}]
  %s4 = inlined_call_operand.vmem [shape: f32[2,1,2,128], index: 4, kind: output, shape index: {1}]
  %5 = xla_tuple %s3, %s4
  %s6 = sld [smem:[#allocation0]]
  $region53: #{conv_block.2} parent=0
    _
  %s8 = ssub.s32 1, %s6
  %s9 = scalar_select 0, %s8, %s6
  loop: start=0, step=1, limit=4
  $region2: #{conv_block.2} parent=0 // loop_pre_header
    _
  $region3: #{conv_block.2} parent=0 // loop_header
    %s11 = sphi 0, %s15
    %p12 = scmp.ge.s32.totalorder %s11, 4
    %s18 = sphi 0, %s30
    %s19 = sphi 0, %s26
    %s20 = sphi 0, %s18
    %s21 = sphi 0, %s19
    %s22 = sphi 0, %s20
    %s23 = sphi 0, %s21
    %s33 = sphi 0, %s35
    %s36 = sphi 0, %s33
    %s37 = sphi 0, %s36
    %s53 = sphi 0, %s37
    %s59 = sphi 0, %s61
    %s62 = sphi 0, %s59
    %s63 = sphi 0, %s62
    %s79 = sphi 0, %s63
    %s83 = sphi 0, %s83
    %s85 = sphi 0, %s83
    %s86 = sphi 0, %s85
    %s100 = sphi 0, %s86
    %s108 = sphi 0, %s110
    %s111 = sphi 0, %s108
    %s112 = sphi 0, %s111
    %s128 = sphi 0, %s112
    %s136 = sphi 0, %s138
    %s139 = sphi 0, %s136
    %s140 = sphi 0, %s139
    %s156 = sphi 0, %s140
  $region4: #{conv_block.2} parent=0 // loop_header_branch
    %14 = sbr.rel (%p12) target = $region8
  $region5: #{conv_block.2} parent=0 // loop_body
    %s16 = ssub.s32 %s11, 1
    %s17 = ssub.s32 %s11, 2
    %s24 = sadd.s32 1, %s19
    %p25 = scmp.ge.s32.totalorder %s24, 1
    %s26 = scalar_select %p25, 0, %s24
    %s27 = sadd.s32 1, %s18
    %s28 = scalar_select %p25, %s27, %s18
    %p29 = scmp.ge.s32.totalorder %s28, 2
    %s30 = scalar_select %p29, 0, %s28
    %s31 = ssub.s32 %s18, %s30
    %p32 = scmp.eq.s32.totalorder %s31, 0
    %s34 = sadd.s32 %s33, 1
    %s35 = scalar_select %p32, %s33, %s34
    %p38 = pneg %p32
    %p39 = scmp.eq.s32.totalorder %s11, 1
    %p40 = por %p38, %p39
    %p41 = scmp.ne.s32.totalorder %s33, %s36
    %p42 = scmp.eq.s32.totalorder %s11, 0
    %p43 = por %p41, %p42
    %p44 = scmp.ne.s32.totalorder %s33, %s36
    %p45 = scmp.eq.s32.totalorder %s16, 1
    %p46 = por %p44, %p45
    %p47 = scmp.ne.s32.totalorder %s36, %s37
    %p48 = scmp.eq.s32.totalorder %s16, 0
    %p49 = por %p47, %p48
    %p50 = scmp.ne.s32.totalorder %s36, %s37
    %p51 = scmp.eq.s32.totalorder %s17, 1
    %p52 = por %p50, %p51
    %p54 = scmp.ne.s32.totalorder %s37, %s53
    %p55 = scmp.eq.s32.totalorder %s17, 0
    %p56 = por %p54, %p55
    %s57 = ssub.s32 %s19, %s26
    %p58 = scmp.eq.s32.totalorder %s57, 0
    %s60 = sadd.s32 %s59, 1
    %s61 = scalar_select %p58, %s59, %s60
    %p64 = pneg %p58
    %p65 = scmp.eq.s32.totalorder %s11, 1
    %p66 = por %p64, %p65
    %p67 = scmp.ne.s32.totalorder %s59, %s62
    %p68 = scmp.eq.s32.totalorder %s11, 0
    %p69 = por %p67, %p68
    %p70 = scmp.ne.s32.totalorder %s59, %s62
    %p71 = scmp.eq.s32.totalorder %s16, 1
    %p72 = por %p70, %p71
    %p73 = scmp.ne.s32.totalorder %s62, %s63
    %p74 = scmp.eq.s32.totalorder %s16, 0
    %p75 = por %p73, %p74
    %p76 = scmp.ne.s32.totalorder %s62, %s63
    %p77 = scmp.eq.s32.totalorder %s17, 1
    %p78 = por %p76, %p77
    %p80 = scmp.ne.s32.totalorder %s63, %s79
    %p81 = scmp.eq.s32.totalorder %s17, 0
    %p82 = por %p80, %p81
    %s84 = sadd.s32 %s83, 1
    %p87 = scmp.eq.s32.totalorder %s11, 1
    %p88 = scmp.ne.s32.totalorder %s83, %s85
    %p89 = scmp.eq.s32.totalorder %s11, 0
    %p90 = por %p88, %p89
    %p91 = scmp.ne.s32.totalorder %s83, %s85
    %p92 = scmp.eq.s32.totalorder %s16, 1
    %p93 = por %p91, %p92
    %p94 = scmp.ne.s32.totalorder %s85, %s86
    %p95 = scmp.eq.s32.totalorder %s16, 0
    %p96 = por %p94, %p95
    %p97 = scmp.ne.s32.totalorder %s85, %s86
    %p98 = scmp.eq.s32.totalorder %s17, 1
    %p99 = por %p97, %p98
    %p101 = scmp.ne.s32.totalorder %s86, %s100
    %p102 = scmp.eq.s32.totalorder %s17, 0
    %p103 = por %p101, %p102
    %s104 = ssub.s32 %s18, %s30
    %s105 = ssub.s32 %s19, %s26
    %s106 = sor.u32 %s104, %s105
    %p107 = scmp.eq.s32.totalorder %s106, 0
    %s109 = sadd.s32 %s108, 1
    %s110 = scalar_select %p107, %s108, %s109
    %p113 = pneg %p107
    %p114 = scmp.eq.s32.totalorder %s11, 1
    %p115 = por %p113, %p114
    %p116 = scmp.ne.s32.totalorder %s108, %s111
    %p117 = scmp.eq.s32.totalorder %s11, 0
    %p118 = por %p116, %p117
    %p119 = scmp.ne.s32.totalorder %s108, %s111
    %p120 = scmp.eq.s32.totalorder %s16, 1
    %p121 = por %p119, %p120
    %p122 = scmp.ne.s32.totalorder %s111, %s112
    %p123 = scmp.eq.s32.totalorder %s16, 0
    %p124 = por %p122, %p123
    %p125 = scmp.ne.s32.totalorder %s111, %s112
    %p126 = scmp.eq.s32.totalorder %s17, 1
    %p127 = por %p125, %p126
    %p129 = scmp.ne.s32.totalorder %s112, %s128
    %p130 = scmp.eq.s32.totalorder %s17, 0
    %p131 = por %p129, %p130
    %s132 = ssub.s32 %s18, %s30
    %s133 = ssub.s32 %s19, %s26
    %s134 = sor.u32 %s132, %s133
    %p135 = scmp.eq.s32.totalorder %s134, 0
    %s137 = sadd.s32 %s136, 1
    %s138 = scalar_select %p135, %s136, %s137
    %p141 = pneg %p135
    %p142 = scmp.eq.s32.totalorder %s11, 1
    %p143 = por %p141, %p142
    %p144 = scmp.ne.s32.totalorder %s136, %s139
    %p145 = scmp.eq.s32.totalorder %s11, 0
    %p146 = por %p144, %p145
    %p147 = scmp.ne.s32.totalorder %s136, %s139
    %p148 = scmp.eq.s32.totalorder %s16, 1
    %p149 = por %p147, %p148
    %p150 = scmp.ne.s32.totalorder %s139, %s140
    %p151 = scmp.eq.s32.totalorder %s16, 0
    %p152 = por %p150, %p151
    %p153 = scmp.ne.s32.totalorder %s139, %s140
    %p154 = scmp.eq.s32.totalorder %s17, 1
    %p155 = por %p153, %p154
    %p157 = scmp.ne.s32.totalorder %s140, %s156
    %p158 = scmp.eq.s32.totalorder %s17, 0
    %p159 = por %p157, %p158
    %p160 = scmp.le.s32.totalorder 1, %s11
    %p161 = scmp.lt.s32.totalorder %s11, 3
    %p162 = pnand %p160, %p161
    %p163 = pneg %p162
    // Predicated region
    $region9: #{conv_block.2} parent=5 // pred_check
      _
    $region10: #{conv_block.2} parent=5 // pred_check_branch
      %165 = sbr.rel (%p162) target = $region12
    $region11: #{conv_block.2} parent=5 // pred_region
      %s166 = ssub.s32 %s11, 1
      // Predicated region
      $region13: #{conv_block.2} parent=11 // pred_check
        %p167 = pneg %p75
      $region14: #{conv_block.2} parent=11 // pred_check_branch
        %169 = sbr.rel (%p167) target = $region16
      $region15: #{conv_block.2} parent=11 // pred_region
        %s170 = smul.u32 36, %s21
        %p171 = scmp.lt.s32.totalorder %s170, 35
        %s172 = scalar_select %p171, %s170, 35
        %s173 = smul.addr %s172, 8
        %s174 = scalar_lea.vmem %s1, %s173
        %s175 = smul.u32 36, %s21
      $region16: #{conv_block.2} parent=11 // pred_fallthru
        _
      // Predicated region
      $region17: #{conv_block.2} parent=11 // pred_check
        %p176 = pneg %p96
      $region18: #{conv_block.2} parent=11 // pred_check_branch
        %178 = sbr.rel (%p176) target = $region20
      $region19: #{conv_block.2} parent=11 // pred_region
        _
      $region20: #{conv_block.2} parent=11 // pred_fallthru
        _
    $region12: #{conv_block.2} parent=5 // pred_fallthru
      _
    %p179 = scmp.lt.s32.totalorder %s11, 2
    // Predicated region
    $region21: #{conv_block.2} parent=5 // pred_check
      %p180 = pneg %p179
    $region22: #{conv_block.2} parent=5 // pred_check_branch
      %182 = sbr.rel (%p180) target = $region24
    $region23: #{conv_block.2} parent=5 // pred_region
      // Predicated region
      $region25: #{conv_block.2} parent=23 // pred_check
        %p183 = pneg %p43
      $region26: #{conv_block.2} parent=23 // pred_check_branch
        %185 = sbr.rel (%p183) target = $region28
      $region27: #{conv_block.2} parent=23 // pred_region
        %p186 = scmp.lt.s32.totalorder %s18, 1
        %s187 = scalar_select %p186, %s18, 1
        %s188 = smul.addr %s187, 41
        %s189 = smul.addr %s188, 4
        %s190 = scalar_lea.vmem %s0, %s189
      $region28: #{conv_block.2} parent=23 // pred_fallthru
        _
    $region24: #{conv_block.2} parent=5 // pred_fallthru
      _
    %p191 = scmp.le.s32.totalorder 1, %s11
    %p192 = scmp.lt.s32.totalorder %s11, 3
    %p193 = pnand %p191, %p192
    %p194 = pneg %p193
    // Predicated region
    $region29: #{conv_block.2} parent=5 // pred_check
      _
    $region30: #{conv_block.2} parent=5 // pred_check_branch
      %196 = sbr.rel (%p193) target = $region32
    $region31: #{conv_block.2} parent=5 // pred_region
      %s197 = ssub.s32 %s11, 1
      %p198 = scmp.lt.s32.totalorder %s20, 1
      %s199 = scalar_select %p198, %s20, 1
      %s200 = smul.addr %s199, 41
      %s201 = smul.addr %s200, 4
      %s202 = scalar_lea.vmem %s0, %s201
      %p203 = pneg %p49
      %p204 = pneg %p46
      %s205 = smul.u32 36, %s21
      %p206 = scmp.lt.s32.totalorder %s205, 35
      %s207 = scalar_select %p206, %s205, 35
      %s208 = smul.addr %s207, 8
      %s209 = scalar_lea.vmem %s1, %s208
      %p210 = pneg %p75
      %p211 = pneg %p72
      %p212 = pneg %p96
      %p213 = pneg %p93
      %p214 = pneg %p124
      %p215 = pneg %p121
      %s216 = smul.u32 36, %s21
      %p217 = scmp.lt.s32.totalorder %s20, 1
      %s218 = scalar_select %p217, %s20, 1
      %p219 = scmp.lt.s32.totalorder %s216, 35
      %s220 = scalar_select %p219, %s216, 35
      %s221 = smul.addr %s218, 36
      %s222 = sadd.s32 %s220, %s221
      %s223 = smul.addr %s222, 4
      %s224 = scalar_lea.vmem %s3, %s223
      %p225 = pneg %p152
      %p226 = pneg %p149
      %p227 = scmp.lt.s32.totalorder %s20, 1
      %s228 = scalar_select %p227, %s20, 1
      %p229 = scmp.lt.s32.totalorder %s21, 0
      %s230 = scalar_select %p229, %s21, 0
      %s231 = sadd.s32 %s230, %s228
      %s232 = smul.addr %s231, 2
      %s233 = scalar_lea.vmem %s4, %s232
      %p234 = scmp.lt.s32.totalorder %s20, 1
      %s235 = scalar_select %p234, %s20, 1
      %s236 = smul.addr %s235, 41
      %s237 = smul.addr %s236, 4
      %s238 = scalar_lea.vmem %s0, %s237
      %s239 = smul.u32 36, %s21
      %p240 = scmp.lt.s32.totalorder %s239, 35
      %s241 = scalar_select %p240, %s239, 35
      %s242 = smul.addr %s241, 8
      %s243 = scalar_lea.vmem %s1, %s242
      %s244 = smul.u32 36, %s21
      %s245 = smul.u32 36, %s21
      %p246 = scmp.lt.s32.totalorder %s20, 1
      %s247 = scalar_select %p246, %s20, 1
      %p248 = scmp.lt.s32.totalorder %s245, 35
      %s249 = scalar_select %p248, %s245, 35
      %s250 = smul.addr %s247, 36
      %s251 = sadd.s32 %s249, %s250
      %s252 = smul.addr %s251, 4
      %s253 = scalar_lea.vmem %s3, %s252
      %s254 = smul.u32 36, %s21
      %p255 = scmp.lt.s32.totalorder %s20, 1
      %s256 = scalar_select %p255, %s20, 1
      %p257 = scmp.lt.s32.totalorder %s21, 0
      %s258 = scalar_select %p257, %s21, 0
      %s259 = sadd.s32 %s258, %s256
      %s260 = smul.addr %s259, 2
      %s261 = scalar_lea.vmem %s4, %s260
      %s263 = smul.u32 %s21, 288
      %s264 = sshra.s32 %s263, 3
      %s265 = sand.u32 %s263, 7
      %s266 = smul.addr %s264, 4
      %s267 = scalar_lea.vmem %s238, %s266
      %v268 = vld [vmem:[%s267] sm:$0xf]
      %v269 = vld [vmem:[%s267 + $0x4] sm:$0xf]
      %v270 = vld [vmem:[%s267 + $0x8] sm:$0xf]
      %v271 = vld [vmem:[%s267 + $0xc] sm:$0xf]
      %v272 = vld [vmem:[%s267 + $0x10] sm:$0xf]
      %v273 = vld [vmem:[%s267 + $0x14] sm:$0xf]
      %v274 = vld [vmem:[%s267 + $0x18] sm:$0xf]
      %v275 = vld [vmem:[%s267 + $0x1c] sm:$0xf]
      %v276 = vld [vmem:[%s267 + $0x20] sm:$0xf]
      %v277 = vld [vmem:[%s267 + $0x24] sm:$0xf]
      %v278 = vld [vmem:[%s267 + $0x28] sm:$0xf]
      %v279 = vld [vmem:[%s267 + $0x2c] sm:$0xf]
      %v280 = vld [vmem:[%s267 + $0x30] sm:$0xf]
      %v281 = vld [vmem:[%s267 + $0x34] sm:$0xf]
      %v282 = vld [vmem:[%s267 + $0x38] sm:$0xf]
      %v283 = vld [vmem:[%s267 + $0x3c] sm:$0xf]
      %v284 = vld [vmem:[%s267 + $0x40] sm:$0xf]
      %v285 = vld [vmem:[%s267 + $0x44] sm:$0xf]
      %v286 = vld [vmem:[%s267 + $0x48] sm:$0xf]
      %v287 = vld [vmem:[%s267 + $0x4c] sm:$0xf]
      %v288 = vld [vmem:[%s267 + $0x50] sm:$0xf]
      %v289 = vld [vmem:[%s267 + $0x54] sm:$0xf]
      %v290 = vld [vmem:[%s267 + $0x58] sm:$0xf]
      %v291 = vld [vmem:[%s267 + $0x5c] sm:$0xf]
      %v292 = vld [vmem:[%s267 + $0x60] sm:$0xf]
      %v293 = vld [vmem:[%s267 + $0x64] sm:$0xf]
      %v294 = vld [vmem:[%s267 + $0x68] sm:$0xf]
      %v295 = vld [vmem:[%s267 + $0x6c] sm:$0xf]
      %v296 = vld [vmem:[%s267 + $0x70] sm:$0xf]
      %v297 = vld [vmem:[%s267 + $0x74] sm:$0xf]
      %v298 = vld [vmem:[%s267 + $0x78] sm:$0xf]
      %v299 = vld [vmem:[%s267 + $0x7c] sm:$0xf]
      %v300 = vld [vmem:[%s267 + $0x80] sm:$0xf]
      %v301 = vld [vmem:[%s267 + $0x84] sm:$0xf]
      %v302 = vld [vmem:[%s267 + $0x88] sm:$0xf]
      %v303 = vld [vmem:[%s267 + $0x8c] sm:$0xf]
      %v304 = vld [vmem:[%s267 + $0x90] sm:$0xf]
      %v305 = vld [vmem:[%s267 + $0x94] sm:$0xf]
      %v306 = vld [vmem:[%s267 + $0x98] sm:$0xf]
      %v307 = vld [vmem:[%s267 + $0x9c] sm:$0xf]
      %v308 = vld [vmem:[%s267 + $0xa0] sm:$0xf]
      %v309 = vld [vmem:[%s2] sm:$0xf]
      %v310 = vld [vmem:[%s2 + $0x4] sm:$0xf]
      %v311 = vld [vmem:[%s2 + $0x8] sm:$0xf]
      %v312 = vld [vmem:[%s2 + $0xc] sm:$0xf]
      %v313 = vld [vmem:[%s2 + $0x10] sm:$0xf]
      %v314 = vld [vmem:[%s2 + $0x14] sm:$0xf]
      %v315 = vld [vmem:[%s2 + $0x18] sm:$0xf]
      %v316 = vld [vmem:[%s2 + $0x1c] sm:$0xf]
      %v317 = vld [vmem:[%s2 + $0x20] sm:$0xf]
      %v318 = vld [vmem:[%s2 + $0x24] sm:$0xf]
      %v319 = vld [vmem:[%s2 + $0x28] sm:$0xf]
      %v320 = vld [vmem:[%s2 + $0x2c] sm:$0xf]
      %v321 = vld [vmem:[%s2 + $0x30] sm:$0xf]
      %v322 = vld [vmem:[%s2 + $0x34] sm:$0xf]
      %v323 = vld [vmem:[%s2 + $0x38] sm:$0xf]
      %v324 = vld [vmem:[%s2 + $0x3c] sm:$0xf]
      %s325 = scalar_lea.vmem %s2, 64
      %v326 = vld [vmem:[%s325] sm:$0xf]
      %v327 = vld [vmem:[%s325 + $0x4] sm:$0xf]
      %v328 = vld [vmem:[%s325 + $0x8] sm:$0xf]
      %v329 = vld [vmem:[%s325 + $0xc] sm:$0xf]
      %v330 = vld [vmem:[%s325 + $0x10] sm:$0xf]
      %v331 = vld [vmem:[%s325 + $0x14] sm:$0xf]
      %v332 = vld [vmem:[%s325 + $0x18] sm:$0xf]
      %v333 = vld [vmem:[%s325 + $0x1c] sm:$0xf]
      %v334 = vld [vmem:[%s325 + $0x20] sm:$0xf]
      %v335 = vld [vmem:[%s325 + $0x24] sm:$0xf]
      %v336 = vld [vmem:[%s325 + $0x28] sm:$0xf]
      %v337 = vld [vmem:[%s325 + $0x2c] sm:$0xf]
      %v338 = vld [vmem:[%s325 + $0x30] sm:$0xf]
      %v339 = vld [vmem:[%s325 + $0x34] sm:$0xf]
      %v340 = vld [vmem:[%s325 + $0x38] sm:$0xf]
      %v341 = vld [vmem:[%s325 + $0x3c] sm:$0xf]
      %v379 = vunpack.c.l.b16 %v268
      %v380 = vunpack.c.l.b16 %v269
      %v381 = vunpack.c.l.b16 %v270
      %v382 = vunpack.c.l.b16 %v271
      %v383 = vunpack.c.l.b16 %v272
      %v384 = vunpack.c.l.b16 %v273
      %v385 = vunpack.c.l.b16 %v274
      %v386 = vunpack.c.l.b16 %v275
      %v387 = vunpack.c.l.b16 %v276
      %v388 = vunpack.c.l.b16 %v277
      %v389 = vunpack.c.l.b16 %v278
      %v390 = vunpack.c.l.b16 %v279
      %v391 = vunpack.c.l.b16 %v280
      %v392 = vunpack.c.l.b16 %v281
      %v393 = vunpack.c.l.b16 %v282
      %v394 = vunpack.c.l.b16 %v283
      %v395 = vunpack.c.l.b16 %v284
      %v396 = vunpack.c.l.b16 %v285
      %v397 = vunpack.c.l.b16 %v286
      %v398 = vunpack.c.l.b16 %v287
      %v399 = vunpack.c.l.b16 %v288
      %v400 = vunpack.c.l.b16 %v289
      %v401 = vunpack.c.l.b16 %v290
      %v402 = vunpack.c.l.b16 %v291
      %v403 = vunpack.c.l.b16 %v292
      %v404 = vunpack.c.l.b16 %v293
      %v405 = vunpack.c.l.b16 %v294
      %v406 = vunpack.c.l.b16 %v295
      %v407 = vunpack.c.l.b16 %v296
      %v408 = vunpack.c.l.b16 %v297
      %v409 = vunpack.c.l.b16 %v298
      %v410 = vunpack.c.l.b16 %v299
      %v411 = vunpack.c.l.b16 %v300
      %v412 = vunpack.c.l.b16 %v301
      %v413 = vunpack.c.l.b16 %v302
      %v414 = vunpack.c.l.b16 %v303
      %v415 = vunpack.c.l.b16 %v304
      %v416 = vpack.c.b16 %v380, %v379
      %v417 = vpack.c.b16 %v382, %v381
      %v418 = vpack.c.b16 %v384, %v383
      %v419 = vpack.c.b16 %v386, %v385
      %v420 = vpack.c.b16 %v388, %v387
      %v421 = vpack.c.b16 %v390, %v389
      %v422 = vpack.c.b16 %v392, %v391
      %v423 = vpack.c.b16 %v394, %v393
      %v424 = vpack.c.b16 %v396, %v395
      %v425 = vpack.c.b16 %v398, %v397
      %v426 = vpack.c.b16 %v400, %v399
      %v427 = vpack.c.b16 %v402, %v401
      %v428 = vpack.c.b16 %v404, %v403
      %v429 = vpack.c.b16 %v406, %v405
      %v430 = vpack.c.b16 %v408, %v407
      %v431 = vpack.c.b16 %v410, %v409
      %v432 = vpack.c.b16 %v412, %v411
      %v433 = vpack.c.b16 %v414, %v413
      %v434 = vpack.c.b16 %v415, %v415
      %vm435 = vsmask.f32 7424
      %v437 = vshrl.u32 %v416, 16
      %v439 = vshll.u32 %v416, 16
      %v441 = vrot.slane %v439, 1
      %v442 = vor.u32 %v437, %v441
      %v444 = vshll.u32 %v417, 16
      %v446 = vrot.slane %v444, 1
      %v447 = vsel %vm435, %v442, %v446
      %v448 = vshrl.u32 %v417, 16
      %v450 = vor.u32 %v448, %v446
      %v452 = vshll.u32 %v418, 16
      %v454 = vrot.slane %v452, 1
      %v455 = vsel %vm435, %v450, %v454
      %v456 = vshrl.u32 %v418, 16
      %v458 = vor.u32 %v456, %v454
      %v460 = vshll.u32 %v419, 16
      %v462 = vrot.slane %v460, 1
      %v463 = vsel %vm435, %v458, %v462
      %v464 = vshrl.u32 %v419, 16
      %v466 = vor.u32 %v464, %v462
      %v468 = vshll.u32 %v420, 16
      %v470 = vrot.slane %v468, 1
      %v471 = vsel %vm435, %v466, %v470
      %v472 = vshrl.u32 %v420, 16
      %v474 = vor.u32 %v472, %v470
      %v476 = vshll.u32 %v421, 16
      %v478 = vrot.slane %v476, 1
      %v479 = vsel %vm435, %v474, %v478
      %v480 = vshrl.u32 %v421, 16
      %v482 = vor.u32 %v480, %v478
      %v484 = vshll.u32 %v422, 16
      %v486 = vrot.slane %v484, 1
      %v487 = vsel %vm435, %v482, %v486
      %v488 = vshrl.u32 %v422, 16
      %v490 = vor.u32 %v488, %v486
      %v492 = vshll.u32 %v423, 16
      %v494 = vrot.slane %v492, 1
      %v495 = vsel %vm435, %v490, %v494
      %v496 = vshrl.u32 %v423, 16
      %v498 = vor.u32 %v496, %v494
      %v500 = vshll.u32 %v424, 16
      %v502 = vrot.slane %v500, 1
      %v503 = vsel %vm435, %v498, %v502
      %v504 = vshrl.u32 %v424, 16
      %v506 = vor.u32 %v504, %v502
      %v508 = vshll.u32 %v425, 16
      %v510 = vrot.slane %v508, 1
      %v511 = vsel %vm435, %v506, %v510
      %v512 = vshrl.u32 %v425, 16
      %v514 = vor.u32 %v512, %v510
      %v516 = vshll.u32 %v426, 16
      %v518 = vrot.slane %v516, 1
      %v519 = vsel %vm435, %v514, %v518
      %v520 = vshrl.u32 %v426, 16
      %v522 = vor.u32 %v520, %v518
      %v524 = vshll.u32 %v427, 16
      %v526 = vrot.slane %v524, 1
      %v527 = vsel %vm435, %v522, %v526
      %v528 = vshrl.u32 %v427, 16
      %v530 = vor.u32 %v528, %v526
      %v532 = vshll.u32 %v428, 16
      %v534 = vrot.slane %v532, 1
      %v535 = vsel %vm435, %v530, %v534
      %v536 = vshrl.u32 %v428, 16
      %v538 = vor.u32 %v536, %v534
      %v540 = vshll.u32 %v429, 16
      %v542 = vrot.slane %v540, 1
      %v543 = vsel %vm435, %v538, %v542
      %v544 = vshrl.u32 %v429, 16
      %v546 = vor.u32 %v544, %v542
      %v548 = vshll.u32 %v430, 16
      %v550 = vrot.slane %v548, 1
      %v551 = vsel %vm435, %v546, %v550
      %v552 = vshrl.u32 %v430, 16
      %v554 = vor.u32 %v552, %v550
      %v556 = vshll.u32 %v431, 16
      %v558 = vrot.slane %v556, 1
      %v559 = vsel %vm435, %v554, %v558
      %v560 = vshrl.u32 %v431, 16
      %v562 = vor.u32 %v560, %v558
      %v564 = vshll.u32 %v432, 16
      %v566 = vrot.slane %v564, 1
      %v567 = vsel %vm435, %v562, %v566
      %v568 = vshrl.u32 %v432, 16
      %v570 = vor.u32 %v568, %v566
      %v572 = vshll.u32 %v433, 16
      %v574 = vrot.slane %v572, 1
      %v575 = vsel %vm435, %v570, %v574
      %v576 = vshrl.u32 %v433, 16
      %v578 = vor.u32 %v576, %v574
      %v580 = vshll.u32 %v434, 16
      %v582 = vrot.slane %v580, 1
      %v583 = vsel %vm435, %v578, %v582
      %v618 = vunpack.c.l.b16 %v326
      %v619 = vunpack.c.l.b16 %v327
      %v620 = vunpack.c.l.b16 %v328
      %v621 = vunpack.c.l.b16 %v329
      %v622 = vunpack.c.l.b16 %v330
      %v623 = vunpack.c.l.b16 %v331
      %v624 = vunpack.c.l.b16 %v332
      %v625 = vunpack.c.l.b16 %v333
      %v626 = vunpack.c.l.b16 %v334
      %v627 = vunpack.c.l.b16 %v335
      %v628 = vunpack.c.l.b16 %v336
      %v629 = vunpack.c.l.b16 %v337
      %v630 = vunpack.c.l.b16 %v338
      %v631 = vunpack.c.l.b16 %v339
      %v632 = vunpack.c.l.b16 %v340
      %v633 = vunpack.c.l.b16 %v341
      %v634 = vpack.c.b16 %v619, %v618
      %v635 = vpack.c.b16 %v621, %v620
      %v636 = vpack.c.b16 %v623, %v622
      %v637 = vpack.c.b16 %v625, %v624
      %v638 = vpack.c.b16 %v627, %v626
      %v639 = vpack.c.b16 %v629, %v628
      %v640 = vpack.c.b16 %v631, %v630
      %v641 = vpack.c.b16 %v633, %v632
      %650 = vmatprep.subr.bf16.mxu0 0
      %651 = vmatpush1.bf16.msra.mxu0 %v634
      %652 = vmatprep.subr.bf16.mxu0 0
      %653 = vmatpush1.bf16.msra.mxu0 %v635
      %654 = vmatprep.subr.bf16.mxu0 0
      %655 = vmatpush1.bf16.msra.mxu0 %v636
      %656 = vmatprep.subr.bf16.mxu0 0
      %657 = vmatpush1.bf16.msra.mxu0 %v637
      %658 = vmatprep.subr.bf16.mxu0 0
      %659 = vmatpush1.bf16.msra.mxu0 %v638
      %660 = vmatprep.subr.bf16.mxu0 0
      %661 = vmatpush1.bf16.msra.mxu0 %v639
      %662 = vmatprep.subr.bf16.mxu0 0
      %663 = vmatpush1.bf16.msra.mxu0 %v640
      %664 = vmatprep.subr.bf16.mxu0 0
      %665 = vmatpush1.bf16.msra.mxu0 %v641
      %666 = vmatprep.subr.bf16.mxu0 0
      %667 = vmatpush1.bf16.msra.mxu0 0
      %668 = vmatprep.subr.bf16.mxu0 0
      %669 = vmatpush1.bf16.msra.mxu0 0
      %670 = vmatprep.subr.bf16.mxu0 0
      %671 = vmatpush1.bf16.msra.mxu0 0
      %672 = vmatprep.subr.bf16.mxu0 0
      %673 = vmatpush1.bf16.msra.mxu0 0
      %674 = vmatprep.subr.bf16.mxu0 0
      %675 = vmatpush1.bf16.msra.mxu0 0
      %676 = vmatprep.subr.bf16.mxu0 0
      %677 = vmatpush1.bf16.msra.mxu0 0
      %678 = vmatprep.subr.bf16.mxu0 0
      %679 = vmatpush1.bf16.msra.mxu0 0
      %680 = vmatprep.subr.bf16.mxu0 0
      %681 = vmatpush1.bf16.msra.mxu0 0
      %682 = vmatprep.mubr.bf16.mxu0 0
      %683 = vmatmul.mubr.bf16.gmra.mrb[0].mxu0 %v447
      %v684 = vpop.f32.mrb[0].mxu0
      %v685 = vadd.f32 0.0, %v684
      %v686 = vpop.f32.mrb[0].mxu0
      %v687 = vpop.f32.mrb[0].mxu0
      %v688 = vadd.f32 0.0, %v687
      %v689 = vpop.f32.mrb[0].mxu0
      %690 = vmatprep.mubr.bf16.mxu0 0
      %691 = vmatmul.mubr.bf16.gmra.mrb[0].mxu0 %v455
      %v692 = vpop.f32.mrb[0].mxu0
      %v693 = vadd.f32 0.0, %v692
      %v694 = vpop.f32.mrb[0].mxu0
      %v695 = vpop.f32.mrb[0].mxu0
      %v696 = vadd.f32 0.0, %v695
      %v697 = vpop.f32.mrb[0].mxu0
      %698 = vmatprep.mubr.bf16.mxu0 0
      %699 = vmatmul.mubr.bf16.gmra.mrb[0].mxu0 %v463
      %v700 = vpop.f32.mrb[0].mxu0
      %v701 = vadd.f32 0.0, %v700
      %v702 = vpop.f32.mrb[0].mxu0
      %v703 = vpop.f32.mrb[0].mxu0
      %v704 = vadd.f32 0.0, %v703
      %v705 = vpop.f32.mrb[0].mxu0
      %706 = vmatprep.mubr.bf16.mxu0 0
      %707 = vmatmul.mubr.bf16.gmra.mrb[0].mxu0 %v471
      %v708 = vpop.f32.mrb[0].mxu0
      %v709 = vadd.f32 0.0, %v708
      %v710 = vpop.f32.mrb[0].mxu0
      %v711 = vpop.f32.mrb[0].mxu0
      %v712 = vadd.f32 0.0, %v711
      %v713 = vpop.f32.mrb[0].mxu0
      %714 = vmatprep.mubr.bf16.mxu0 0
      %715 = vmatmul.mubr.bf16.gmra.mrb[0].mxu0 %v479
      %v716 = vpop.f32.mrb[0].mxu0
      %v717 = vadd.f32 0.0, %v716
      %v718 = vpop.f32.mrb[0].mxu0
      %v719 = vpop.f32.mrb[0].mxu0
      %v720 = vadd.f32 0.0, %v719
      %v721 = vpop.f32.mrb[0].mxu0
      %722 = vmatprep.mubr.bf16.mxu0 0
      %723 = vmatmul.mubr.bf16.gmra.mrb[0].mxu0 %v487
      %v724 = vpop.f32.mrb[0].mxu0
      %v725 = vadd.f32 0.0, %v724
      %v726 = vpop.f32.mrb[0].mxu0
      %v727 = vpop.f32.mrb[0].mxu0
      %v728 = vadd.f32 0.0, %v727
      %v729 = vpop.f32.mrb[0].mxu0
      %730 = vmatprep.mubr.bf16.mxu0 0
      %731 = vmatmul.mubr.bf16.gmra.mrb[0].mxu0 %v495
      %v732 = vpop.f32.mrb[0].mxu0
      %v733 = vadd.f32 0.0, %v732
      %v734 = vpop.f32.mrb[0].mxu0
      %v735 = vpop.f32.mrb[0].mxu0
      %v736 = vadd.f32 0.0, %v735
      %v737 = vpop.f32.mrb[0].mxu0
      %738 = vmatprep.mubr.bf16.mxu0 0
      %739 = vmatmul.mubr.bf16.gmra.mrb[0].mxu0 %v503
      %v740 = vpop.f32.mrb[0].mxu0
      %v741 = vadd.f32 0.0, %v740
      %v742 = vpop.f32.mrb[0].mxu0
      %v743 = vpop.f32.mrb[0].mxu0
      %v744 = vadd.f32 0.0, %v743
      %v745 = vpop.f32.mrb[0].mxu0
      %746 = vmatprep.mubr.bf16.mxu0 0
      %747 = vmatmul.mubr.bf16.gmra.mrb[0].mxu0 %v511
      %v748 = vpop.f32.mrb[0].mxu0
      %v749 = vadd.f32 0.0, %v748
      %v750 = vpop.f32.mrb[0].mxu0
      %v751 = vpop.f32.mrb[0].mxu0
      %v752 = vadd.f32 0.0, %v751
      %v753 = vpop.f32.mrb[0].mxu0
      %754 = vmatprep.mubr.bf16.mxu0 0
      %755 = vmatmul.mubr.bf16.gmra.mrb[0].mxu0 %v519
      %v756 = vpop.f32.mrb[0].mxu0
      %v757 = vadd.f32 0.0, %v756
      %v758 = vpop.f32.mrb[0].mxu0
      %v759 = vpop.f32.mrb[0].mxu0
      %v760 = vadd.f32 0.0, %v759
      %v761 = vpop.f32.mrb[0].mxu0
      %762 = vmatprep.mubr.bf16.mxu0 0
      %763 = vmatmul.mubr.bf16.gmra.mrb[0].mxu0 %v527
      %v764 = vpop.f32.mrb[0].mxu0
      %v765 = vadd.f32 0.0, %v764
      %v766 = vpop.f32.mrb[0].mxu0
      %v767 = vpop.f32.mrb[0].mxu0
      %v768 = vadd.f32 0.0, %v767
      %v769 = vpop.f32.mrb[0].mxu0
      %770 = vmatprep.mubr.bf16.mxu0 0
      %771 = vmatmul.mubr.bf16.gmra.mrb[0].mxu0 %v535
      %v772 = vpop.f32.mrb[0].mxu0
      %v773 = vadd.f32 0.0, %v772
      %v774 = vpop.f32.mrb[0].mxu0
      %v775 = vpop.f32.mrb[0].mxu0
      %v776 = vadd.f32 0.0, %v775
      %v777 = vpop.f32.mrb[0].mxu0
      %778 = vmatprep.mubr.bf16.mxu0 0
      %779 = vmatmul.mubr.bf16.gmra.mrb[0].mxu0 %v543
      %v780 = vpop.f32.mrb[0].mxu0
      %v781 = vadd.f32 0.0, %v780
      %v782 = vpop.f32.mrb[0].mxu0
      %v783 = vpop.f32.mrb[0].mxu0
      %v784 = vadd.f32 0.0, %v783
      %v785 = vpop.f32.mrb[0].mxu0
      %786 = vmatprep.mubr.bf16.mxu0 0
      %787 = vmatmul.mubr.bf16.gmra.mrb[0].mxu0 %v551
      %v788 = vpop.f32.mrb[0].mxu0
      %v789 = vadd.f32 0.0, %v788
      %v790 = vpop.f32.mrb[0].mxu0
      %v791 = vpop.f32.mrb[0].mxu0
      %v792 = vadd.f32 0.0, %v791
      %v793 = vpop.f32.mrb[0].mxu0
      %794 = vmatprep.mubr.bf16.mxu0 0
      %795 = vmatmul.mubr.bf16.gmra.mrb[0].mxu0 %v559
      %v796 = vpop.f32.mrb[0].mxu0
      %v797 = vadd.f32 0.0, %v796
      %v798 = vpop.f32.mrb[0].mxu0
      %v799 = vpop.f32.mrb[0].mxu0
      %v800 = vadd.f32 0.0, %v799
      %v801 = vpop.f32.mrb[0].mxu0
      %802 = vmatprep.mubr.bf16.mxu0 0
      %803 = vmatmul.mubr.bf16.gmra.mrb[0].mxu0 %v567
      %v804 = vpop.f32.mrb[0].mxu0
      %v805 = vadd.f32 0.0, %v804
      %v806 = vpop.f32.mrb[0].mxu0
      %v807 = vpop.f32.mrb[0].mxu0
      %v808 = vadd.f32 0.0, %v807
      %v809 = vpop.f32.mrb[0].mxu0
      %810 = vmatprep.mubr.bf16.mxu0 0
      %811 = vmatmul.mubr.bf16.gmra.mrb[0].mxu0 %v575
      %v812 = vpop.f32.mrb[0].mxu0
      %v813 = vadd.f32 0.0, %v812
      %v814 = vpop.f32.mrb[0].mxu0
      %v815 = vpop.f32.mrb[0].mxu0
      %v816 = vadd.f32 0.0, %v815
      %v817 = vpop.f32.mrb[0].mxu0
      %818 = vmatprep.mubr.bf16.mxu0 0
      %819 = vmatmul.mubr.bf16.gmra.mrb[0].mxu0 %v583
      %v820 = vpop.f32.mrb[0].mxu0
      %v821 = vadd.f32 0.0, %v820
      %v822 = vpop.f32.mrb[0].mxu0
      %v823 = vpop.f32.mrb[0].mxu0
      %v824 = vadd.f32 0.0, %v823
      %v825 = vpop.f32.mrb[0].mxu0
      %826 = vdwg.mxu0
      %v861 = vunpack.c.l.b16 %v309
      %v862 = vunpack.c.l.b16 %v310
      %v863 = vunpack.c.l.b16 %v311
      %v864 = vunpack.c.l.b16 %v312
      %v865 = vunpack.c.l.b16 %v313
      %v866 = vunpack.c.l.b16 %v314
      %v867 = vunpack.c.l.b16 %v315
      %v868 = vunpack.c.l.b16 %v316
      %v869 = vunpack.c.l.b16 %v317
      %v870 = vunpack.c.l.b16 %v318
      %v871 = vunpack.c.l.b16 %v319
      %v872 = vunpack.c.l.b16 %v320
      %v873 = vunpack.c.l.b16 %v321
      %v874 = vunpack.c.l.b16 %v322
      %v875 = vunpack.c.l.b16 %v323
      %v876 = vunpack.c.l.b16 %v324
      %v877 = vpack.c.b16 %v862, %v861
      %v878 = vpack.c.b16 %v864, %v863
      %v879 = vpack.c.b16 %v866, %v865
      %v880 = vpack.c.b16 %v868, %v867
      %v881 = vpack.c.b16 %v870, %v869
      %v882 = vpack.c.b16 %v872, %v871
      %v883 = vpack.c.b16 %v874, %v873
      %v884 = vpack.c.b16 %v876, %v875
      %893 = vmatprep.subr.bf16.mxu0 0
      %894 = vmatpush1.bf16.msra.mxu0 %v877
      %895 = vmatprep.subr.bf16.mxu0 0
      %896 = vmatpush1.bf16.msra.mxu0 %v878
      %897 = vmatprep.subr.bf16.mxu0 0
      %898 = vmatpush1.bf16.msra.mxu0 %v879
      %899 = vmatprep.subr.bf16.mxu0 0
      %900 = vmatpush1.bf16.msra.mxu0 %v880
      %901 = vmatprep.subr.bf16.mxu0 0
      %902 = vmatpush1.bf16.msra.mxu0 %v881
      %903 = vmatprep.subr.bf16.mxu0 0
      %904 = vmatpush1.bf16.msra.mxu0 %v882
      %905 = vmatprep.subr.bf16.mxu0 0
      %906 = vmatpush1.bf16.msra.mxu0 %v883
      %907 = vmatprep.subr.bf16.mxu0 0
      %908 = vmatpush1.bf16.msra.mxu0 %v884
      %909 = vmatprep.subr.bf16.mxu0 0
      %910 = vmatpush1.bf16.msra.mxu0 0
      %911 = vmatprep.subr.bf16.mxu0 0
      %912 = vmatpush1.bf16.msra.mxu0 0
      %913 = vmatprep.subr.bf16.mxu0 0
      %914 = vmatpush1.bf16.msra.mxu0 0
      %915 = vmatprep.subr.bf16.mxu0 0
      %916 = vmatpush1.bf16.msra.mxu0 0
      %917 = vmatprep.subr.bf16.mxu0 0
      %918 = vmatpush1.bf16.msra.mxu0 0
      %919 = vmatprep.subr.bf16.mxu0 0
      %920 = vmatpush1.bf16.msra.mxu0 0
      %921 = vmatprep.subr.bf16.mxu0 0
      %922 = vmatpush1.bf16.msra.mxu0 0
      %923 = vmatprep.subr.bf16.mxu0 0
      %924 = vmatpush1.bf16.msra.mxu0 0
      %925 = vmatprep.mubr.bf16.mxu0 0
      %926 = vmatmul.mubr.bf16.gmra.mrb[0].mxu0 %v416
      %v927 = vpop.f32.mrb[0].mxu0
      %v928 = vadd.f32 %v685, %v927
      %v929 = vpop.f32.mrb[0].mxu0
      %v930 = vpop.f32.mrb[0].mxu0
      %v931 = vadd.f32 %v688, %v930
      %v932 = vpop.f32.mrb[0].mxu0
      %933 = vmatprep.mubr.bf16.mxu0 0
      %934 = vmatmul.mubr.bf16.gmra.mrb[0].mxu0 %v417
      %v935 = vpop.f32.mrb[0].mxu0
      %v936 = vadd.f32 %v693, %v935
      %v937 = vpop.f32.mrb[0].mxu0
      %v938 = vpop.f32.mrb[0].mxu0
      %v939 = vadd.f32 %v696, %v938
      %v940 = vpop.f32.mrb[0].mxu0
      %941 = vmatprep.mubr.bf16.mxu0 0
      %942 = vmatmul.mubr.bf16.gmra.mrb[0].mxu0 %v418
      %v943 = vpop.f32.mrb[0].mxu0
      %v944 = vadd.f32 %v701, %v943
      %v945 = vpop.f32.mrb[0].mxu0
      %v946 = vpop.f32.mrb[0].mxu0
      %v947 = vadd.f32 %v704, %v946
      %v948 = vpop.f32.mrb[0].mxu0
      %949 = vmatprep.mubr.bf16.mxu0 0
      %950 = vmatmul.mubr.bf16.gmra.mrb[0].mxu0 %v419
      %v951 = vpop.f32.mrb[0].mxu0
      %v952 = vadd.f32 %v709, %v951
      %v953 = vpop.f32.mrb[0].mxu0
      %v954 = vpop.f32.mrb[0].mxu0
      %v955 = vadd.f32 %v712, %v954
      %v956 = vpop.f32.mrb[0].mxu0
      %957 = vmatprep.mubr.bf16.mxu0 0
      %958 = vmatmul.mubr.bf16.gmra.mrb[0].mxu0 %v420
      %v959 = vpop.f32.mrb[0].mxu0
      %v960 = vadd.f32 %v717, %v959
      %v961 = vpop.f32.mrb[0].mxu0
      %v962 = vpop.f32.mrb[0].mxu0
      %v963 = vadd.f32 %v720, %v962
      %v964 = vpop.f32.mrb[0].mxu0
      %965 = vmatprep.mubr.bf16.mxu0 0
      %966 = vmatmul.mubr.bf16.gmra.mrb[0].mxu0 %v421
      %v967 = vpop.f32.mrb[0].mxu0
      %v968 = vadd.f32 %v725, %v967
      %v969 = vpop.f32.mrb[0].mxu0
      %v970 = vpop.f32.mrb[0].mxu0
      %v971 = vadd.f32 %v728, %v970
      %v972 = vpop.f32.mrb[0].mxu0
      %973 = vmatprep.mubr.bf16.mxu0 0
      %974 = vmatmul.mubr.bf16.gmra.mrb[0].mxu0 %v422
      %v975 = vpop.f32.mrb[0].mxu0
      %v976 = vadd.f32 %v733, %v975
      %v977 = vpop.f32.mrb[0].mxu0
      %v978 = vpop.f32.mrb[0].mxu0
      %v979 = vadd.f32 %v736, %v978
      %v980 = vpop.f32.mrb[0].mxu0
      %981 = vmatprep.mubr.bf16.mxu0 0
      %982 = vmatmul.mubr.bf16.gmra.mrb[0].mxu0 %v423
      %v983 = vpop.f32.mrb[0].mxu0
      %v984 = vadd.f32 %v741, %v983
      %v985 = vpop.f32.mrb[0].mxu0
      %v986 = vpop.f32.mrb[0].mxu0
      %v987 = vadd.f32 %v744, %v986
      %v988 = vpop.f32.mrb[0].mxu0
      %989 = vmatprep.mubr.bf16.mxu0 0
      %990 = vmatmul.mubr.bf16.gmra.mrb[0].mxu0 %v424
      %v991 = vpop.f32.mrb[0].mxu0
      %v992 = vadd.f32 %v749, %v991
      %v993 = vpop.f32.mrb[0].mxu0
      %v994 = vpop.f32.mrb[0].mxu0
      %v995 = vadd.f32 %v752, %v994
      %v996 = vpop.f32.mrb[0].mxu0
      %997 = vmatprep.mubr.bf16.mxu0 0
      %998 = vmatmul.mubr.bf16.gmra.mrb[0].mxu0 %v425
      %v999 = vpop.f32.mrb[0].mxu0
      %v1000 = vadd.f32 %v757, %v999
      %v1001 = vpop.f32.mrb[0].mxu0
      %v1002 = vpop.f32.mrb[0].mxu0
      %v1003 = vadd.f32 %v760, %v1002
      %v1004 = vpop.f32.mrb[0].mxu0
      %1005 = vmatprep.mubr.bf16.mxu0 0
      %1006 = vmatmul.mubr.bf16.gmra.mrb[0].mxu0 %v426
      %v1007 = vpop.f32.mrb[0].mxu0
      %v1008 = vadd.f32 %v765, %v1007
      %v1009 = vpop.f32.mrb[0].mxu0
      %v1010 = vpop.f32.mrb[0].mxu0
      %v1011 = vadd.f32 %v768, %v1010
      %v1012 = vpop.f32.mrb[0].mxu0
      %1013 = vmatprep.mubr.bf16.mxu0 0
      %1014 = vmatmul.mubr.bf16.gmra.mrb[0].mxu0 %v427
      %v1015 = vpop.f32.mrb[0].mxu0
      %v1016 = vadd.f32 %v773, %v1015
      %v1017 = vpop.f32.mrb[0].mxu0
      %v1018 = vpop.f32.mrb[0].mxu0
      %v1019 = vadd.f32 %v776, %v1018
      %v1020 = vpop.f32.mrb[0].mxu0
      %1021 = vmatprep.mubr.bf16.mxu0 0
      %1022 = vmatmul.mubr.bf16.gmra.mrb[0].mxu0 %v428
      %v1023 = vpop.f32.mrb[0].mxu0
      %v1024 = vadd.f32 %v781, %v1023
      %v1025 = vpop.f32.mrb[0].mxu0
      %v1026 = vpop.f32.mrb[0].mxu0
      %v1027 = vadd.f32 %v784, %v1026
      %v1028 = vpop.f32.mrb[0].mxu0
      %1029 = vmatprep.mubr.bf16.mxu0 0
      %1030 = vmatmul.mubr.bf16.gmra.mrb[0].mxu0 %v429
      %v1031 = vpop.f32.mrb[0].mxu0
      %v1032 = vadd.f32 %v789, %v1031
      %v1033 = vpop.f32.mrb[0].mxu0
      %v1034 = vpop.f32.mrb[0].mxu0
      %v1035 = vadd.f32 %v792, %v1034
      %v1036 = vpop.f32.mrb[0].mxu0
      %1037 = vmatprep.mubr.bf16.mxu0 0
      %1038 = vmatmul.mubr.bf16.gmra.mrb[0].mxu0 %v430
      %v1039 = vpop.f32.mrb[0].mxu0
      %v1040 = vadd.f32 %v797, %v1039
      %v1041 = vpop.f32.mrb[0].mxu0
      %v1042 = vpop.f32.mrb[0].mxu0
      %v1043 = vadd.f32 %v800, %v1042
      %v1044 = vpop.f32.mrb[0].mxu0
      %1045 = vmatprep.mubr.bf16.mxu0 0
      %1046 = vmatmul.mubr.bf16.gmra.mrb[0].mxu0 %v431
      %v1047 = vpop.f32.mrb[0].mxu0
      %v1048 = vadd.f32 %v805, %v1047
      %v1049 = vpop.f32.mrb[0].mxu0
      %v1050 = vpop.f32.mrb[0].mxu0
      %v1051 = vadd.f32 %v808, %v1050
      %v1052 = vpop.f32.mrb[0].mxu0
      %1053 = vmatprep.mubr.bf16.mxu0 0
      %1054 = vmatmul.mubr.bf16.gmra.mrb[0].mxu0 %v432
      %v1055 = vpop.f32.mrb[0].mxu0
      %v1056 = vadd.f32 %v813, %v1055
      %v1057 = vpop.f32.mrb[0].mxu0
      %v1058 = vpop.f32.mrb[0].mxu0
      %v1059 = vadd.f32 %v816, %v1058
      %v1060 = vpop.f32.mrb[0].mxu0
      %1061 = vmatprep.mubr.bf16.mxu0 0
      %1062 = vmatmul.mubr.bf16.gmra.mrb[0].mxu0 %v433
      %v1063 = vpop.f32.mrb[0].mxu0
      %v1064 = vadd.f32 %v821, %v1063
      %v1065 = vpop.f32.mrb[0].mxu0
      %v1066 = vpop.f32.mrb[0].mxu0
      %v1067 = vadd.f32 %v824, %v1066
      %v1068 = vpop.f32.mrb[0].mxu0
      %1069 = vdwg.mxu0
      %s1070 = scalar_lea.vmem %s2, 128
      %v1071 = vld [vmem:[%s1070] sm:$0xf]
      %v1072 = vld [vmem:[%s1070 + $0x4] sm:$0xf]
      %v1073 = vld [vmem:[%s1070 + $0x8] sm:$0xf]
      %v1074 = vld [vmem:[%s1070 + $0xc] sm:$0xf]
      %v1075 = vld [vmem:[%s1070 + $0x10] sm:$0xf]
      %v1076 = vld [vmem:[%s1070 + $0x14] sm:$0xf]
      %v1077 = vld [vmem:[%s1070 + $0x18] sm:$0xf]
      %v1078 = vld [vmem:[%s1070 + $0x1c] sm:$0xf]
      %v1079 = vld [vmem:[%s1070 + $0x20] sm:$0xf]
      %v1080 = vld [vmem:[%s1070 + $0x24] sm:$0xf]
      %v1081 = vld [vmem:[%s1070 + $0x28] sm:$0xf]
      %v1082 = vld [vmem:[%s1070 + $0x2c] sm:$0xf]
      %v1083 = vld [vmem:[%s1070 + $0x30] sm:$0xf]
      %v1084 = vld [vmem:[%s1070 + $0x34] sm:$0xf]
      %v1085 = vld [vmem:[%s1070 + $0x38] sm:$0xf]
      %v1086 = vld [vmem:[%s1070 + $0x3c] sm:$0xf]
      %vm1087 = vcmask 1046528
      %v1088 = vrot.slane %v416, 1
      %v1089 = vrot.slane %v417, 1
      %v1090 = vsel %vm1087, %v1088, %v1089
      %v1091 = vrot.slane %v418, 1
      %v1092 = vsel %vm1087, %v1089, %v1091
      %v1093 = vrot.slane %v419, 1
      %v1094 = vsel %vm1087, %v1091, %v1093
      %v1095 = vrot.slane %v420, 1
      %v1096 = vsel %vm1087, %v1093, %v1095
      %v1097 = vrot.slane %v421, 1
      %v1098 = vsel %vm1087, %v1095, %v1097
      %v1099 = vrot.slane %v422, 1
      %v1100 = vsel %vm1087, %v1097, %v1099
      %v1101 = vrot.slane %v423, 1
      %v1102 = vsel %vm1087, %v1099, %v1101
      %v1103 = vrot.slane %v424, 1
      %v1104 = vsel %vm1087, %v1101, %v1103
      %v1105 = vrot.slane %v425, 1
      %v1106 = vsel %vm1087, %v1103, %v1105
      %v1107 = vrot.slane %v426, 1
      %v1108 = vsel %vm1087, %v1105, %v1107
      %v1109 = vrot.slane %v427, 1
      %v1110 = vsel %vm1087, %v1107, %v1109
      %v1111 = vrot.slane %v428, 1
      %v1112 = vsel %vm1087, %v1109, %v1111
      %v1113 = vrot.slane %v429, 1
      %v1114 = vsel %vm1087, %v1111, %v1113
      %v1115 = vrot.slane %v430, 1
      %v1116 = vsel %vm1087, %v1113, %v1115
      %v1117 = vrot.slane %v431, 1
      %v1118 = vsel %vm1087, %v1115, %v1117
      %v1119 = vrot.slane %v432, 1
      %v1120 = vsel %vm1087, %v1117, %v1119
      %v1121 = vrot.slane %v433, 1
      %v1122 = vsel %vm1087, %v1119, %v1121
      %v1123 = vrot.slane %v434, 1
      %v1124 = vsel %vm1087, %v1121, %v1123
      %v1159 = vunpack.c.l.b16 %v1071
      %v1160 = vunpack.c.l.b16 %v1072
      %v1161 = vunpack.c.l.b16 %v1073
      %v1162 = vunpack.c.l.b16 %v1074
      %v1163 = vunpack.c.l.b16 %v1075
      %v1164 = vunpack.c.l.b16 %v1076
      %v1165 = vunpack.c.l.b16 %v1077
      %v1166 = vunpack.c.l.b16 %v1078
      %v1167 = vunpack.c.l.b16 %v1079
      %v1168 = vunpack.c.l.b16 %v1080
      %v1169 = vunpack.c.l.b16 %v1081
      %v1170 = vunpack.c.l.b16 %v1082
      %v1171 = vunpack.c.l.b16 %v1083
      %v1172 = vunpack.c.l.b16 %v1084
      %v1173 = vunpack.c.l.b16 %v1085
      %v1174 = vunpack.c.l.b16 %v1086
      %v1175 = vpack.c.b16 %v1160, %v1159
      %v1176 = vpack.c.b16 %v1162, %v1161
      %v1177 = vpack.c.b16 %v1164, %v1163
      %v1178 = vpack.c.b16 %v1166, %v1165
      %v1179 = vpack.c.b16 %v1168, %v1167
      %v1180 = vpack.c.b16 %v1170, %v1169
      %v1181 = vpack.c.b16 %v1172, %v1171
      %v1182 = vpack.c.b16 %v1174, %v1173
      %1191 = vmatprep.subr.bf16.mxu0 0
      %1192 = vmatpush1.bf16.msra.mxu0 %v1175
      %1193 = vmatprep.subr.bf16.mxu0 0
      %1194 = vmatpush1.bf16.msra.mxu0 %v1176
      %1195 = vmatprep.subr.bf16.mxu0 0
      %1196 = vmatpush1.bf16.msra.mxu0 %v1177
      %1197 = vmatprep.subr.bf16.mxu0 0
      %1198 = vmatpush1.bf16.msra.mxu0 %v1178
      %1199 = vmatprep.subr.bf16.mxu0 0
      %1200 = vmatpush1.bf16.msra.mxu0 %v1179
      %1201 = vmatprep.subr.bf16.mxu0 0
      %1202 = vmatpush1.bf16.msra.mxu0 %v1180
      %1203 = vmatprep.subr.bf16.mxu0 0
      %1204 = vmatpush1.bf16.msra.mxu0 %v1181
      %1205 = vmatprep.subr.bf16.mxu0 0
      %1206 = vmatpush1.bf16.msra.mxu0 %v1182
      %1207 = vmatprep.subr.bf16.mxu0 0
      %1208 = vmatpush1.bf16.msra.mxu0 0
      %1209 = vmatprep.subr.bf16.mxu0 0
      %1210 = vmatpush1.bf16.msra.mxu0 0
      %1211 = vmatprep.subr.bf16.mxu0 0
      %1212 = vmatpush1.bf16.msra.mxu0 0
      %1213 = vmatprep.subr.bf16.mxu0 0
      %1214 = vmatpush1.bf16.msra.mxu0 0
      %1215 = vmatprep.subr.bf16.mxu0 0
      %1216 = vmatpush1.bf16.msra.mxu0 0
      %1217 = vmatprep.subr.bf16.mxu0 0
      %1218 = vmatpush1.bf16.msra.mxu0 0
      %1219 = vmatprep.subr.bf16.mxu0 0
      %1220 = vmatpush1.bf16.msra.mxu0 0
      %1221 = vmatprep.subr.bf16.mxu0 0
      %1222 = vmatpush1.bf16.msra.mxu0 0
      %1223 = vmatprep.mubr.bf16.mxu0 0
      %1224 = vmatmul.mubr.bf16.gmra.mrb[0].mxu0 %v1090
      %v1225 = vpop.f32.mrb[0].mxu0
      %v1226 = vadd.f32 0.0, %v1225
      %v1227 = vpop.f32.mrb[0].mxu0
      %v1228 = vpop.f32.mrb[0].mxu0
      %v1229 = vadd.f32 0.0, %v1228
      %v1230 = vpop.f32.mrb[0].mxu0
      %1231 = vmatprep.mubr.bf16.mxu0 0
      %1232 = vmatmul.mubr.bf16.gmra.mrb[0].mxu0 %v1092
      %v1233 = vpop.f32.mrb[0].mxu0
      %v1234 = vadd.f32 0.0, %v1233
      %v1235 = vpop.f32.mrb[0].mxu0
      %v1236 = vpop.f32.mrb[0].mxu0
      %v1237 = vadd.f32 0.0, %v1236
      %v1238 = vpop.f32.mrb[0].mxu0
      %1239 = vmatprep.mubr.bf16.mxu0 0
      %1240 = vmatmul.mubr.bf16.gmra.mrb[0].mxu0 %v1094
      %v1241 = vpop.f32.mrb[0].mxu0
      %v1242 = vadd.f32 0.0, %v1241
      %v1243 = vpop.f32.mrb[0].mxu0
      %v1244 = vpop.f32.mrb[0].mxu0
      %v1245 = vadd.f32 0.0, %v1244
      %v1246 = vpop.f32.mrb[0].mxu0
      %1247 = vmatprep.mubr.bf16.mxu0 0
      %1248 = vmatmul.mubr.bf16.gmra.mrb[0].mxu0 %v1096
      %v1249 = vpop.f32.mrb[0].mxu0
      %v1250 = vadd.f32 0.0, %v1249
      %v1251 = vpop.f32.mrb[0].mxu0
      %v1252 = vpop.f32.mrb[0].mxu0
      %v1253 = vadd.f32 0.0, %v1252
      %v1254 = vpop.f32.mrb[0].mxu0
      %1255 = vmatprep.mubr.bf16.mxu0 0
      %1256 = vmatmul.mubr.bf16.gmra.mrb[0].mxu0 %v1098
      %v1257 = vpop.f32.mrb[0].mxu0
      %v1258 = vadd.f32 0.0, %v1257
      %v1259 = vpop.f32.mrb[0].mxu0
      %v1260 = vpop.f32.mrb[0].mxu0
      %v1261 = vadd.f32 0.0, %v1260
      %v1262 = vpop.f32.mrb[0].mxu0
      %1263 = vmatprep.mubr.bf16.mxu0 0
      %1264 = vmatmul.mubr.bf16.gmra.mrb[0].mxu0 %v1100
      %v1265 = vpop.f32.mrb[0].mxu0
      %v1266 = vadd.f32 0.0, %v1265
      %v1267 = vpop.f32.mrb[0].mxu0
      %v1268 = vpop.f32.mrb[0].mxu0
      %v1269 = vadd.f32 0.0, %v1268
      %v1270 = vpop.f32.mrb[0].mxu0
      %1271 = vmatprep.mubr.bf16.mxu0 0
      %1272 = vmatmul.mubr.bf16.gmra.mrb[0].mxu0 %v1102
      %v1273 = vpop.f32.mrb[0].mxu0
      %v1274 = vadd.f32 0.0, %v1273
      %v1275 = vpop.f32.mrb[0].mxu0
      %v1276 = vpop.f32.mrb[0].mxu0
      %v1277 = vadd.f32 0.0, %v1276
      %v1278 = vpop.f32.mrb[0].mxu0
      %1279 = vmatprep.mubr.bf16.mxu0 0
      %1280 = vmatmul.mubr.bf16.gmra.mrb[0].mxu0 %v1104
      %v1281 = vpop.f32.mrb[0].mxu0
      %v1282 = vadd.f32 0.0, %v1281
      %v1283 = vpop.f32.mrb[0].mxu0
      %v1284 = vpop.f32.mrb[0].mxu0
      %v1285 = vadd.f32 0.0, %v1284
      %v1286 = vpop.f32.mrb[0].mxu0
      %1287 = vmatprep.mubr.bf16.mxu0 0
      %1288 = vmatmul.mubr.bf16.gmra.mrb[0].mxu0 %v1106
      %v1289 = vpop.f32.mrb[0].mxu0
      %v1290 = vadd.f32 0.0, %v1289
      %v1291 = vpop.f32.mrb[0].mxu0
      %v1292 = vpop.f32.mrb[0].mxu0
      %v1293 = vadd.f32 0.0, %v1292
      %v1294 = vpop.f32.mrb[0].mxu0
      %1295 = vmatprep.mubr.bf16.mxu0 0
      %1296 = vmatmul.mubr.bf16.gmra.mrb[0].mxu0 %v1108
      %v1297 = vpop.f32.mrb[0].mxu0
      %v1298 = vadd.f32 0.0, %v1297
      %v1299 = vpop.f32.mrb[0].mxu0
      %v1300 = vpop.f32.mrb[0].mxu0
      %v1301 = vadd.f32 0.0, %v1300
      %v1302 = vpop.f32.mrb[0].mxu0
      %1303 = vmatprep.mubr.bf16.mxu0 0
      %1304 = vmatmul.mubr.bf16.gmra.mrb[0].mxu0 %v1110
      %v1305 = vpop.f32.mrb[0].mxu0
      %v1306 = vadd.f32 0.0, %v1305
      %v1307 = vpop.f32.mrb[0].mxu0
      %v1308 = vpop.f32.mrb[0].mxu0
      %v1309 = vadd.f32 0.0, %v1308
      %v1310 = vpop.f32.mrb[0].mxu0
      %1311 = vmatprep.mubr.bf16.mxu0 0
      %1312 = vmatmul.mubr.bf16.gmra.mrb[0].mxu0 %v1112
      %v1313 = vpop.f32.mrb[0].mxu0
      %v1314 = vadd.f32 0.0, %v1313
      %v1315 = vpop.f32.mrb[0].mxu0
      %v1316 = vpop.f32.mrb[0].mxu0
      %v1317 = vadd.f32 0.0, %v1316
      %v1318 = vpop.f32.mrb[0].mxu0
      %1319 = vmatprep.mubr.bf16.mxu0 0
      %1320 = vmatmul.mubr.bf16.gmra.mrb[0].mxu0 %v1114
      %v1321 = vpop.f32.mrb[0].mxu0
      %v1322 = vadd.f32 0.0, %v1321
      %v1323 = vpop.f32.mrb[0].mxu0
      %v1324 = vpop.f32.mrb[0].mxu0
      %v1325 = vadd.f32 0.0, %v1324
      %v1326 = vpop.f32.mrb[0].mxu0
      %1327 = vmatprep.mubr.bf16.mxu0 0
      %1328 = vmatmul.mubr.bf16.gmra.mrb[0].mxu0 %v1116
      %v1329 = vpop.f32.mrb[0].mxu0
      %v1330 = vadd.f32 0.0, %v1329
      %v1331 = vpop.f32.mrb[0].mxu0
      %v1332 = vpop.f32.mrb[0].mxu0
      %v1333 = vadd.f32 0.0, %v1332
      %v1334 = vpop.f32.mrb[0].mxu0
      %1335 = vmatprep.mubr.bf16.mxu0 0
      %1336 = vmatmul.mubr.bf16.gmra.mrb[0].mxu0 %v1118
      %v1337 = vpop.f32.mrb[0].mxu0
      %v1338 = vadd.f32 0.0, %v1337
      %v1339 = vpop.f32.mrb[0].mxu0
      %v1340 = vpop.f32.mrb[0].mxu0
      %v1341 = vadd.f32 0.0, %v1340
      %v1342 = vpop.f32.mrb[0].mxu0
      %1343 = vmatprep.mubr.bf16.mxu0 0
      %1344 = vmatmul.mubr.bf16.gmra.mrb[0].mxu0 %v1120
      %v1345 = vpop.f32.mrb[0].mxu0
      %v1346 = vadd.f32 0.0, %v1345
      %v1347 = vpop.f32.mrb[0].mxu0
      %v1348 = vpop.f32.mrb[0].mxu0
      %v1349 = vadd.f32 0.0, %v1348
      %v1350 = vpop.f32.mrb[0].mxu0
      %1351 = vmatprep.mubr.bf16.mxu0 0
      %1352 = vmatmul.mubr.bf16.gmra.mrb[0].mxu0 %v1122
      %v1353 = vpop.f32.mrb[0].mxu0
      %v1354 = vadd.f32 0.0, %v1353
      %v1355 = vpop.f32.mrb[0].mxu0
      %v1356 = vpop.f32.mrb[0].mxu0
      %v1357 = vadd.f32 0.0, %v1356
      %v1358 = vpop.f32.mrb[0].mxu0
      %1359 = vmatprep.mubr.bf16.mxu0 0
      %1360 = vmatmul.mubr.bf16.gmra.mrb[0].mxu0 %v1124
      %v1361 = vpop.f32.mrb[0].mxu0
      %v1362 = vadd.f32 0.0, %v1361
      %v1363 = vpop.f32.mrb[0].mxu0
      %v1364 = vpop.f32.mrb[0].mxu0
      %v1365 = vadd.f32 0.0, %v1364
      %v1366 = vpop.f32.mrb[0].mxu0
      %1367 = vdwg.mxu0
      %v1368 = vadd.f32 %v928, %v1226
      %v1369 = vadd.f32 %v931, %v1229
      %v1370 = vadd.f32 %v936, %v1234
      %v1371 = vadd.f32 %v939, %v1237
      %v1372 = vadd.f32 %v944, %v1242
      %v1373 = vadd.f32 %v947, %v1245
      %v1374 = vadd.f32 %v952, %v1250
      %v1375 = vadd.f32 %v955, %v1253
      %v1376 = vadd.f32 %v960, %v1258
      %v1377 = vadd.f32 %v963, %v1261
      %v1378 = vadd.f32 %v968, %v1266
      %v1379 = vadd.f32 %v971, %v1269
      %v1380 = vadd.f32 %v976, %v1274
      %v1381 = vadd.f32 %v979, %v1277
      %v1382 = vadd.f32 %v984, %v1282
      %v1383 = vadd.f32 %v987, %v1285
      %v1384 = vadd.f32 %v992, %v1290
      %v1385 = vadd.f32 %v995, %v1293
      %v1386 = vadd.f32 %v1000, %v1298
      %v1387 = vadd.f32 %v1003, %v1301
      %v1388 = vadd.f32 %v1008, %v1306
      %v1389 = vadd.f32 %v1011, %v1309
      %v1390 = vadd.f32 %v1016, %v1314
      %v1391 = vadd.f32 %v1019, %v1317
      %v1392 = vadd.f32 %v1024, %v1322
      %v1393 = vadd.f32 %v1027, %v1325
      %v1394 = vadd.f32 %v1032, %v1330
      %v1395 = vadd.f32 %v1035, %v1333
      %v1396 = vadd.f32 %v1040, %v1338
      %v1397 = vadd.f32 %v1043, %v1341
      %v1398 = vadd.f32 %v1048, %v1346
      %v1399 = vadd.f32 %v1051, %v1349
      %v1400 = vadd.f32 %v1056, %v1354
      %v1401 = vadd.f32 %v1059, %v1357
      %v1402 = vadd.f32 %v1064, %v1362
      %v1403 = vadd.f32 %v1067, %v1365
      %s1404 = scalar_lea.vmem %s2, 192
      %v1405 = vld [vmem:[%s1404] sm:$0xf]
      %v1406 = vld [vmem:[%s1404 + $0x4] sm:$0xf]
      %v1407 = vld [vmem:[%s1404 + $0x8] sm:$0xf]
      %v1408 = vld [vmem:[%s1404 + $0xc] sm:$0xf]
      %v1409 = vld [vmem:[%s1404 + $0x10] sm:$0xf]
      %v1410 = vld [vmem:[%s1404 + $0x14] sm:$0xf]
      %v1411 = vld [vmem:[%s1404 + $0x18] sm:$0xf]
      %v1412 = vld [vmem:[%s1404 + $0x1c] sm:$0xf]
      %v1413 = vld [vmem:[%s1404 + $0x20] sm:$0xf]
      %v1414 = vld [vmem:[%s1404 + $0x24] sm:$0xf]
      %v1415 = vld [vmem:[%s1404 + $0x28] sm:$0xf]
      %v1416 = vld [vmem:[%s1404 + $0x2c] sm:$0xf]
      %v1417 = vld [vmem:[%s1404 + $0x30] sm:$0xf]
      %v1418 = vld [vmem:[%s1404 + $0x34] sm:$0xf]
      %v1419 = vld [vmem:[%s1404 + $0x38] sm:$0xf]
      %v1420 = vld [vmem:[%s1404 + $0x3c] sm:$0xf]
      %v1423 = vunpack.c.l.b16 %v305
      %v1424 = vunpack.c.l.b16 %v306
      %v1425 = vpack.c.b16 %v1423, %v415
      %v1426 = vpack.c.b16 %v1424, %v1424
      %v1427 = vrot.slane %v1425, 1
      %v1428 = vsel %vm1087, %v1121, %v1427
      %v1429 = vrot.slane %v1426, 1
      %v1430 = vsel %vm1087, %v1427, %v1429
      %v1449 = vunpack.c.l.b16 %v1405
      %v1450 = vunpack.c.l.b16 %v1406
      %v1451 = vunpack.c.l.b16 %v1407
      %v1452 = vunpack.c.l.b16 %v1408
      %v1453 = vunpack.c.l.b16 %v1409
      %v1454 = vunpack.c.l.b16 %v1410
      %v1455 = vunpack.c.l.b16 %v1411
      %v1456 = vunpack.c.l.b16 %v1412
      %v1457 = vunpack.c.l.b16 %v1413
      %v1458 = vunpack.c.l.b16 %v1414
      %v1459 = vunpack.c.l.b16 %v1415
      %v1460 = vunpack.c.l.b16 %v1416
      %v1461 = vunpack.c.l.b16 %v1417
      %v1462 = vunpack.c.l.b16 %v1418
      %v1463 = vunpack.c.l.b16 %v1419
      %v1464 = vunpack.c.l.b16 %v1420
      %v1465 = vpack.c.b16 %v1450, %v1449
      %v1466 = vpack.c.b16 %v1452, %v1451
      %v1467 = vpack.c.b16 %v1454, %v1453
      %v1468 = vpack.c.b16 %v1456, %v1455
      %v1469 = vpack.c.b16 %v1458, %v1457
      %v1470 = vpack.c.b16 %v1460, %v1459
      %v1471 = vpack.c.b16 %v1462, %v1461
      %v1472 = vpack.c.b16 %v1464, %v1463
      %1481 = vmatprep.subr.bf16.mxu0 0
      %1482 = vmatpush1.bf16.msra.mxu0 %v1465
      %1483 = vmatprep.subr.bf16.mxu0 0
      %1484 = vmatpush1.bf16.msra.mxu0 %v1466
      %1485 = vmatprep.subr.bf16.mxu0 0
      %1486 = vmatpush1.bf16.msra.mxu0 %v1467
      %1487 = vmatprep.subr.bf16.mxu0 0
      %1488 = vmatpush1.bf16.msra.mxu0 %v1468
      %1489 = vmatprep.subr.bf16.mxu0 0
      %1490 = vmatpush1.bf16.msra.mxu0 %v1469
      %1491 = vmatprep.subr.bf16.mxu0 0
      %1492 = vmatpush1.bf16.msra.mxu0 %v1470
      %1493 = vmatprep.subr.bf16.mxu0 0
      %1494 = vmatpush1.bf16.msra.mxu0 %v1471
      %1495 = vmatprep.subr.bf16.mxu0 0
      %1496 = vmatpush1.bf16.msra.mxu0 %v1472
      %1497 = vmatprep.subr.bf16.mxu0 0
      %1498 = vmatpush1.bf16.msra.mxu0 0
      %1499 = vmatprep.subr.bf16.mxu0 0
      %1500 = vmatpush1.bf16.msra.mxu0 0
      %1501 = vmatprep.subr.bf16.mxu0 0
      %1502 = vmatpush1.bf16.msra.mxu0 0
      %1503 = vmatprep.subr.bf16.mxu0 0
      %1504 = vmatpush1.bf16.msra.mxu0 0
      %1505 = vmatprep.subr.bf16.mxu0 0
      %1506 = vmatpush1.bf16.msra.mxu0 0
      %1507 = vmatprep.subr.bf16.mxu0 0
      %1508 = vmatpush1.bf16.msra.mxu0 0
      %1509 = vmatprep.subr.bf16.mxu0 0
      %1510 = vmatpush1.bf16.msra.mxu0 0
      %1511 = vmatprep.subr.bf16.mxu0 0
      %1512 = vmatpush1.bf16.msra.mxu0 0
      %1513 = vmatprep.mubr.bf16.mxu0 0
      %1514 = vmatmul.mubr.bf16.gmra.mrb[0].mxu0 %v1092
      %v1515 = vpop.f32.mrb[0].mxu0
      %v1516 = vadd.f32 0.0, %v1515
      %v1517 = vpop.f32.mrb[0].mxu0
      %v1518 = vpop.f32.mrb[0].mxu0
      %v1519 = vadd.f32 0.0, %v1518
      %v1520 = vpop.f32.mrb[0].mxu0
      %1521 = vmatprep.mubr.bf16.mxu0 0
      %1522 = vmatmul.mubr.bf16.gmra.mrb[0].mxu0 %v1094
      %v1523 = vpop.f32.mrb[0].mxu0
      %v1524 = vadd.f32 0.0, %v1523
      %v1525 = vpop.f32.mrb[0].mxu0
      %v1526 = vpop.f32.mrb[0].mxu0
      %v1527 = vadd.f32 0.0, %v1526
      %v1528 = vpop.f32.mrb[0].mxu0
      %1529 = vmatprep.mubr.bf16.mxu0 0
      %1530 = vmatmul.mubr.bf16.gmra.mrb[0].mxu0 %v1096
      %v1531 = vpop.f32.mrb[0].mxu0
      %v1532 = vadd.f32 0.0, %v1531
      %v1533 = vpop.f32.mrb[0].mxu0
      %v1534 = vpop.f32.mrb[0].mxu0
      %v1535 = vadd.f32 0.0, %v1534
      %v1536 = vpop.f32.mrb[0].mxu0
      %1537 = vmatprep.mubr.bf16.mxu0 0
      %1538 = vmatmul.mubr.bf16.gmra.mrb[0].mxu0 %v1098
      %v1539 = vpop.f32.mrb[0].mxu0
      %v1540 = vadd.f32 0.0, %v1539
      %v1541 = vpop.f32.mrb[0].mxu0
      %v1542 = vpop.f32.mrb[0].mxu0
      %v1543 = vadd.f32 0.0, %v1542
      %v1544 = vpop.f32.mrb[0].mxu0
      %1545 = vmatprep.mubr.bf16.mxu0 0
      %1546 = vmatmul.mubr.bf16.gmra.mrb[0].mxu0 %v1100
      %v1547 = vpop.f32.mrb[0].mxu0
      %v1548 = vadd.f32 0.0, %v1547
      %v1549 = vpop.f32.mrb[0].mxu0
      %v1550 = vpop.f32.mrb[0].mxu0
      %v1551 = vadd.f32 0.0, %v1550
      %v1552 = vpop.f32.mrb[0].mxu0
      %1553 = vmatprep.mubr.bf16.mxu0 0
      %1554 = vmatmul.mubr.bf16.gmra.mrb[0].mxu0 %v1102
      %v1555 = vpop.f32.mrb[0].mxu0
      %v1556 = vadd.f32 0.0, %v1555
      %v1557 = vpop.f32.mrb[0].mxu0
      %v1558 = vpop.f32.mrb[0].mxu0
      %v1559 = vadd.f32 0.0, %v1558
      %v1560 = vpop.f32.mrb[0].mxu0
      %1561 = vmatprep.mubr.bf16.mxu0 0
      %1562 = vmatmul.mubr.bf16.gmra.mrb[0].mxu0 %v1104
      %v1563 = vpop.f32.mrb[0].mxu0
      %v1564 = vadd.f32 0.0, %v1563
      %v1565 = vpop.f32.mrb[0].mxu0
      %v1566 = vpop.f32.mrb[0].mxu0
      %v1567 = vadd.f32 0.0, %v1566
      %v1568 = vpop.f32.mrb[0].mxu0
      %1569 = vmatprep.mubr.bf16.mxu0 0
      %1570 = vmatmul.mubr.bf16.gmra.mrb[0].mxu0 %v1106
      %v1571 = vpop.f32.mrb[0].mxu0
      %v1572 = vadd.f32 0.0, %v1571
      %v1573 = vpop.f32.mrb[0].mxu0
      %v1574 = vpop.f32.mrb[0].mxu0
      %v1575 = vadd.f32 0.0, %v1574
      %v1576 = vpop.f32.mrb[0].mxu0
      %1577 = vmatprep.mubr.bf16.mxu0 0
      %1578 = vmatmul.mubr.bf16.gmra.mrb[0].mxu0 %v1108
      %v1579 = vpop.f32.mrb[0].mxu0
      %v1580 = vadd.f32 0.0, %v1579
      %v1581 = vpop.f32.mrb[0].mxu0
      %v1582 = vpop.f32.mrb[0].mxu0
      %v1583 = vadd.f32 0.0, %v1582
      %v1584 = vpop.f32.mrb[0].mxu0
      %1585 = vmatprep.mubr.bf16.mxu0 0
      %1586 = vmatmul.mubr.bf16.gmra.mrb[0].mxu0 %v1110
      %v1587 = vpop.f32.mrb[0].mxu0
      %v1588 = vadd.f32 0.0, %v1587
      %v1589 = vpop.f32.mrb[0].mxu0
      %v1590 = vpop.f32.mrb[0].mxu0
      %v1591 = vadd.f32 0.0, %v1590
      %v1592 = vpop.f32.mrb[0].mxu0
      %1593 = vmatprep.mubr.bf16.mxu0 0
      %1594 = vmatmul.mubr.bf16.gmra.mrb[0].mxu0 %v1112
      %v1595 = vpop.f32.mrb[0].mxu0
      %v1596 = vadd.f32 0.0, %v1595
      %v1597 = vpop.f32.mrb[0].mxu0
      %v1598 = vpop.f32.mrb[0].mxu0
      %v1599 = vadd.f32 0.0, %v1598
      %v1600 = vpop.f32.mrb[0].mxu0
      %1601 = vmatprep.mubr.bf16.mxu0 0
      %1602 = vmatmul.mubr.bf16.gmra.mrb[0].mxu0 %v1114
      %v1603 = vpop.f32.mrb[0].mxu0
      %v1604 = vadd.f32 0.0, %v1603
      %v1605 = vpop.f32.mrb[0].mxu0
      %v1606 = vpop.f32.mrb[0].mxu0
      %v1607 = vadd.f32 0.0, %v1606
      %v1608 = vpop.f32.mrb[0].mxu0
      %1609 = vmatprep.mubr.bf16.mxu0 0
      %1610 = vmatmul.mubr.bf16.gmra.mrb[0].mxu0 %v1116
      %v1611 = vpop.f32.mrb[0].mxu0
      %v1612 = vadd.f32 0.0, %v1611
      %v1613 = vpop.f32.mrb[0].mxu0
      %v1614 = vpop.f32.mrb[0].mxu0
      %v1615 = vadd.f32 0.0, %v1614
      %v1616 = vpop.f32.mrb[0].mxu0
      %1617 = vmatprep.mubr.bf16.mxu0 0
      %1618 = vmatmul.mubr.bf16.gmra.mrb[0].mxu0 %v1118
      %v1619 = vpop.f32.mrb[0].mxu0
      %v1620 = vadd.f32 0.0, %v1619
      %v1621 = vpop.f32.mrb[0].mxu0
      %v1622 = vpop.f32.mrb[0].mxu0
      %v1623 = vadd.f32 0.0, %v1622
      %v1624 = vpop.f32.mrb[0].mxu0
      %1625 = vmatprep.mubr.bf16.mxu0 0
      %1626 = vmatmul.mubr.bf16.gmra.mrb[0].mxu0 %v1120
      %v1627 = vpop.f32.mrb[0].mxu0
      %v1628 = vadd.f32 0.0, %v1627
      %v1629 = vpop.f32.mrb[0].mxu0
      %v1630 = vpop.f32.mrb[0].mxu0
      %v1631 = vadd.f32 0.0, %v1630
      %v1632 = vpop.f32.mrb[0].mxu0
      %1633 = vmatprep.mubr.bf16.mxu0 0
      %1634 = vmatmul.mubr.bf16.gmra.mrb[0].mxu0 %v1122
      %v1635 = vpop.f32.mrb[0].mxu0
      %v1636 = vadd.f32 0.0, %v1635
      %v1637 = vpop.f32.mrb[0].mxu0
      %v1638 = vpop.f32.mrb[0].mxu0
      %v1639 = vadd.f32 0.0, %v1638
      %v1640 = vpop.f32.mrb[0].mxu0
      %1641 = vmatprep.mubr.bf16.mxu0 0
      %1642 = vmatmul.mubr.bf16.gmra.mrb[0].mxu0 %v1428
      %v1643 = vpop.f32.mrb[0].mxu0
      %v1644 = vadd.f32 0.0, %v1643
      %v1645 = vpop.f32.mrb[0].mxu0
      %v1646 = vpop.f32.mrb[0].mxu0
      %v1647 = vadd.f32 0.0, %v1646
      %v1648 = vpop.f32.mrb[0].mxu0
      %1649 = vmatprep.mubr.bf16.mxu0 0
      %1650 = vmatmul.mubr.bf16.gmra.mrb[0].mxu0 %v1430
      %v1651 = vpop.f32.mrb[0].mxu0
      %v1652 = vadd.f32 0.0, %v1651
      %v1653 = vpop.f32.mrb[0].mxu0
      %v1654 = vpop.f32.mrb[0].mxu0
      %v1655 = vadd.f32 0.0, %v1654
      %v1656 = vpop.f32.mrb[0].mxu0
      %1657 = vdwg.mxu0
      %v1658 = vadd.f32 %v1368, %v1516
      %v1659 = vadd.f32 %v1369, %v1519
      %v1660 = vadd.f32 %v1370, %v1524
      %v1661 = vadd.f32 %v1371, %v1527
      %v1662 = vadd.f32 %v1372, %v1532
      %v1663 = vadd.f32 %v1373, %v1535
      %v1664 = vadd.f32 %v1374, %v1540
      %v1665 = vadd.f32 %v1375, %v1543
      %v1666 = vadd.f32 %v1376, %v1548
      %v1667 = vadd.f32 %v1377, %v1551
      %v1668 = vadd.f32 %v1378, %v1556
      %v1669 = vadd.f32 %v1379, %v1559
      %v1670 = vadd.f32 %v1380, %v1564
      %v1671 = vadd.f32 %v1381, %v1567
      %v1672 = vadd.f32 %v1382, %v1572
      %v1673 = vadd.f32 %v1383, %v1575
      %v1674 = vadd.f32 %v1384, %v1580
      %v1675 = vadd.f32 %v1385, %v1583
      %v1676 = vadd.f32 %v1386, %v1588
      %v1677 = vadd.f32 %v1387, %v1591
      %v1678 = vadd.f32 %v1388, %v1596
      %v1679 = vadd.f32 %v1389, %v1599
      %v1680 = vadd.f32 %v1390, %v1604
      %v1681 = vadd.f32 %v1391, %v1607
      %v1682 = vadd.f32 %v1392, %v1612
      %v1683 = vadd.f32 %v1393, %v1615
      %v1684 = vadd.f32 %v1394, %v1620
      %v1685 = vadd.f32 %v1395, %v1623
      %v1686 = vadd.f32 %v1396, %v1628
      %v1687 = vadd.f32 %v1397, %v1631
      %v1688 = vadd.f32 %v1398, %v1636
      %v1689 = vadd.f32 %v1399, %v1639
      %v1690 = vadd.f32 %v1400, %v1644
      %v1691 = vadd.f32 %v1401, %v1647
      %v1692 = vadd.f32 %v1402, %v1652
      %v1693 = vadd.f32 %v1403, %v1655
      %s1694 = scalar_lea.vmem %s2, 256
      %v1695 = vld [vmem:[%s1694] sm:$0xf]
      %v1696 = vld [vmem:[%s1694 + $0x4] sm:$0xf]
      %v1697 = vld [vmem:[%s1694 + $0x8] sm:$0xf]
      %v1698 = vld [vmem:[%s1694 + $0xc] sm:$0xf]
      %v1699 = vld [vmem:[%s1694 + $0x10] sm:$0xf]
      %v1700 = vld [vmem:[%s1694 + $0x14] sm:$0xf]
      %v1701 = vld [vmem:[%s1694 + $0x18] sm:$0xf]
      %v1702 = vld [vmem:[%s1694 + $0x1c] sm:$0xf]
      %v1703 = vld [vmem:[%s1694 + $0x20] sm:$0xf]
      %v1704 = vld [vmem:[%s1694 + $0x24] sm:$0xf]
      %v1705 = vld [vmem:[%s1694 + $0x28] sm:$0xf]
      %v1706 = vld [vmem:[%s1694 + $0x2c] sm:$0xf]
      %v1707 = vld [vmem:[%s1694 + $0x30] sm:$0xf]
      %v1708 = vld [vmem:[%s1694 + $0x34] sm:$0xf]
      %v1709 = vld [vmem:[%s1694 + $0x38] sm:$0xf]
      %v1710 = vld [vmem:[%s1694 + $0x3c] sm:$0xf]
      %vm1711 = vsmask.f32 6400
      %v1712 = vrot.slane %v448, 1
      %v1713 = vrot.slane %v444, 2
      %v1714 = vor.u32 %v1712, %v1713
      %v1715 = vrot.slane %v456, 1
      %v1716 = vrot.slane %v452, 2
      %v1717 = vor.u32 %v1715, %v1716
      %v1718 = vsel %vm1711, %v1714, %v1717
      %v1719 = vrot.slane %v464, 1
      %v1720 = vrot.slane %v460, 2
      %v1721 = vor.u32 %v1719, %v1720
      %v1722 = vsel %vm1711, %v1717, %v1721
      %v1723 = vrot.slane %v472, 1
      %v1724 = vrot.slane %v468, 2
      %v1725 = vor.u32 %v1723, %v1724
      %v1726 = vsel %vm1711, %v1721, %v1725
      %v1727 = vrot.slane %v480, 1
      %v1728 = vrot.slane %v476, 2
      %v1729 = vor.u32 %v1727, %v1728
      %v1730 = vsel %vm1711, %v1725, %v1729
      %v1731 = vrot.slane %v488, 1
      %v1732 = vrot.slane %v484, 2
      %v1733 = vor.u32 %v1731, %v1732
      %v1734 = vsel %vm1711, %v1729, %v1733
      %v1735 = vrot.slane %v496, 1
      %v1736 = vrot.slane %v492, 2
      %v1737 = vor.u32 %v1735, %v1736
      %v1738 = vsel %vm1711, %v1733, %v1737
      %v1739 = vrot.slane %v504, 1
      %v1740 = vrot.slane %v500, 2
      %v1741 = vor.u32 %v1739, %v1740
      %v1742 = vsel %vm1711, %v1737, %v1741
      %v1743 = vrot.slane %v512, 1
      %v1744 = vrot.slane %v508, 2
      %v1745 = vor.u32 %v1743, %v1744
      %v1746 = vsel %vm1711, %v1741, %v1745
      %v1747 = vrot.slane %v520, 1
      %v1748 = vrot.slane %v516, 2
      %v1749 = vor.u32 %v1747, %v1748
      %v1750 = vsel %vm1711, %v1745, %v1749
      %v1751 = vrot.slane %v528, 1
      %v1752 = vrot.slane %v524, 2
      %v1753 = vor.u32 %v1751, %v1752
      %v1754 = vsel %vm1711, %v1749, %v1753
      %v1755 = vrot.slane %v536, 1
      %v1756 = vrot.slane %v532, 2
      %v1757 = vor.u32 %v1755, %v1756
      %v1758 = vsel %vm1711, %v1753, %v1757
      %v1759 = vrot.slane %v544, 1
      %v1760 = vrot.slane %v540, 2
      %v1761 = vor.u32 %v1759, %v1760
      %v1762 = vsel %vm1711, %v1757, %v1761
      %v1763 = vrot.slane %v552, 1
      %v1764 = vrot.slane %v548, 2
      %v1765 = vor.u32 %v1763, %v1764
      %v1766 = vsel %vm1711, %v1761, %v1765
      %v1767 = vrot.slane %v560, 1
      %v1768 = vrot.slane %v556, 2
      %v1769 = vor.u32 %v1767, %v1768
      %v1770 = vsel %vm1711, %v1765, %v1769
      %v1771 = vrot.slane %v568, 1
      %v1772 = vrot.slane %v564, 2
      %v1773 = vor.u32 %v1771, %v1772
      %v1774 = vsel %vm1711, %v1769, %v1773
      %v1775 = vrot.slane %v576, 1
      %v1776 = vrot.slane %v572, 2
      %v1777 = vor.u32 %v1775, %v1776
      %v1778 = vsel %vm1711, %v1773, %v1777
      %v1780 = vshrl.u32 %v1425, 16
      %v1782 = vrot.slane %v1780, 1
      %v1783 = vshll.u32 %v1425, 16
      %v1785 = vrot.slane %v1783, 2
      %v1786 = vor.u32 %v1782, %v1785
      %v1787 = vsel %vm1711, %v1777, %v1786
      %v1789 = vshrl.u32 %v1426, 16
      %v1791 = vrot.slane %v1789, 1
      %v1792 = vshll.u32 %v1426, 16
      %v1794 = vrot.slane %v1792, 2
      %v1795 = vor.u32 %v1791, %v1794
      %v1796 = vsel %vm1711, %v1786, %v1795
      %v1831 = vunpack.c.l.b16 %v1695
      %v1832 = vunpack.c.l.b16 %v1696
      %v1833 = vunpack.c.l.b16 %v1697
      %v1834 = vunpack.c.l.b16 %v1698
      %v1835 = vunpack.c.l.b16 %v1699
      %v1836 = vunpack.c.l.b16 %v1700
      %v1837 = vunpack.c.l.b16 %v1701
      %v1838 = vunpack.c.l.b16 %v1702
      %v1839 = vunpack.c.l.b16 %v1703
      %v1840 = vunpack.c.l.b16 %v1704
      %v1841 = vunpack.c.l.b16 %v1705
      %v1842 = vunpack.c.l.b16 %v1706
      %v1843 = vunpack.c.l.b16 %v1707
      %v1844 = vunpack.c.l.b16 %v1708
      %v1845 = vunpack.c.l.b16 %v1709
      %v1846 = vunpack.c.l.b16 %v1710
      %v1847 = vpack.c.b16 %v1832, %v1831
      %v1848 = vpack.c.b16 %v1834, %v1833
      %v1849 = vpack.c.b16 %v1836, %v1835
      %v1850 = vpack.c.b16 %v1838, %v1837
      %v1851 = vpack.c.b16 %v1840, %v1839
      %v1852 = vpack.c.b16 %v1842, %v1841
      %v1853 = vpack.c.b16 %v1844, %v1843
      %v1854 = vpack.c.b16 %v1846, %v1845
      %1863 = vmatprep.subr.bf16.mxu0 0
      %1864 = vmatpush1.bf16.msra.mxu0 %v1847
      %1865 = vmatprep.subr.bf16.mxu0 0
      %1866 = vmatpush1.bf16.msra.mxu0 %v1848
      %1867 = vmatprep.subr.bf16.mxu0 0
      %1868 = vmatpush1.bf16.msra.mxu0 %v1849
      %1869 = vmatprep.subr.bf16.mxu0 0
      %1870 = vmatpush1.bf16.msra.mxu0 %v1850
      %1871 = vmatprep.subr.bf16.mxu0 0
      %1872 = vmatpush1.bf16.msra.mxu0 %v1851
      %1873 = vmatprep.subr.bf16.mxu0 0
      %1874 = vmatpush1.bf16.msra.mxu0 %v1852
      %1875 = vmatprep.subr.bf16.mxu0 0
      %1876 = vmatpush1.bf16.msra.mxu0 %v1853
      %1877 = vmatprep.subr.bf16.mxu0 0
      %1878 = vmatpush1.bf16.msra.mxu0 %v1854
      %1879 = vmatprep.subr.bf16.mxu0 0
      %1880 = vmatpush1.bf16.msra.mxu0 0
      %1881 = vmatprep.subr.bf16.mxu0 0
      %1882 = vmatpush1.bf16.msra.mxu0 0
      %1883 = vmatprep.subr.bf16.mxu0 0
      %1884 = vmatpush1.bf16.msra.mxu0 0
      %1885 = vmatprep.subr.bf16.mxu0 0
      %1886 = vmatpush1.bf16.msra.mxu0 0
      %1887 = vmatprep.subr.bf16.mxu0 0
      %1888 = vmatpush1.bf16.msra.mxu0 0
      %1889 = vmatprep.subr.bf16.mxu0 0
      %1890 = vmatpush1.bf16.msra.mxu0 0
      %1891 = vmatprep.subr.bf16.mxu0 0
      %1892 = vmatpush1.bf16.msra.mxu0 0
      %1893 = vmatprep.subr.bf16.mxu0 0
      %1894 = vmatpush1.bf16.msra.mxu0 0
      %1895 = vmatprep.mubr.bf16.mxu0 0
      %1896 = vmatmul.mubr.bf16.gmra.mrb[0].mxu0 %v1718
      %v1897 = vpop.f32.mrb[0].mxu0
      %v1898 = vadd.f32 0.0, %v1897
      %v1899 = vpop.f32.mrb[0].mxu0
      %v1900 = vpop.f32.mrb[0].mxu0
      %v1901 = vadd.f32 0.0, %v1900
      %v1902 = vpop.f32.mrb[0].mxu0
      %1903 = vmatprep.mubr.bf16.mxu0 0
      %1904 = vmatmul.mubr.bf16.gmra.mrb[0].mxu0 %v1722
      %v1905 = vpop.f32.mrb[0].mxu0
      %v1906 = vadd.f32 0.0, %v1905
      %v1907 = vpop.f32.mrb[0].mxu0
      %v1908 = vpop.f32.mrb[0].mxu0
      %v1909 = vadd.f32 0.0, %v1908
      %v1910 = vpop.f32.mrb[0].mxu0
      %1911 = vmatprep.mubr.bf16.mxu0 0
      %1912 = vmatmul.mubr.bf16.gmra.mrb[0].mxu0 %v1726
      %v1913 = vpop.f32.mrb[0].mxu0
      %v1914 = vadd.f32 0.0, %v1913
      %v1915 = vpop.f32.mrb[0].mxu0
      %v1916 = vpop.f32.mrb[0].mxu0
      %v1917 = vadd.f32 0.0, %v1916
      %v1918 = vpop.f32.mrb[0].mxu0
      %1919 = vmatprep.mubr.bf16.mxu0 0
      %1920 = vmatmul.mubr.bf16.gmra.mrb[0].mxu0 %v1730
      %v1921 = vpop.f32.mrb[0].mxu0
      %v1922 = vadd.f32 0.0, %v1921
      %v1923 = vpop.f32.mrb[0].mxu0
      %v1924 = vpop.f32.mrb[0].mxu0
      %v1925 = vadd.f32 0.0, %v1924
      %v1926 = vpop.f32.mrb[0].mxu0
      %1927 = vmatprep.mubr.bf16.mxu0 0
      %1928 = vmatmul.mubr.bf16.gmra.mrb[0].mxu0 %v1734
      %v1929 = vpop.f32.mrb[0].mxu0
      %v1930 = vadd.f32 0.0, %v1929
      %v1931 = vpop.f32.mrb[0].mxu0
      %v1932 = vpop.f32.mrb[0].mxu0
      %v1933 = vadd.f32 0.0, %v1932
      %v1934 = vpop.f32.mrb[0].mxu0
      %1935 = vmatprep.mubr.bf16.mxu0 0
      %1936 = vmatmul.mubr.bf16.gmra.mrb[0].mxu0 %v1738
      %v1937 = vpop.f32.mrb[0].mxu0
      %v1938 = vadd.f32 0.0, %v1937
      %v1939 = vpop.f32.mrb[0].mxu0
      %v1940 = vpop.f32.mrb[0].mxu0
      %v1941 = vadd.f32 0.0, %v1940
      %v1942 = vpop.f32.mrb[0].mxu0
      %1943 = vmatprep.mubr.bf16.mxu0 0
      %1944 = vmatmul.mubr.bf16.gmra.mrb[0].mxu0 %v1742
      %v1945 = vpop.f32.mrb[0].mxu0
      %v1946 = vadd.f32 0.0, %v1945
      %v1947 = vpop.f32.mrb[0].mxu0
      %v1948 = vpop.f32.mrb[0].mxu0
      %v1949 = vadd.f32 0.0, %v1948
      %v1950 = vpop.f32.mrb[0].mxu0
      %1951 = vmatprep.mubr.bf16.mxu0 0
      %1952 = vmatmul.mubr.bf16.gmra.mrb[0].mxu0 %v1746
      %v1953 = vpop.f32.mrb[0].mxu0
      %v1954 = vadd.f32 0.0, %v1953
      %v1955 = vpop.f32.mrb[0].mxu0
      %v1956 = vpop.f32.mrb[0].mxu0
      %v1957 = vadd.f32 0.0, %v1956
      %v1958 = vpop.f32.mrb[0].mxu0
      %1959 = vmatprep.mubr.bf16.mxu0 0
      %1960 = vmatmul.mubr.bf16.gmra.mrb[0].mxu0 %v1750
      %v1961 = vpop.f32.mrb[0].mxu0
      %v1962 = vadd.f32 0.0, %v1961
      %v1963 = vpop.f32.mrb[0].mxu0
      %v1964 = vpop.f32.mrb[0].mxu0
      %v1965 = vadd.f32 0.0, %v1964
      %v1966 = vpop.f32.mrb[0].mxu0
      %1967 = vmatprep.mubr.bf16.mxu0 0
      %1968 = vmatmul.mubr.bf16.gmra.mrb[0].mxu0 %v1754
      %v1969 = vpop.f32.mrb[0].mxu0
      %v1970 = vadd.f32 0.0, %v1969
      %v1971 = vpop.f32.mrb[0].mxu0
      %v1972 = vpop.f32.mrb[0].mxu0
      %v1973 = vadd.f32 0.0, %v1972
      %v1974 = vpop.f32.mrb[0].mxu0
      %1975 = vmatprep.mubr.bf16.mxu0 0
      %1976 = vmatmul.mubr.bf16.gmra.mrb[0].mxu0 %v1758
      %v1977 = vpop.f32.mrb[0].mxu0
      %v1978 = vadd.f32 0.0, %v1977
      %v1979 = vpop.f32.mrb[0].mxu0
      %v1980 = vpop.f32.mrb[0].mxu0
      %v1981 = vadd.f32 0.0, %v1980
      %v1982 = vpop.f32.mrb[0].mxu0
      %1983 = vmatprep.mubr.bf16.mxu0 0
      %1984 = vmatmul.mubr.bf16.gmra.mrb[0].mxu0 %v1762
      %v1985 = vpop.f32.mrb[0].mxu0
      %v1986 = vadd.f32 0.0, %v1985
      %v1987 = vpop.f32.mrb[0].mxu0
      %v1988 = vpop.f32.mrb[0].mxu0
      %v1989 = vadd.f32 0.0, %v1988
      %v1990 = vpop.f32.mrb[0].mxu0
      %1991 = vmatprep.mubr.bf16.mxu0 0
      %1992 = vmatmul.mubr.bf16.gmra.mrb[0].mxu0 %v1766
      %v1993 = vpop.f32.mrb[0].mxu0
      %v1994 = vadd.f32 0.0, %v1993
      %v1995 = vpop.f32.mrb[0].mxu0
      %v1996 = vpop.f32.mrb[0].mxu0
      %v1997 = vadd.f32 0.0, %v1996
      %v1998 = vpop.f32.mrb[0].mxu0
      %1999 = vmatprep.mubr.bf16.mxu0 0
      %2000 = vmatmul.mubr.bf16.gmra.mrb[0].mxu0 %v1770
      %v2001 = vpop.f32.mrb[0].mxu0
      %v2002 = vadd.f32 0.0, %v2001
      %v2003 = vpop.f32.mrb[0].mxu0
      %v2004 = vpop.f32.mrb[0].mxu0
      %v2005 = vadd.f32 0.0, %v2004
      %v2006 = vpop.f32.mrb[0].mxu0
      %2007 = vmatprep.mubr.bf16.mxu0 0
      %2008 = vmatmul.mubr.bf16.gmra.mrb[0].mxu0 %v1774
      %v2009 = vpop.f32.mrb[0].mxu0
      %v2010 = vadd.f32 0.0, %v2009
      %v2011 = vpop.f32.mrb[0].mxu0
      %v2012 = vpop.f32.mrb[0].mxu0
      %v2013 = vadd.f32 0.0, %v2012
      %v2014 = vpop.f32.mrb[0].mxu0
      %2015 = vmatprep.mubr.bf16.mxu0 0
      %2016 = vmatmul.mubr.bf16.gmra.mrb[0].mxu0 %v1778
      %v2017 = vpop.f32.mrb[0].mxu0
      %v2018 = vadd.f32 0.0, %v2017
      %v2019 = vpop.f32.mrb[0].mxu0
      %v2020 = vpop.f32.mrb[0].mxu0
      %v2021 = vadd.f32 0.0, %v2020
      %v2022 = vpop.f32.mrb[0].mxu0
      %2023 = vmatprep.mubr.bf16.mxu0 0
      %2024 = vmatmul.mubr.bf16.gmra.mrb[0].mxu0 %v1787
      %v2025 = vpop.f32.mrb[0].mxu0
      %v2026 = vadd.f32 0.0, %v2025
      %v2027 = vpop.f32.mrb[0].mxu0
      %v2028 = vpop.f32.mrb[0].mxu0
      %v2029 = vadd.f32 0.0, %v2028
      %v2030 = vpop.f32.mrb[0].mxu0
      %2031 = vmatprep.mubr.bf16.mxu0 0
      %2032 = vmatmul.mubr.bf16.gmra.mrb[0].mxu0 %v1796
      %v2033 = vpop.f32.mrb[0].mxu0
      %v2034 = vadd.f32 0.0, %v2033
      %v2035 = vpop.f32.mrb[0].mxu0
      %v2036 = vpop.f32.mrb[0].mxu0
      %v2037 = vadd.f32 0.0, %v2036
      %v2038 = vpop.f32.mrb[0].mxu0
      %2039 = vdwg.mxu0
      %v2040 = vadd.f32 %v1658, %v1898
      %v2041 = vadd.f32 %v1659, %v1901
      %v2042 = vadd.f32 %v1660, %v1906
      %v2043 = vadd.f32 %v1661, %v1909
      %v2044 = vadd.f32 %v1662, %v1914
      %v2045 = vadd.f32 %v1663, %v1917
      %v2046 = vadd.f32 %v1664, %v1922
      %v2047 = vadd.f32 %v1665, %v1925
      %v2048 = vadd.f32 %v1666, %v1930
      %v2049 = vadd.f32 %v1667, %v1933
      %v2050 = vadd.f32 %v1668, %v1938
      %v2051 = vadd.f32 %v1669, %v1941
      %v2052 = vadd.f32 %v1670, %v1946
      %v2053 = vadd.f32 %v1671, %v1949
      %v2054 = vadd.f32 %v1672, %v1954
      %v2055 = vadd.f32 %v1673, %v1957
      %v2056 = vadd.f32 %v1674, %v1962
      %v2057 = vadd.f32 %v1675, %v1965
      %v2058 = vadd.f32 %v1676, %v1970
      %v2059 = vadd.f32 %v1677, %v1973
      %v2060 = vadd.f32 %v1678, %v1978
      %v2061 = vadd.f32 %v1679, %v1981
      %v2062 = vadd.f32 %v1680, %v1986
      %v2063 = vadd.f32 %v1681, %v1989
      %v2064 = vadd.f32 %v1682, %v1994
      %v2065 = vadd.f32 %v1683, %v1997
      %v2066 = vadd.f32 %v1684, %v2002
      %v2067 = vadd.f32 %v1685, %v2005
      %v2068 = vadd.f32 %v1686, %v2010
      %v2069 = vadd.f32 %v1687, %v2013
      %v2070 = vadd.f32 %v1688, %v2018
      %v2071 = vadd.f32 %v1689, %v2021
      %v2072 = vadd.f32 %v1690, %v2026
      %v2073 = vadd.f32 %v1691, %v2029
      %v2074 = vadd.f32 %v1692, %v2034
      %v2075 = vadd.f32 %v1693, %v2037
      %s2076 = scalar_lea.vmem %s2, 320
      %v2077 = vld [vmem:[%s2076] sm:$0xf]
      %v2078 = vld [vmem:[%s2076 + $0x4] sm:$0xf]
      %v2079 = vld [vmem:[%s2076 + $0x8] sm:$0xf]
      %v2080 = vld [vmem:[%s2076 + $0xc] sm:$0xf]
      %v2081 = vld [vmem:[%s2076 + $0x10] sm:$0xf]
      %v2082 = vld [vmem:[%s2076 + $0x14] sm:$0xf]
      %v2083 = vld [vmem:[%s2076 + $0x18] sm:$0xf]
      %v2084 = vld [vmem:[%s2076 + $0x1c] sm:$0xf]
      %v2085 = vld [vmem:[%s2076 + $0x20] sm:$0xf]
      %v2086 = vld [vmem:[%s2076 + $0x24] sm:$0xf]
      %v2087 = vld [vmem:[%s2076 + $0x28] sm:$0xf]
      %v2088 = vld [vmem:[%s2076 + $0x2c] sm:$0xf]
      %v2089 = vld [vmem:[%s2076 + $0x30] sm:$0xf]
      %v2090 = vld [vmem:[%s2076 + $0x34] sm:$0xf]
      %v2091 = vld [vmem:[%s2076 + $0x38] sm:$0xf]
      %v2092 = vld [vmem:[%s2076 + $0x3c] sm:$0xf]
      %vm2093 = vcmask 1045504
      %v2094 = vrot.slane %v417, 2
      %v2095 = vrot.slane %v418, 2
      %v2096 = vsel %vm2093, %v2094, %v2095
      %v2097 = vrot.slane %v419, 2
      %v2098 = vsel %vm2093, %v2095, %v2097
      %v2099 = vrot.slane %v420, 2
      %v2100 = vsel %vm2093, %v2097, %v2099
      %v2101 = vrot.slane %v421, 2
      %v2102 = vsel %vm2093, %v2099, %v2101
      %v2103 = vrot.slane %v422, 2
      %v2104 = vsel %vm2093, %v2101, %v2103
      %v2105 = vrot.slane %v423, 2
      %v2106 = vsel %vm2093, %v2103, %v2105
      %v2107 = vrot.slane %v424, 2
      %v2108 = vsel %vm2093, %v2105, %v2107
      %v2109 = vrot.slane %v425, 2
      %v2110 = vsel %vm2093, %v2107, %v2109
      %v2111 = vrot.slane %v426, 2
      %v2112 = vsel %vm2093, %v2109, %v2111
      %v2113 = vrot.slane %v427, 2
      %v2114 = vsel %vm2093, %v2111, %v2113
      %v2115 = vrot.slane %v428, 2
      %v2116 = vsel %vm2093, %v2113, %v2115
      %v2117 = vrot.slane %v429, 2
      %v2118 = vsel %vm2093, %v2115, %v2117
      %v2119 = vrot.slane %v430, 2
      %v2120 = vsel %vm2093, %v2117, %v2119
      %v2121 = vrot.slane %v431, 2
      %v2122 = vsel %vm2093, %v2119, %v2121
      %v2123 = vrot.slane %v432, 2
      %v2124 = vsel %vm2093, %v2121, %v2123
      %v2125 = vrot.slane %v433, 2
      %v2126 = vsel %vm2093, %v2123, %v2125
      %v2127 = vrot.slane %v1425, 2
      %v2128 = vsel %vm2093, %v2125, %v2127
      %v2129 = vrot.slane %v1426, 2
      %v2130 = vsel %vm2093, %v2127, %v2129
      %v2165 = vunpack.c.l.b16 %v2077
      %v2166 = vunpack.c.l.b16 %v2078
      %v2167 = vunpack.c.l.b16 %v2079
      %v2168 = vunpack.c.l.b16 %v2080
      %v2169 = vunpack.c.l.b16 %v2081
      %v2170 = vunpack.c.l.b16 %v2082
      %v2171 = vunpack.c.l.b16 %v2083
      %v2172 = vunpack.c.l.b16 %v2084
      %v2173 = vunpack.c.l.b16 %v2085
      %v2174 = vunpack.c.l.b16 %v2086
      %v2175 = vunpack.c.l.b16 %v2087
      %v2176 = vunpack.c.l.b16 %v2088
      %v2177 = vunpack.c.l.b16 %v2089
      %v2178 = vunpack.c.l.b16 %v2090
      %v2179 = vunpack.c.l.b16 %v2091
      %v2180 = vunpack.c.l.b16 %v2092
      %v2181 = vpack.c.b16 %v2166, %v2165
      %v2182 = vpack.c.b16 %v2168, %v2167
      %v2183 = vpack.c.b16 %v2170, %v2169
      %v2184 = vpack.c.b16 %v2172, %v2171
      %v2185 = vpack.c.b16 %v2174, %v2173
      %v2186 = vpack.c.b16 %v2176, %v2175
      %v2187 = vpack.c.b16 %v2178, %v2177
      %v2188 = vpack.c.b16 %v2180, %v2179
      %2197 = vmatprep.subr.bf16.mxu0 0
      %2198 = vmatpush1.bf16.msra.mxu0 %v2181
      %2199 = vmatprep.subr.bf16.mxu0 0
      %2200 = vmatpush1.bf16.msra.mxu0 %v2182
      %2201 = vmatprep.subr.bf16.mxu0 0
      %2202 = vmatpush1.bf16.msra.mxu0 %v2183
      %2203 = vmatprep.subr.bf16.mxu0 0
      %2204 = vmatpush1.bf16.msra.mxu0 %v2184
      %2205 = vmatprep.subr.bf16.mxu0 0
      %2206 = vmatpush1.bf16.msra.mxu0 %v2185
      %2207 = vmatprep.subr.bf16.mxu0 0
      %2208 = vmatpush1.bf16.msra.mxu0 %v2186
      %2209 = vmatprep.subr.bf16.mxu0 0
      %2210 = vmatpush1.bf16.msra.mxu0 %v2187
      %2211 = vmatprep.subr.bf16.mxu0 0
      %2212 = vmatpush1.bf16.msra.mxu0 %v2188
      %2213 = vmatprep.subr.bf16.mxu0 0
      %2214 = vmatpush1.bf16.msra.mxu0 0
      %2215 = vmatprep.subr.bf16.mxu0 0
      %2216 = vmatpush1.bf16.msra.mxu0 0
      %2217 = vmatprep.subr.bf16.mxu0 0
      %2218 = vmatpush1.bf16.msra.mxu0 0
      %2219 = vmatprep.subr.bf16.mxu0 0
      %2220 = vmatpush1.bf16.msra.mxu0 0
      %2221 = vmatprep.subr.bf16.mxu0 0
      %2222 = vmatpush1.bf16.msra.mxu0 0
      %2223 = vmatprep.subr.bf16.mxu0 0
      %2224 = vmatpush1.bf16.msra.mxu0 0
      %2225 = vmatprep.subr.bf16.mxu0 0
      %2226 = vmatpush1.bf16.msra.mxu0 0
      %2227 = vmatprep.subr.bf16.mxu0 0
      %2228 = vmatpush1.bf16.msra.mxu0 0
      %2229 = vmatprep.mubr.bf16.mxu0 0
      %2230 = vmatmul.mubr.bf16.gmra.mrb[0].mxu0 %v2096
      %v2231 = vpop.f32.mrb[0].mxu0
      %v2232 = vadd.f32 0.0, %v2231
      %v2233 = vpop.f32.mrb[0].mxu0
      %v2234 = vpop.f32.mrb[0].mxu0
      %v2235 = vadd.f32 0.0, %v2234
      %v2236 = vpop.f32.mrb[0].mxu0
      %2237 = vmatprep.mubr.bf16.mxu0 0
      %2238 = vmatmul.mubr.bf16.gmra.mrb[0].mxu0 %v2098
      %v2239 = vpop.f32.mrb[0].mxu0
      %v2240 = vadd.f32 0.0, %v2239
      %v2241 = vpop.f32.mrb[0].mxu0
      %v2242 = vpop.f32.mrb[0].mxu0
      %v2243 = vadd.f32 0.0, %v2242
      %v2244 = vpop.f32.mrb[0].mxu0
      %2245 = vmatprep.mubr.bf16.mxu0 0
      %2246 = vmatmul.mubr.bf16.gmra.mrb[0].mxu0 %v2100
      %v2247 = vpop.f32.mrb[0].mxu0
      %v2248 = vadd.f32 0.0, %v2247
      %v2249 = vpop.f32.mrb[0].mxu0
      %v2250 = vpop.f32.mrb[0].mxu0
      %v2251 = vadd.f32 0.0, %v2250
      %v2252 = vpop.f32.mrb[0].mxu0
      %2253 = vmatprep.mubr.bf16.mxu0 0
      %2254 = vmatmul.mubr.bf16.gmra.mrb[0].mxu0 %v2102
      %v2255 = vpop.f32.mrb[0].mxu0
      %v2256 = vadd.f32 0.0, %v2255
      %v2257 = vpop.f32.mrb[0].mxu0
      %v2258 = vpop.f32.mrb[0].mxu0
      %v2259 = vadd.f32 0.0, %v2258
      %v2260 = vpop.f32.mrb[0].mxu0
      %2261 = vmatprep.mubr.bf16.mxu0 0
      %2262 = vmatmul.mubr.bf16.gmra.mrb[0].mxu0 %v2104
      %v2263 = vpop.f32.mrb[0].mxu0
      %v2264 = vadd.f32 0.0, %v2263
      %v2265 = vpop.f32.mrb[0].mxu0
      %v2266 = vpop.f32.mrb[0].mxu0
      %v2267 = vadd.f32 0.0, %v2266
      %v2268 = vpop.f32.mrb[0].mxu0
      %2269 = vmatprep.mubr.bf16.mxu0 0
      %2270 = vmatmul.mubr.bf16.gmra.mrb[0].mxu0 %v2106
      %v2271 = vpop.f32.mrb[0].mxu0
      %v2272 = vadd.f32 0.0, %v2271
      %v2273 = vpop.f32.mrb[0].mxu0
      %v2274 = vpop.f32.mrb[0].mxu0
      %v2275 = vadd.f32 0.0, %v2274
      %v2276 = vpop.f32.mrb[0].mxu0
      %2277 = vmatprep.mubr.bf16.mxu0 0
      %2278 = vmatmul.mubr.bf16.gmra.mrb[0].mxu0 %v2108
      %v2279 = vpop.f32.mrb[0].mxu0
      %v2280 = vadd.f32 0.0, %v2279
      %v2281 = vpop.f32.mrb[0].mxu0
      %v2282 = vpop.f32.mrb[0].mxu0
      %v2283 = vadd.f32 0.0, %v2282
      %v2284 = vpop.f32.mrb[0].mxu0
      %2285 = vmatprep.mubr.bf16.mxu0 0
      %2286 = vmatmul.mubr.bf16.gmra.mrb[0].mxu0 %v2110
      %v2287 = vpop.f32.mrb[0].mxu0
      %v2288 = vadd.f32 0.0, %v2287
      %v2289 = vpop.f32.mrb[0].mxu0
      %v2290 = vpop.f32.mrb[0].mxu0
      %v2291 = vadd.f32 0.0, %v2290
      %v2292 = vpop.f32.mrb[0].mxu0
      %2293 = vmatprep.mubr.bf16.mxu0 0
      %2294 = vmatmul.mubr.bf16.gmra.mrb[0].mxu0 %v2112
      %v2295 = vpop.f32.mrb[0].mxu0
      %v2296 = vadd.f32 0.0, %v2295
      %v2297 = vpop.f32.mrb[0].mxu0
      %v2298 = vpop.f32.mrb[0].mxu0
      %v2299 = vadd.f32 0.0, %v2298
      %v2300 = vpop.f32.mrb[0].mxu0
      %2301 = vmatprep.mubr.bf16.mxu0 0
      %2302 = vmatmul.mubr.bf16.gmra.mrb[0].mxu0 %v2114
      %v2303 = vpop.f32.mrb[0].mxu0
      %v2304 = vadd.f32 0.0, %v2303
      %v2305 = vpop.f32.mrb[0].mxu0
      %v2306 = vpop.f32.mrb[0].mxu0
      %v2307 = vadd.f32 0.0, %v2306
      %v2308 = vpop.f32.mrb[0].mxu0
      %2309 = vmatprep.mubr.bf16.mxu0 0
      %2310 = vmatmul.mubr.bf16.gmra.mrb[0].mxu0 %v2116
      %v2311 = vpop.f32.mrb[0].mxu0
      %v2312 = vadd.f32 0.0, %v2311
      %v2313 = vpop.f32.mrb[0].mxu0
      %v2314 = vpop.f32.mrb[0].mxu0
      %v2315 = vadd.f32 0.0, %v2314
      %v2316 = vpop.f32.mrb[0].mxu0
      %2317 = vmatprep.mubr.bf16.mxu0 0
      %2318 = vmatmul.mubr.bf16.gmra.mrb[0].mxu0 %v2118
      %v2319 = vpop.f32.mrb[0].mxu0
      %v2320 = vadd.f32 0.0, %v2319
      %v2321 = vpop.f32.mrb[0].mxu0
      %v2322 = vpop.f32.mrb[0].mxu0
      %v2323 = vadd.f32 0.0, %v2322
      %v2324 = vpop.f32.mrb[0].mxu0
      %2325 = vmatprep.mubr.bf16.mxu0 0
      %2326 = vmatmul.mubr.bf16.gmra.mrb[0].mxu0 %v2120
      %v2327 = vpop.f32.mrb[0].mxu0
      %v2328 = vadd.f32 0.0, %v2327
      %v2329 = vpop.f32.mrb[0].mxu0
      %v2330 = vpop.f32.mrb[0].mxu0
      %v2331 = vadd.f32 0.0, %v2330
      %v2332 = vpop.f32.mrb[0].mxu0
      %2333 = vmatprep.mubr.bf16.mxu0 0
      %2334 = vmatmul.mubr.bf16.gmra.mrb[0].mxu0 %v2122
      %v2335 = vpop.f32.mrb[0].mxu0
      %v2336 = vadd.f32 0.0, %v2335
      %v2337 = vpop.f32.mrb[0].mxu0
      %v2338 = vpop.f32.mrb[0].mxu0
      %v2339 = vadd.f32 0.0, %v2338
      %v2340 = vpop.f32.mrb[0].mxu0
      %2341 = vmatprep.mubr.bf16.mxu0 0
      %2342 = vmatmul.mubr.bf16.gmra.mrb[0].mxu0 %v2124
      %v2343 = vpop.f32.mrb[0].mxu0
      %v2344 = vadd.f32 0.0, %v2343
      %v2345 = vpop.f32.mrb[0].mxu0
      %v2346 = vpop.f32.mrb[0].mxu0
      %v2347 = vadd.f32 0.0, %v2346
      %v2348 = vpop.f32.mrb[0].mxu0
      %2349 = vmatprep.mubr.bf16.mxu0 0
      %2350 = vmatmul.mubr.bf16.gmra.mrb[0].mxu0 %v2126
      %v2351 = vpop.f32.mrb[0].mxu0
      %v2352 = vadd.f32 0.0, %v2351
      %v2353 = vpop.f32.mrb[0].mxu0
      %v2354 = vpop.f32.mrb[0].mxu0
      %v2355 = vadd.f32 0.0, %v2354
      %v2356 = vpop.f32.mrb[0].mxu0
      %2357 = vmatprep.mubr.bf16.mxu0 0
      %2358 = vmatmul.mubr.bf16.gmra.mrb[0].mxu0 %v2128
      %v2359 = vpop.f32.mrb[0].mxu0
      %v2360 = vadd.f32 0.0, %v2359
      %v2361 = vpop.f32.mrb[0].mxu0
      %v2362 = vpop.f32.mrb[0].mxu0
      %v2363 = vadd.f32 0.0, %v2362
      %v2364 = vpop.f32.mrb[0].mxu0
      %2365 = vmatprep.mubr.bf16.mxu0 0
      %2366 = vmatmul.mubr.bf16.gmra.mrb[0].mxu0 %v2130
      %v2367 = vpop.f32.mrb[0].mxu0
      %v2368 = vadd.f32 0.0, %v2367
      %v2369 = vpop.f32.mrb[0].mxu0
      %v2370 = vpop.f32.mrb[0].mxu0
      %v2371 = vadd.f32 0.0, %v2370
      %v2372 = vpop.f32.mrb[0].mxu0
      %2373 = vdwg.mxu0
      %v2374 = vadd.f32 %v2040, %v2232
      %v2375 = vadd.f32 %v2041, %v2235
      %v2376 = vadd.f32 %v2042, %v2240
      %v2377 = vadd.f32 %v2043, %v2243
      %v2378 = vadd.f32 %v2044, %v2248
      %v2379 = vadd.f32 %v2045, %v2251
      %v2380 = vadd.f32 %v2046, %v2256
      %v2381 = vadd.f32 %v2047, %v2259
      %v2382 = vadd.f32 %v2048, %v2264
      %v2383 = vadd.f32 %v2049, %v2267
      %v2384 = vadd.f32 %v2050, %v2272
      %v2385 = vadd.f32 %v2051, %v2275
      %v2386 = vadd.f32 %v2052, %v2280
      %v2387 = vadd.f32 %v2053, %v2283
      %v2388 = vadd.f32 %v2054, %v2288
      %v2389 = vadd.f32 %v2055, %v2291
      %v2390 = vadd.f32 %v2056, %v2296
      %v2391 = vadd.f32 %v2057, %v2299
      %v2392 = vadd.f32 %v2058, %v2304
      %v2393 = vadd.f32 %v2059, %v2307
      %v2394 = vadd.f32 %v2060, %v2312
      %v2395 = vadd.f32 %v2061, %v2315
      %v2396 = vadd.f32 %v2062, %v2320
      %v2397 = vadd.f32 %v2063, %v2323
      %v2398 = vadd.f32 %v2064, %v2328
      %v2399 = vadd.f32 %v2065, %v2331
      %v2400 = vadd.f32 %v2066, %v2336
      %v2401 = vadd.f32 %v2067, %v2339
      %v2402 = vadd.f32 %v2068, %v2344
      %v2403 = vadd.f32 %v2069, %v2347
      %v2404 = vadd.f32 %v2070, %v2352
      %v2405 = vadd.f32 %v2071, %v2355
      %v2406 = vadd.f32 %v2072, %v2360
      %v2407 = vadd.f32 %v2073, %v2363
      %v2408 = vadd.f32 %v2074, %v2368
      %v2409 = vadd.f32 %v2075, %v2371
      %s2410 = scalar_lea.vmem %s2, 384
      %v2411 = vld [vmem:[%s2410] sm:$0xf]
      %v2412 = vld [vmem:[%s2410 + $0x4] sm:$0xf]
      %v2413 = vld [vmem:[%s2410 + $0x8] sm:$0xf]
      %v2414 = vld [vmem:[%s2410 + $0xc] sm:$0xf]
      %v2415 = vld [vmem:[%s2410 + $0x10] sm:$0xf]
      %v2416 = vld [vmem:[%s2410 + $0x14] sm:$0xf]
      %v2417 = vld [vmem:[%s2410 + $0x18] sm:$0xf]
      %v2418 = vld [vmem:[%s2410 + $0x1c] sm:$0xf]
      %v2419 = vld [vmem:[%s2410 + $0x20] sm:$0xf]
      %v2420 = vld [vmem:[%s2410 + $0x24] sm:$0xf]
      %v2421 = vld [vmem:[%s2410 + $0x28] sm:$0xf]
      %v2422 = vld [vmem:[%s2410 + $0x2c] sm:$0xf]
      %v2423 = vld [vmem:[%s2410 + $0x30] sm:$0xf]
      %v2424 = vld [vmem:[%s2410 + $0x34] sm:$0xf]
      %v2425 = vld [vmem:[%s2410 + $0x38] sm:$0xf]
      %v2426 = vld [vmem:[%s2410 + $0x3c] sm:$0xf]
      %v2429 = vunpack.c.l.b16 %v307
      %v2430 = vunpack.c.l.b16 %v308
      %v2431 = vpack.c.b16 %v2429, %v1424
      %v2432 = vpack.c.b16 %v2430, %v2430
      %v2433 = vrot.slane %v2431, 2
      %v2434 = vsel %vm2093, %v2127, %v2433
      %v2435 = vrot.slane %v2432, 2
      %v2436 = vsel %vm2093, %v2433, %v2435
      %v2455 = vunpack.c.l.b16 %v2411
      %v2456 = vunpack.c.l.b16 %v2412
      %v2457 = vunpack.c.l.b16 %v2413
      %v2458 = vunpack.c.l.b16 %v2414
      %v2459 = vunpack.c.l.b16 %v2415
      %v2460 = vunpack.c.l.b16 %v2416
      %v2461 = vunpack.c.l.b16 %v2417
      %v2462 = vunpack.c.l.b16 %v2418
      %v2463 = vunpack.c.l.b16 %v2419
      %v2464 = vunpack.c.l.b16 %v2420
      %v2465 = vunpack.c.l.b16 %v2421
      %v2466 = vunpack.c.l.b16 %v2422
      %v2467 = vunpack.c.l.b16 %v2423
      %v2468 = vunpack.c.l.b16 %v2424
      %v2469 = vunpack.c.l.b16 %v2425
      %v2470 = vunpack.c.l.b16 %v2426
      %v2471 = vpack.c.b16 %v2456, %v2455
      %v2472 = vpack.c.b16 %v2458, %v2457
      %v2473 = vpack.c.b16 %v2460, %v2459
      %v2474 = vpack.c.b16 %v2462, %v2461
      %v2475 = vpack.c.b16 %v2464, %v2463
      %v2476 = vpack.c.b16 %v2466, %v2465
      %v2477 = vpack.c.b16 %v2468, %v2467
      %v2478 = vpack.c.b16 %v2470, %v2469
      %2487 = vmatprep.subr.bf16.mxu0 0
      %2488 = vmatpush1.bf16.msra.mxu0 %v2471
      %2489 = vmatprep.subr.bf16.mxu0 0
      %2490 = vmatpush1.bf16.msra.mxu0 %v2472
      %2491 = vmatprep.subr.bf16.mxu0 0
      %2492 = vmatpush1.bf16.msra.mxu0 %v2473
      %2493 = vmatprep.subr.bf16.mxu0 0
      %2494 = vmatpush1.bf16.msra.mxu0 %v2474
      %2495 = vmatprep.subr.bf16.mxu0 0
      %2496 = vmatpush1.bf16.msra.mxu0 %v2475
      %2497 = vmatprep.subr.bf16.mxu0 0
      %2498 = vmatpush1.bf16.msra.mxu0 %v2476
      %2499 = vmatprep.subr.bf16.mxu0 0
      %2500 = vmatpush1.bf16.msra.mxu0 %v2477
      %2501 = vmatprep.subr.bf16.mxu0 0
      %2502 = vmatpush1.bf16.msra.mxu0 %v2478
      %2503 = vmatprep.subr.bf16.mxu0 0
      %2504 = vmatpush1.bf16.msra.mxu0 0
      %2505 = vmatprep.subr.bf16.mxu0 0
      %2506 = vmatpush1.bf16.msra.mxu0 0
      %2507 = vmatprep.subr.bf16.mxu0 0
      %2508 = vmatpush1.bf16.msra.mxu0 0
      %2509 = vmatprep.subr.bf16.mxu0 0
      %2510 = vmatpush1.bf16.msra.mxu0 0
      %2511 = vmatprep.subr.bf16.mxu0 0
      %2512 = vmatpush1.bf16.msra.mxu0 0
      %2513 = vmatprep.subr.bf16.mxu0 0
      %2514 = vmatpush1.bf16.msra.mxu0 0
      %2515 = vmatprep.subr.bf16.mxu0 0
      %2516 = vmatpush1.bf16.msra.mxu0 0
      %2517 = vmatprep.subr.bf16.mxu0 0
      %2518 = vmatpush1.bf16.msra.mxu0 0
      %2519 = vmatprep.mubr.bf16.mxu0 0
      %2520 = vmatmul.mubr.bf16.gmra.mrb[0].mxu0 %v2098
      %v2521 = vpop.f32.mrb[0].mxu0
      %v2522 = vadd.f32 0.0, %v2521
      %v2523 = vpop.f32.mrb[0].mxu0
      %v2524 = vpop.f32.mrb[0].mxu0
      %v2525 = vadd.f32 0.0, %v2524
      %v2526 = vpop.f32.mrb[0].mxu0
      %2527 = vmatprep.mubr.bf16.mxu0 0
      %2528 = vmatmul.mubr.bf16.gmra.mrb[0].mxu0 %v2100
      %v2529 = vpop.f32.mrb[0].mxu0
      %v2530 = vadd.f32 0.0, %v2529
      %v2531 = vpop.f32.mrb[0].mxu0
      %v2532 = vpop.f32.mrb[0].mxu0
      %v2533 = vadd.f32 0.0, %v2532
      %v2534 = vpop.f32.mrb[0].mxu0
      %2535 = vmatprep.mubr.bf16.mxu0 0
      %2536 = vmatmul.mubr.bf16.gmra.mrb[0].mxu0 %v2102
      %v2537 = vpop.f32.mrb[0].mxu0
      %v2538 = vadd.f32 0.0, %v2537
      %v2539 = vpop.f32.mrb[0].mxu0
      %v2540 = vpop.f32.mrb[0].mxu0
      %v2541 = vadd.f32 0.0, %v2540
      %v2542 = vpop.f32.mrb[0].mxu0
      %2543 = vmatprep.mubr.bf16.mxu0 0
      %2544 = vmatmul.mubr.bf16.gmra.mrb[0].mxu0 %v2104
      %v2545 = vpop.f32.mrb[0].mxu0
      %v2546 = vadd.f32 0.0, %v2545
      %v2547 = vpop.f32.mrb[0].mxu0
      %v2548 = vpop.f32.mrb[0].mxu0
      %v2549 = vadd.f32 0.0, %v2548
      %v2550 = vpop.f32.mrb[0].mxu0
      %2551 = vmatprep.mubr.bf16.mxu0 0
      %2552 = vmatmul.mubr.bf16.gmra.mrb[0].mxu0 %v2106
      %v2553 = vpop.f32.mrb[0].mxu0
      %v2554 = vadd.f32 0.0, %v2553
      %v2555 = vpop.f32.mrb[0].mxu0
      %v2556 = vpop.f32.mrb[0].mxu0
      %v2557 = vadd.f32 0.0, %v2556
      %v2558 = vpop.f32.mrb[0].mxu0
      %2559 = vmatprep.mubr.bf16.mxu0 0
      %2560 = vmatmul.mubr.bf16.gmra.mrb[0].mxu0 %v2108
      %v2561 = vpop.f32.mrb[0].mxu0
      %v2562 = vadd.f32 0.0, %v2561
      %v2563 = vpop.f32.mrb[0].mxu0
      %v2564 = vpop.f32.mrb[0].mxu0
      %v2565 = vadd.f32 0.0, %v2564
      %v2566 = vpop.f32.mrb[0].mxu0
      %2567 = vmatprep.mubr.bf16.mxu0 0
      %2568 = vmatmul.mubr.bf16.gmra.mrb[0].mxu0 %v2110
      %v2569 = vpop.f32.mrb[0].mxu0
      %v2570 = vadd.f32 0.0, %v2569
      %v2571 = vpop.f32.mrb[0].mxu0
      %v2572 = vpop.f32.mrb[0].mxu0
      %v2573 = vadd.f32 0.0, %v2572
      %v2574 = vpop.f32.mrb[0].mxu0
      %2575 = vmatprep.mubr.bf16.mxu0 0
      %2576 = vmatmul.mubr.bf16.gmra.mrb[0].mxu0 %v2112
      %v2577 = vpop.f32.mrb[0].mxu0
      %v2578 = vadd.f32 0.0, %v2577
      %v2579 = vpop.f32.mrb[0].mxu0
      %v2580 = vpop.f32.mrb[0].mxu0
      %v2581 = vadd.f32 0.0, %v2580
      %v2582 = vpop.f32.mrb[0].mxu0
      %2583 = vmatprep.mubr.bf16.mxu0 0
      %2584 = vmatmul.mubr.bf16.gmra.mrb[0].mxu0 %v2114
      %v2585 = vpop.f32.mrb[0].mxu0
      %v2586 = vadd.f32 0.0, %v2585
      %v2587 = vpop.f32.mrb[0].mxu0
      %v2588 = vpop.f32.mrb[0].mxu0
      %v2589 = vadd.f32 0.0, %v2588
      %v2590 = vpop.f32.mrb[0].mxu0
      %2591 = vmatprep.mubr.bf16.mxu0 0
      %2592 = vmatmul.mubr.bf16.gmra.mrb[0].mxu0 %v2116
      %v2593 = vpop.f32.mrb[0].mxu0
      %v2594 = vadd.f32 0.0, %v2593
      %v2595 = vpop.f32.mrb[0].mxu0
      %v2596 = vpop.f32.mrb[0].mxu0
      %v2597 = vadd.f32 0.0, %v2596
      %v2598 = vpop.f32.mrb[0].mxu0
      %2599 = vmatprep.mubr.bf16.mxu0 0
      %2600 = vmatmul.mubr.bf16.gmra.mrb[0].mxu0 %v2118
      %v2601 = vpop.f32.mrb[0].mxu0
      %v2602 = vadd.f32 0.0, %v2601
      %v2603 = vpop.f32.mrb[0].mxu0
      %v2604 = vpop.f32.mrb[0].mxu0
      %v2605 = vadd.f32 0.0, %v2604
      %v2606 = vpop.f32.mrb[0].mxu0
      %2607 = vmatprep.mubr.bf16.mxu0 0
      %2608 = vmatmul.mubr.bf16.gmra.mrb[0].mxu0 %v2120
      %v2609 = vpop.f32.mrb[0].mxu0
      %v2610 = vadd.f32 0.0, %v2609
      %v2611 = vpop.f32.mrb[0].mxu0
      %v2612 = vpop.f32.mrb[0].mxu0
      %v2613 = vadd.f32 0.0, %v2612
      %v2614 = vpop.f32.mrb[0].mxu0
      %2615 = vmatprep.mubr.bf16.mxu0 0
      %2616 = vmatmul.mubr.bf16.gmra.mrb[0].mxu0 %v2122
      %v2617 = vpop.f32.mrb[0].mxu0
      %v2618 = vadd.f32 0.0, %v2617
      %v2619 = vpop.f32.mrb[0].mxu0
      %v2620 = vpop.f32.mrb[0].mxu0
      %v2621 = vadd.f32 0.0, %v2620
      %v2622 = vpop.f32.mrb[0].mxu0
      %2623 = vmatprep.mubr.bf16.mxu0 0
      %2624 = vmatmul.mubr.bf16.gmra.mrb[0].mxu0 %v2124
      %v2625 = vpop.f32.mrb[0].mxu0
      %v2626 = vadd.f32 0.0, %v2625
      %v2627 = vpop.f32.mrb[0].mxu0
      %v2628 = vpop.f32.mrb[0].mxu0
      %v2629 = vadd.f32 0.0, %v2628
      %v2630 = vpop.f32.mrb[0].mxu0
      %2631 = vmatprep.mubr.bf16.mxu0 0
      %2632 = vmatmul.mubr.bf16.gmra.mrb[0].mxu0 %v2126
      %v2633 = vpop.f32.mrb[0].mxu0
      %v2634 = vadd.f32 0.0, %v2633
      %v2635 = vpop.f32.mrb[0].mxu0
      %v2636 = vpop.f32.mrb[0].mxu0
      %v2637 = vadd.f32 0.0, %v2636
      %v2638 = vpop.f32.mrb[0].mxu0
      %2639 = vmatprep.mubr.bf16.mxu0 0
      %2640 = vmatmul.mubr.bf16.gmra.mrb[0].mxu0 %v2128
      %v2641 = vpop.f32.mrb[0].mxu0
      %v2642 = vadd.f32 0.0, %v2641
      %v2643 = vpop.f32.mrb[0].mxu0
      %v2644 = vpop.f32.mrb[0].mxu0
      %v2645 = vadd.f32 0.0, %v2644
      %v2646 = vpop.f32.mrb[0].mxu0
      %2647 = vmatprep.mubr.bf16.mxu0 0
      %2648 = vmatmul.mubr.bf16.gmra.mrb[0].mxu0 %v2434
      %v2649 = vpop.f32.mrb[0].mxu0
      %v2650 = vadd.f32 0.0, %v2649
      %v2651 = vpop.f32.mrb[0].mxu0
      %v2652 = vpop.f32.mrb[0].mxu0
      %v2653 = vadd.f32 0.0, %v2652
      %v2654 = vpop.f32.mrb[0].mxu0
      %2655 = vmatprep.mubr.bf16.mxu0 0
      %2656 = vmatmul.mubr.bf16.gmra.mrb[0].mxu0 %v2436
      %v2657 = vpop.f32.mrb[0].mxu0
      %v2658 = vadd.f32 0.0, %v2657
      %v2659 = vpop.f32.mrb[0].mxu0
      %v2660 = vpop.f32.mrb[0].mxu0
      %v2661 = vadd.f32 0.0, %v2660
      %v2662 = vpop.f32.mrb[0].mxu0
      %2663 = vdwg.mxu0
      %v2664 = vadd.f32 %v2374, %v2522
      %v2665 = vadd.f32 %v2375, %v2525
      %v2666 = vadd.f32 %v2376, %v2530
      %v2667 = vadd.f32 %v2377, %v2533
      %v2668 = vadd.f32 %v2378, %v2538
      %v2669 = vadd.f32 %v2379, %v2541
      %v2670 = vadd.f32 %v2380, %v2546
      %v2671 = vadd.f32 %v2381, %v2549
      %v2672 = vadd.f32 %v2382, %v2554
      %v2673 = vadd.f32 %v2383, %v2557
      %v2674 = vadd.f32 %v2384, %v2562
      %v2675 = vadd.f32 %v2385, %v2565
      %v2676 = vadd.f32 %v2386, %v2570
      %v2677 = vadd.f32 %v2387, %v2573
      %v2678 = vadd.f32 %v2388, %v2578
      %v2679 = vadd.f32 %v2389, %v2581
      %v2680 = vadd.f32 %v2390, %v2586
      %v2681 = vadd.f32 %v2391, %v2589
      %v2682 = vadd.f32 %v2392, %v2594
      %v2683 = vadd.f32 %v2393, %v2597
      %v2684 = vadd.f32 %v2394, %v2602
      %v2685 = vadd.f32 %v2395, %v2605
      %v2686 = vadd.f32 %v2396, %v2610
      %v2687 = vadd.f32 %v2397, %v2613
      %v2688 = vadd.f32 %v2398, %v2618
      %v2689 = vadd.f32 %v2399, %v2621
      %v2690 = vadd.f32 %v2400, %v2626
      %v2691 = vadd.f32 %v2401, %v2629
      %v2692 = vadd.f32 %v2402, %v2634
      %v2693 = vadd.f32 %v2403, %v2637
      %v2694 = vadd.f32 %v2404, %v2642
      %v2695 = vadd.f32 %v2405, %v2645
      %v2696 = vadd.f32 %v2406, %v2650
      %v2697 = vadd.f32 %v2407, %v2653
      %v2698 = vadd.f32 %v2408, %v2658
      %v2699 = vadd.f32 %v2409, %v2661
      %s2700 = scalar_lea.vmem %s2, 448
      %v2701 = vld [vmem:[%s2700] sm:$0xf]
      %v2702 = vld [vmem:[%s2700 + $0x4] sm:$0xf]
      %v2703 = vld [vmem:[%s2700 + $0x8] sm:$0xf]
      %v2704 = vld [vmem:[%s2700 + $0xc] sm:$0xf]
      %v2705 = vld [vmem:[%s2700 + $0x10] sm:$0xf]
      %v2706 = vld [vmem:[%s2700 + $0x14] sm:$0xf]
      %v2707 = vld [vmem:[%s2700 + $0x18] sm:$0xf]
      %v2708 = vld [vmem:[%s2700 + $0x1c] sm:$0xf]
      %v2709 = vld [vmem:[%s2700 + $0x20] sm:$0xf]
      %v2710 = vld [vmem:[%s2700 + $0x24] sm:$0xf]
      %v2711 = vld [vmem:[%s2700 + $0x28] sm:$0xf]
      %v2712 = vld [vmem:[%s2700 + $0x2c] sm:$0xf]
      %v2713 = vld [vmem:[%s2700 + $0x30] sm:$0xf]
      %v2714 = vld [vmem:[%s2700 + $0x34] sm:$0xf]
      %v2715 = vld [vmem:[%s2700 + $0x38] sm:$0xf]
      %v2716 = vld [vmem:[%s2700 + $0x3c] sm:$0xf]
      %vm2717 = vsmask.f32 5376
      %v2718 = vrot.slane %v456, 2
      %v2719 = vrot.slane %v452, 3
      %v2720 = vor.u32 %v2718, %v2719
      %v2721 = vrot.slane %v464, 2
      %v2722 = vrot.slane %v460, 3
      %v2723 = vor.u32 %v2721, %v2722
      %v2724 = vsel %vm2717, %v2720, %v2723
      %v2725 = vrot.slane %v472, 2
      %v2726 = vrot.slane %v468, 3
      %v2727 = vor.u32 %v2725, %v2726
      %v2728 = vsel %vm2717, %v2723, %v2727
      %v2729 = vrot.slane %v480, 2
      %v2730 = vrot.slane %v476, 3
      %v2731 = vor.u32 %v2729, %v2730
      %v2732 = vsel %vm2717, %v2727, %v2731
      %v2733 = vrot.slane %v488, 2
      %v2734 = vrot.slane %v484, 3
      %v2735 = vor.u32 %v2733, %v2734
      %v2736 = vsel %vm2717, %v2731, %v2735
      %v2737 = vrot.slane %v496, 2
      %v2738 = vrot.slane %v492, 3
      %v2739 = vor.u32 %v2737, %v2738
      %v2740 = vsel %vm2717, %v2735, %v2739
      %v2741 = vrot.slane %v504, 2
      %v2742 = vrot.slane %v500, 3
      %v2743 = vor.u32 %v2741, %v2742
      %v2744 = vsel %vm2717, %v2739, %v2743
      %v2745 = vrot.slane %v512, 2
      %v2746 = vrot.slane %v508, 3
      %v2747 = vor.u32 %v2745, %v2746
      %v2748 = vsel %vm2717, %v2743, %v2747
      %v2749 = vrot.slane %v520, 2
      %v2750 = vrot.slane %v516, 3
      %v2751 = vor.u32 %v2749, %v2750
      %v2752 = vsel %vm2717, %v2747, %v2751
      %v2753 = vrot.slane %v528, 2
      %v2754 = vrot.slane %v524, 3
      %v2755 = vor.u32 %v2753, %v2754
      %v2756 = vsel %vm2717, %v2751, %v2755
      %v2757 = vrot.slane %v536, 2
      %v2758 = vrot.slane %v532, 3
      %v2759 = vor.u32 %v2757, %v2758
      %v2760 = vsel %vm2717, %v2755, %v2759
      %v2761 = vrot.slane %v544, 2
      %v2762 = vrot.slane %v540, 3
      %v2763 = vor.u32 %v2761, %v2762
      %v2764 = vsel %vm2717, %v2759, %v2763
      %v2765 = vrot.slane %v552, 2
      %v2766 = vrot.slane %v548, 3
      %v2767 = vor.u32 %v2765, %v2766
      %v2768 = vsel %vm2717, %v2763, %v2767
      %v2769 = vrot.slane %v560, 2
      %v2770 = vrot.slane %v556, 3
      %v2771 = vor.u32 %v2769, %v2770
      %v2772 = vsel %vm2717, %v2767, %v2771
      %v2773 = vrot.slane %v568, 2
      %v2774 = vrot.slane %v564, 3
      %v2775 = vor.u32 %v2773, %v2774
      %v2776 = vsel %vm2717, %v2771, %v2775
      %v2777 = vrot.slane %v576, 2
      %v2778 = vrot.slane %v572, 3
      %v2779 = vor.u32 %v2777, %v2778
      %v2780 = vsel %vm2717, %v2775, %v2779
      %v2781 = vrot.slane %v1780, 2
      %v2782 = vrot.slane %v1783, 3
      %v2783 = vor.u32 %v2781, %v2782
      %v2784 = vsel %vm2717, %v2779, %v2783
      %v2786 = vshrl.u32 %v2431, 16
      %v2788 = vrot.slane %v2786, 2
      %v2789 = vshll.u32 %v2431, 16
      %v2791 = vrot.slane %v2789, 3
      %v2792 = vor.u32 %v2788, %v2791
      %v2793 = vsel %vm2717, %v2783, %v2792
      %v2795 = vshrl.u32 %v2432, 16
      %v2797 = vrot.slane %v2795, 2
      %v2798 = vshll.u32 %v2432, 16
      %v2800 = vrot.slane %v2798, 3
      %v2801 = vor.u32 %v2797, %v2800
      %v2802 = vsel %vm2717, %v2792, %v2801
      %v2837 = vunpack.c.l.b16 %v2701
      %v2838 = vunpack.c.l.b16 %v2702
      %v2839 = vunpack.c.l.b16 %v2703
      %v2840 = vunpack.c.l.b16 %v2704
      %v2841 = vunpack.c.l.b16 %v2705
      %v2842 = vunpack.c.l.b16 %v2706
      %v2843 = vunpack.c.l.b16 %v2707
      %v2844 = vunpack.c.l.b16 %v2708
      %v2845 = vunpack.c.l.b16 %v2709
      %v2846 = vunpack.c.l.b16 %v2710
      %v2847 = vunpack.c.l.b16 %v2711
      %v2848 = vunpack.c.l.b16 %v2712
      %v2849 = vunpack.c.l.b16 %v2713
      %v2850 = vunpack.c.l.b16 %v2714
      %v2851 = vunpack.c.l.b16 %v2715
      %v2852 = vunpack.c.l.b16 %v2716
      %v2853 = vpack.c.b16 %v2838, %v2837
      %v2854 = vpack.c.b16 %v2840, %v2839
      %v2855 = vpack.c.b16 %v2842, %v2841
      %v2856 = vpack.c.b16 %v2844, %v2843
      %v2857 = vpack.c.b16 %v2846, %v2845
      %v2858 = vpack.c.b16 %v2848, %v2847
      %v2859 = vpack.c.b16 %v2850, %v2849
      %v2860 = vpack.c.b16 %v2852, %v2851
      %2869 = vmatprep.subr.bf16.mxu0 0
      %2870 = vmatpush1.bf16.msra.mxu0 %v2853
      %2871 = vmatprep.subr.bf16.mxu0 0
      %2872 = vmatpush1.bf16.msra.mxu0 %v2854
      %2873 = vmatprep.subr.bf16.mxu0 0
      %2874 = vmatpush1.bf16.msra.mxu0 %v2855
      %2875 = vmatprep.subr.bf16.mxu0 0
      %2876 = vmatpush1.bf16.msra.mxu0 %v2856
      %2877 = vmatprep.subr.bf16.mxu0 0
      %2878 = vmatpush1.bf16.msra.mxu0 %v2857
      %2879 = vmatprep.subr.bf16.mxu0 0
      %2880 = vmatpush1.bf16.msra.mxu0 %v2858
      %2881 = vmatprep.subr.bf16.mxu0 0
      %2882 = vmatpush1.bf16.msra.mxu0 %v2859
      %2883 = vmatprep.subr.bf16.mxu0 0
      %2884 = vmatpush1.bf16.msra.mxu0 %v2860
      %2885 = vmatprep.subr.bf16.mxu0 0
      %2886 = vmatpush1.bf16.msra.mxu0 0
      %2887 = vmatprep.subr.bf16.mxu0 0
      %2888 = vmatpush1.bf16.msra.mxu0 0
      %2889 = vmatprep.subr.bf16.mxu0 0
      %2890 = vmatpush1.bf16.msra.mxu0 0
      %2891 = vmatprep.subr.bf16.mxu0 0
      %2892 = vmatpush1.bf16.msra.mxu0 0
      %2893 = vmatprep.subr.bf16.mxu0 0
      %2894 = vmatpush1.bf16.msra.mxu0 0
      %2895 = vmatprep.subr.bf16.mxu0 0
      %2896 = vmatpush1.bf16.msra.mxu0 0
      %2897 = vmatprep.subr.bf16.mxu0 0
      %2898 = vmatpush1.bf16.msra.mxu0 0
      %2899 = vmatprep.subr.bf16.mxu0 0
      %2900 = vmatpush1.bf16.msra.mxu0 0
      %2901 = vmatprep.mubr.bf16.mxu0 0
      %2902 = vmatmul.mubr.bf16.gmra.mrb[0].mxu0 %v2724
      %v2903 = vpop.f32.mrb[0].mxu0
      %v2904 = vadd.f32 0.0, %v2903
      %v2905 = vpop.f32.mrb[0].mxu0
      %v2906 = vpop.f32.mrb[0].mxu0
      %v2907 = vadd.f32 0.0, %v2906
      %v2908 = vpop.f32.mrb[0].mxu0
      %2909 = vmatprep.mubr.bf16.mxu0 0
      %2910 = vmatmul.mubr.bf16.gmra.mrb[0].mxu0 %v2728
      %v2911 = vpop.f32.mrb[0].mxu0
      %v2912 = vadd.f32 0.0, %v2911
      %v2913 = vpop.f32.mrb[0].mxu0
      %v2914 = vpop.f32.mrb[0].mxu0
      %v2915 = vadd.f32 0.0, %v2914
      %v2916 = vpop.f32.mrb[0].mxu0
      %2917 = vmatprep.mubr.bf16.mxu0 0
      %2918 = vmatmul.mubr.bf16.gmra.mrb[0].mxu0 %v2732
      %v2919 = vpop.f32.mrb[0].mxu0
      %v2920 = vadd.f32 0.0, %v2919
      %v2921 = vpop.f32.mrb[0].mxu0
      %v2922 = vpop.f32.mrb[0].mxu0
      %v2923 = vadd.f32 0.0, %v2922
      %v2924 = vpop.f32.mrb[0].mxu0
      %2925 = vmatprep.mubr.bf16.mxu0 0
      %2926 = vmatmul.mubr.bf16.gmra.mrb[0].mxu0 %v2736
      %v2927 = vpop.f32.mrb[0].mxu0
      %v2928 = vadd.f32 0.0, %v2927
      %v2929 = vpop.f32.mrb[0].mxu0
      %v2930 = vpop.f32.mrb[0].mxu0
      %v2931 = vadd.f32 0.0, %v2930
      %v2932 = vpop.f32.mrb[0].mxu0
      %2933 = vmatprep.mubr.bf16.mxu0 0
      %2934 = vmatmul.mubr.bf16.gmra.mrb[0].mxu0 %v2740
      %v2935 = vpop.f32.mrb[0].mxu0
      %v2936 = vadd.f32 0.0, %v2935
      %v2937 = vpop.f32.mrb[0].mxu0
      %v2938 = vpop.f32.mrb[0].mxu0
      %v2939 = vadd.f32 0.0, %v2938
      %v2940 = vpop.f32.mrb[0].mxu0
      %2941 = vmatprep.mubr.bf16.mxu0 0
      %2942 = vmatmul.mubr.bf16.gmra.mrb[0].mxu0 %v2744
      %v2943 = vpop.f32.mrb[0].mxu0
      %v2944 = vadd.f32 0.0, %v2943
      %v2945 = vpop.f32.mrb[0].mxu0
      %v2946 = vpop.f32.mrb[0].mxu0
      %v2947 = vadd.f32 0.0, %v2946
      %v2948 = vpop.f32.mrb[0].mxu0
      %2949 = vmatprep.mubr.bf16.mxu0 0
      %2950 = vmatmul.mubr.bf16.gmra.mrb[0].mxu0 %v2748
      %v2951 = vpop.f32.mrb[0].mxu0
      %v2952 = vadd.f32 0.0, %v2951
      %v2953 = vpop.f32.mrb[0].mxu0
      %v2954 = vpop.f32.mrb[0].mxu0
      %v2955 = vadd.f32 0.0, %v2954
      %v2956 = vpop.f32.mrb[0].mxu0
      %2957 = vmatprep.mubr.bf16.mxu0 0
      %2958 = vmatmul.mubr.bf16.gmra.mrb[0].mxu0 %v2752
      %v2959 = vpop.f32.mrb[0].mxu0
      %v2960 = vadd.f32 0.0, %v2959
      %v2961 = vpop.f32.mrb[0].mxu0
      %v2962 = vpop.f32.mrb[0].mxu0
      %v2963 = vadd.f32 0.0, %v2962
      %v2964 = vpop.f32.mrb[0].mxu0
      %2965 = vmatprep.mubr.bf16.mxu0 0
      %2966 = vmatmul.mubr.bf16.gmra.mrb[0].mxu0 %v2756
      %v2967 = vpop.f32.mrb[0].mxu0
      %v2968 = vadd.f32 0.0, %v2967
      %v2969 = vpop.f32.mrb[0].mxu0
      %v2970 = vpop.f32.mrb[0].mxu0
      %v2971 = vadd.f32 0.0, %v2970
      %v2972 = vpop.f32.mrb[0].mxu0
      %2973 = vmatprep.mubr.bf16.mxu0 0
      %2974 = vmatmul.mubr.bf16.gmra.mrb[0].mxu0 %v2760
      %v2975 = vpop.f32.mrb[0].mxu0
      %v2976 = vadd.f32 0.0, %v2975
      %v2977 = vpop.f32.mrb[0].mxu0
      %v2978 = vpop.f32.mrb[0].mxu0
      %v2979 = vadd.f32 0.0, %v2978
      %v2980 = vpop.f32.mrb[0].mxu0
      %2981 = vmatprep.mubr.bf16.mxu0 0
      %2982 = vmatmul.mubr.bf16.gmra.mrb[0].mxu0 %v2764
      %v2983 = vpop.f32.mrb[0].mxu0
      %v2984 = vadd.f32 0.0, %v2983
      %v2985 = vpop.f32.mrb[0].mxu0
      %v2986 = vpop.f32.mrb[0].mxu0
      %v2987 = vadd.f32 0.0, %v2986
      %v2988 = vpop.f32.mrb[0].mxu0
      %2989 = vmatprep.mubr.bf16.mxu0 0
      %2990 = vmatmul.mubr.bf16.gmra.mrb[0].mxu0 %v2768
      %v2991 = vpop.f32.mrb[0].mxu0
      %v2992 = vadd.f32 0.0, %v2991
      %v2993 = vpop.f32.mrb[0].mxu0
      %v2994 = vpop.f32.mrb[0].mxu0
      %v2995 = vadd.f32 0.0, %v2994
      %v2996 = vpop.f32.mrb[0].mxu0
      %2997 = vmatprep.mubr.bf16.mxu0 0
      %2998 = vmatmul.mubr.bf16.gmra.mrb[0].mxu0 %v2772
      %v2999 = vpop.f32.mrb[0].mxu0
      %v3000 = vadd.f32 0.0, %v2999
      %v3001 = vpop.f32.mrb[0].mxu0
      %v3002 = vpop.f32.mrb[0].mxu0
      %v3003 = vadd.f32 0.0, %v3002
      %v3004 = vpop.f32.mrb[0].mxu0
      %3005 = vmatprep.mubr.bf16.mxu0 0
      %3006 = vmatmul.mubr.bf16.gmra.mrb[0].mxu0 %v2776
      %v3007 = vpop.f32.mrb[0].mxu0
      %v3008 = vadd.f32 0.0, %v3007
      %v3009 = vpop.f32.mrb[0].mxu0
      %v3010 = vpop.f32.mrb[0].mxu0
      %v3011 = vadd.f32 0.0, %v3010
      %v3012 = vpop.f32.mrb[0].mxu0
      %3013 = vmatprep.mubr.bf16.mxu0 0
      %3014 = vmatmul.mubr.bf16.gmra.mrb[0].mxu0 %v2780
      %v3015 = vpop.f32.mrb[0].mxu0
      %v3016 = vadd.f32 0.0, %v3015
      %v3017 = vpop.f32.mrb[0].mxu0
      %v3018 = vpop.f32.mrb[0].mxu0
      %v3019 = vadd.f32 0.0, %v3018
      %v3020 = vpop.f32.mrb[0].mxu0
      %3021 = vmatprep.mubr.bf16.mxu0 0
      %3022 = vmatmul.mubr.bf16.gmra.mrb[0].mxu0 %v2784
      %v3023 = vpop.f32.mrb[0].mxu0
      %v3024 = vadd.f32 0.0, %v3023
      %v3025 = vpop.f32.mrb[0].mxu0
      %v3026 = vpop.f32.mrb[0].mxu0
      %v3027 = vadd.f32 0.0, %v3026
      %v3028 = vpop.f32.mrb[0].mxu0
      %3029 = vmatprep.mubr.bf16.mxu0 0
      %3030 = vmatmul.mubr.bf16.gmra.mrb[0].mxu0 %v2793
      %v3031 = vpop.f32.mrb[0].mxu0
      %v3032 = vadd.f32 0.0, %v3031
      %v3033 = vpop.f32.mrb[0].mxu0
      %v3034 = vpop.f32.mrb[0].mxu0
      %v3035 = vadd.f32 0.0, %v3034
      %v3036 = vpop.f32.mrb[0].mxu0
      %3037 = vmatprep.mubr.bf16.mxu0 0
      %3038 = vmatmul.mubr.bf16.gmra.mrb[0].mxu0 %v2802
      %v3039 = vpop.f32.mrb[0].mxu0
      %v3040 = vadd.f32 0.0, %v3039
      %v3041 = vpop.f32.mrb[0].mxu0
      %v3042 = vpop.f32.mrb[0].mxu0
      %v3043 = vadd.f32 0.0, %v3042
      %v3044 = vpop.f32.mrb[0].mxu0
      %3045 = vdwg.mxu0
      %v3046 = vadd.f32 %v2664, %v2904
      %v3047 = vadd.f32 %v2665, %v2907
      %v3048 = vadd.f32 %v2666, %v2912
      %v3049 = vadd.f32 %v2667, %v2915
      %v3050 = vadd.f32 %v2668, %v2920
      %v3051 = vadd.f32 %v2669, %v2923
      %v3052 = vadd.f32 %v2670, %v2928
      %v3053 = vadd.f32 %v2671, %v2931
      %v3054 = vadd.f32 %v2672, %v2936
      %v3055 = vadd.f32 %v2673, %v2939
      %v3056 = vadd.f32 %v2674, %v2944
      %v3057 = vadd.f32 %v2675, %v2947
      %v3058 = vadd.f32 %v2676, %v2952
      %v3059 = vadd.f32 %v2677, %v2955
      %v3060 = vadd.f32 %v2678, %v2960
      %v3061 = vadd.f32 %v2679, %v2963
      %v3062 = vadd.f32 %v2680, %v2968
      %v3063 = vadd.f32 %v2681, %v2971
      %v3064 = vadd.f32 %v2682, %v2976
      %v3065 = vadd.f32 %v2683, %v2979
      %v3066 = vadd.f32 %v2684, %v2984
      %v3067 = vadd.f32 %v2685, %v2987
      %v3068 = vadd.f32 %v2686, %v2992
      %v3069 = vadd.f32 %v2687, %v2995
      %v3070 = vadd.f32 %v2688, %v3000
      %v3071 = vadd.f32 %v2689, %v3003
      %v3072 = vadd.f32 %v2690, %v3008
      %v3073 = vadd.f32 %v2691, %v3011
      %v3074 = vadd.f32 %v2692, %v3016
      %v3075 = vadd.f32 %v2693, %v3019
      %v3076 = vadd.f32 %v2694, %v3024
      %v3077 = vadd.f32 %v2695, %v3027
      %v3078 = vadd.f32 %v2696, %v3032
      %v3079 = vadd.f32 %v2697, %v3035
      %v3080 = vadd.f32 %v2698, %v3040
      %v3081 = vadd.f32 %v2699, %v3043
      %s3082 = scalar_lea.vmem %s2, 512
      %v3083 = vld [vmem:[%s3082] sm:$0xf]
      %v3084 = vld [vmem:[%s3082 + $0x4] sm:$0xf]
      %v3085 = vld [vmem:[%s3082 + $0x8] sm:$0xf]
      %v3086 = vld [vmem:[%s3082 + $0xc] sm:$0xf]
      %v3087 = vld [vmem:[%s3082 + $0x10] sm:$0xf]
      %v3088 = vld [vmem:[%s3082 + $0x14] sm:$0xf]
      %v3089 = vld [vmem:[%s3082 + $0x18] sm:$0xf]
      %v3090 = vld [vmem:[%s3082 + $0x1c] sm:$0xf]
      %v3091 = vld [vmem:[%s3082 + $0x20] sm:$0xf]
      %v3092 = vld [vmem:[%s3082 + $0x24] sm:$0xf]
      %v3093 = vld [vmem:[%s3082 + $0x28] sm:$0xf]
      %v3094 = vld [vmem:[%s3082 + $0x2c] sm:$0xf]
      %v3095 = vld [vmem:[%s3082 + $0x30] sm:$0xf]
      %v3096 = vld [vmem:[%s3082 + $0x34] sm:$0xf]
      %v3097 = vld [vmem:[%s3082 + $0x38] sm:$0xf]
      %v3098 = vld [vmem:[%s3082 + $0x3c] sm:$0xf]
      %vm3099 = vcmask 1044480
      %v3100 = vrot.slane %v418, 3
      %v3101 = vrot.slane %v419, 3
      %v3102 = vsel %vm3099, %v3100, %v3101
      %v3103 = vrot.slane %v420, 3
      %v3104 = vsel %vm3099, %v3101, %v3103
      %v3105 = vrot.slane %v421, 3
      %v3106 = vsel %vm3099, %v3103, %v3105
      %v3107 = vrot.slane %v422, 3
      %v3108 = vsel %vm3099, %v3105, %v3107
      %v3109 = vrot.slane %v423, 3
      %v3110 = vsel %vm3099, %v3107, %v3109
      %v3111 = vrot.slane %v424, 3
      %v3112 = vsel %vm3099, %v3109, %v3111
      %v3113 = vrot.slane %v425, 3
      %v3114 = vsel %vm3099, %v3111, %v3113
      %v3115 = vrot.slane %v426, 3
      %v3116 = vsel %vm3099, %v3113, %v3115
      %v3117 = vrot.slane %v427, 3
      %v3118 = vsel %vm3099, %v3115, %v3117
      %v3119 = vrot.slane %v428, 3
      %v3120 = vsel %vm3099, %v3117, %v3119
      %v3121 = vrot.slane %v429, 3
      %v3122 = vsel %vm3099, %v3119, %v3121
      %v3123 = vrot.slane %v430, 3
      %v3124 = vsel %vm3099, %v3121, %v3123
      %v3125 = vrot.slane %v431, 3
      %v3126 = vsel %vm3099, %v3123, %v3125
      %v3127 = vrot.slane %v432, 3
      %v3128 = vsel %vm3099, %v3125, %v3127
      %v3129 = vrot.slane %v433, 3
      %v3130 = vsel %vm3099, %v3127, %v3129
      %v3131 = vrot.slane %v1425, 3
      %v3132 = vsel %vm3099, %v3129, %v3131
      %v3133 = vrot.slane %v2431, 3
      %v3134 = vsel %vm3099, %v3131, %v3133
      %v3135 = vrot.slane %v2432, 3
      %v3136 = vsel %vm3099, %v3133, %v3135
      %v3171 = vunpack.c.l.b16 %v3083
      %v3172 = vunpack.c.l.b16 %v3084
      %v3173 = vunpack.c.l.b16 %v3085
      %v3174 = vunpack.c.l.b16 %v3086
      %v3175 = vunpack.c.l.b16 %v3087
      %v3176 = vunpack.c.l.b16 %v3088
      %v3177 = vunpack.c.l.b16 %v3089
      %v3178 = vunpack.c.l.b16 %v3090
      %v3179 = vunpack.c.l.b16 %v3091
      %v3180 = vunpack.c.l.b16 %v3092
      %v3181 = vunpack.c.l.b16 %v3093
      %v3182 = vunpack.c.l.b16 %v3094
      %v3183 = vunpack.c.l.b16 %v3095
      %v3184 = vunpack.c.l.b16 %v3096
      %v3185 = vunpack.c.l.b16 %v3097
      %v3186 = vunpack.c.l.b16 %v3098
      %v3187 = vpack.c.b16 %v3172, %v3171
      %v3188 = vpack.c.b16 %v3174, %v3173
      %v3189 = vpack.c.b16 %v3176, %v3175
      %v3190 = vpack.c.b16 %v3178, %v3177
      %v3191 = vpack.c.b16 %v3180, %v3179
      %v3192 = vpack.c.b16 %v3182, %v3181
      %v3193 = vpack.c.b16 %v3184, %v3183
      %v3194 = vpack.c.b16 %v3186, %v3185
      %3203 = vmatprep.subr.bf16.mxu0 0
      %3204 = vmatpush1.bf16.msra.mxu0 %v3187
      %3205 = vmatprep.subr.bf16.mxu0 0
      %3206 = vmatpush1.bf16.msra.mxu0 %v3188
      %3207 = vmatprep.subr.bf16.mxu0 0
      %3208 = vmatpush1.bf16.msra.mxu0 %v3189
      %3209 = vmatprep.subr.bf16.mxu0 0
      %3210 = vmatpush1.bf16.msra.mxu0 %v3190
      %3211 = vmatprep.subr.bf16.mxu0 0
      %3212 = vmatpush1.bf16.msra.mxu0 %v3191
      %3213 = vmatprep.subr.bf16.mxu0 0
      %3214 = vmatpush1.bf16.msra.mxu0 %v3192
      %3215 = vmatprep.subr.bf16.mxu0 0
      %3216 = vmatpush1.bf16.msra.mxu0 %v3193
      %3217 = vmatprep.subr.bf16.mxu0 0
      %3218 = vmatpush1.bf16.msra.mxu0 %v3194
      %3219 = vmatprep.subr.bf16.mxu0 0
      %3220 = vmatpush1.bf16.msra.mxu0 0
      %3221 = vmatprep.subr.bf16.mxu0 0
      %3222 = vmatpush1.bf16.msra.mxu0 0
      %3223 = vmatprep.subr.bf16.mxu0 0
      %3224 = vmatpush1.bf16.msra.mxu0 0
      %3225 = vmatprep.subr.bf16.mxu0 0
      %3226 = vmatpush1.bf16.msra.mxu0 0
      %3227 = vmatprep.subr.bf16.mxu0 0
      %3228 = vmatpush1.bf16.msra.mxu0 0
      %3229 = vmatprep.subr.bf16.mxu0 0
      %3230 = vmatpush1.bf16.msra.mxu0 0
      %3231 = vmatprep.subr.bf16.mxu0 0
      %3232 = vmatpush1.bf16.msra.mxu0 0
      %3233 = vmatprep.subr.bf16.mxu0 0
      %3234 = vmatpush1.bf16.msra.mxu0 0
      %3235 = vmatprep.mubr.bf16.mxu0 0
      %3236 = vmatmul.mubr.bf16.gmra.mrb[0].mxu0 %v3102
      %v3237 = vpop.f32.mrb[0].mxu0
      %v3238 = vadd.f32 0.0, %v3237
      %v3239 = vpop.f32.mrb[0].mxu0
      %v3240 = vpop.f32.mrb[0].mxu0
      %v3241 = vadd.f32 0.0, %v3240
      %v3242 = vpop.f32.mrb[0].mxu0
      %3243 = vmatprep.mubr.bf16.mxu0 0
      %3244 = vmatmul.mubr.bf16.gmra.mrb[0].mxu0 %v3104
      %v3245 = vpop.f32.mrb[0].mxu0
      %v3246 = vadd.f32 0.0, %v3245
      %v3247 = vpop.f32.mrb[0].mxu0
      %v3248 = vpop.f32.mrb[0].mxu0
      %v3249 = vadd.f32 0.0, %v3248
      %v3250 = vpop.f32.mrb[0].mxu0
      %3251 = vmatprep.mubr.bf16.mxu0 0
      %3252 = vmatmul.mubr.bf16.gmra.mrb[0].mxu0 %v3106
      %v3253 = vpop.f32.mrb[0].mxu0
      %v3254 = vadd.f32 0.0, %v3253
      %v3255 = vpop.f32.mrb[0].mxu0
      %v3256 = vpop.f32.mrb[0].mxu0
      %v3257 = vadd.f32 0.0, %v3256
      %v3258 = vpop.f32.mrb[0].mxu0
      %3259 = vmatprep.mubr.bf16.mxu0 0
      %3260 = vmatmul.mubr.bf16.gmra.mrb[0].mxu0 %v3108
      %v3261 = vpop.f32.mrb[0].mxu0
      %v3262 = vadd.f32 0.0, %v3261
      %v3263 = vpop.f32.mrb[0].mxu0
      %v3264 = vpop.f32.mrb[0].mxu0
      %v3265 = vadd.f32 0.0, %v3264
      %v3266 = vpop.f32.mrb[0].mxu0
      %3267 = vmatprep.mubr.bf16.mxu0 0
      %3268 = vmatmul.mubr.bf16.gmra.mrb[0].mxu0 %v3110
      %v3269 = vpop.f32.mrb[0].mxu0
      %v3270 = vadd.f32 0.0, %v3269
      %v3271 = vpop.f32.mrb[0].mxu0
      %v3272 = vpop.f32.mrb[0].mxu0
      %v3273 = vadd.f32 0.0, %v3272
      %v3274 = vpop.f32.mrb[0].mxu0
      %3275 = vmatprep.mubr.bf16.mxu0 0
      %3276 = vmatmul.mubr.bf16.gmra.mrb[0].mxu0 %v3112
      %v3277 = vpop.f32.mrb[0].mxu0
      %v3278 = vadd.f32 0.0, %v3277
      %v3279 = vpop.f32.mrb[0].mxu0
      %v3280 = vpop.f32.mrb[0].mxu0
      %v3281 = vadd.f32 0.0, %v3280
      %v3282 = vpop.f32.mrb[0].mxu0
      %3283 = vmatprep.mubr.bf16.mxu0 0
      %3284 = vmatmul.mubr.bf16.gmra.mrb[0].mxu0 %v3114
      %v3285 = vpop.f32.mrb[0].mxu0
      %v3286 = vadd.f32 0.0, %v3285
      %v3287 = vpop.f32.mrb[0].mxu0
      %v3288 = vpop.f32.mrb[0].mxu0
      %v3289 = vadd.f32 0.0, %v3288
      %v3290 = vpop.f32.mrb[0].mxu0
      %3291 = vmatprep.mubr.bf16.mxu0 0
      %3292 = vmatmul.mubr.bf16.gmra.mrb[0].mxu0 %v3116
      %v3293 = vpop.f32.mrb[0].mxu0
      %v3294 = vadd.f32 0.0, %v3293
      %v3295 = vpop.f32.mrb[0].mxu0
      %v3296 = vpop.f32.mrb[0].mxu0
      %v3297 = vadd.f32 0.0, %v3296
      %v3298 = vpop.f32.mrb[0].mxu0
      %3299 = vmatprep.mubr.bf16.mxu0 0
      %3300 = vmatmul.mubr.bf16.gmra.mrb[0].mxu0 %v3118
      %v3301 = vpop.f32.mrb[0].mxu0
      %v3302 = vadd.f32 0.0, %v3301
      %v3303 = vpop.f32.mrb[0].mxu0
      %v3304 = vpop.f32.mrb[0].mxu0
      %v3305 = vadd.f32 0.0, %v3304
      %v3306 = vpop.f32.mrb[0].mxu0
      %3307 = vmatprep.mubr.bf16.mxu0 0
      %3308 = vmatmul.mubr.bf16.gmra.mrb[0].mxu0 %v3120
      %v3309 = vpop.f32.mrb[0].mxu0
      %v3310 = vadd.f32 0.0, %v3309
      %v3311 = vpop.f32.mrb[0].mxu0
      %v3312 = vpop.f32.mrb[0].mxu0
      %v3313 = vadd.f32 0.0, %v3312
      %v3314 = vpop.f32.mrb[0].mxu0
      %3315 = vmatprep.mubr.bf16.mxu0 0
      %3316 = vmatmul.mubr.bf16.gmra.mrb[0].mxu0 %v3122
      %v3317 = vpop.f32.mrb[0].mxu0
      %v3318 = vadd.f32 0.0, %v3317
      %v3319 = vpop.f32.mrb[0].mxu0
      %v3320 = vpop.f32.mrb[0].mxu0
      %v3321 = vadd.f32 0.0, %v3320
      %v3322 = vpop.f32.mrb[0].mxu0
      %3323 = vmatprep.mubr.bf16.mxu0 0
      %3324 = vmatmul.mubr.bf16.gmra.mrb[0].mxu0 %v3124
      %v3325 = vpop.f32.mrb[0].mxu0
      %v3326 = vadd.f32 0.0, %v3325
      %v3327 = vpop.f32.mrb[0].mxu0
      %v3328 = vpop.f32.mrb[0].mxu0
      %v3329 = vadd.f32 0.0, %v3328
      %v3330 = vpop.f32.mrb[0].mxu0
      %3331 = vmatprep.mubr.bf16.mxu0 0
      %3332 = vmatmul.mubr.bf16.gmra.mrb[0].mxu0 %v3126
      %v3333 = vpop.f32.mrb[0].mxu0
      %v3334 = vadd.f32 0.0, %v3333
      %v3335 = vpop.f32.mrb[0].mxu0
      %v3336 = vpop.f32.mrb[0].mxu0
      %v3337 = vadd.f32 0.0, %v3336
      %v3338 = vpop.f32.mrb[0].mxu0
      %3339 = vmatprep.mubr.bf16.mxu0 0
      %3340 = vmatmul.mubr.bf16.gmra.mrb[0].mxu0 %v3128
      %v3341 = vpop.f32.mrb[0].mxu0
      %v3342 = vadd.f32 0.0, %v3341
      %v3343 = vpop.f32.mrb[0].mxu0
      %v3344 = vpop.f32.mrb[0].mxu0
      %v3345 = vadd.f32 0.0, %v3344
      %v3346 = vpop.f32.mrb[0].mxu0
      %3347 = vmatprep.mubr.bf16.mxu0 0
      %3348 = vmatmul.mubr.bf16.gmra.mrb[0].mxu0 %v3130
      %v3349 = vpop.f32.mrb[0].mxu0
      %v3350 = vadd.f32 0.0, %v3349
      %v3351 = vpop.f32.mrb[0].mxu0
      %v3352 = vpop.f32.mrb[0].mxu0
      %v3353 = vadd.f32 0.0, %v3352
      %v3354 = vpop.f32.mrb[0].mxu0
      %3355 = vmatprep.mubr.bf16.mxu0 0
      %3356 = vmatmul.mubr.bf16.gmra.mrb[0].mxu0 %v3132
      %v3357 = vpop.f32.mrb[0].mxu0
      %v3358 = vadd.f32 0.0, %v3357
      %v3359 = vpop.f32.mrb[0].mxu0
      %v3360 = vpop.f32.mrb[0].mxu0
      %v3361 = vadd.f32 0.0, %v3360
      %v3362 = vpop.f32.mrb[0].mxu0
      %3363 = vmatprep.mubr.bf16.mxu0 0
      %3364 = vmatmul.mubr.bf16.gmra.mrb[0].mxu0 %v3134
      %v3365 = vpop.f32.mrb[0].mxu0
      %v3366 = vadd.f32 0.0, %v3365
      %v3367 = vpop.f32.mrb[0].mxu0
      %v3368 = vpop.f32.mrb[0].mxu0
      %v3369 = vadd.f32 0.0, %v3368
      %v3370 = vpop.f32.mrb[0].mxu0
      %3371 = vmatprep.mubr.bf16.mxu0 0
      %3372 = vmatmul.mubr.bf16.gmra.mrb[0].mxu0 %v3136
      %v3373 = vpop.f32.mrb[0].mxu0
      %v3374 = vadd.f32 0.0, %v3373
      %v3375 = vpop.f32.mrb[0].mxu0
      %v3376 = vpop.f32.mrb[0].mxu0
      %v3377 = vadd.f32 0.0, %v3376
      %v3378 = vpop.f32.mrb[0].mxu0
      %3379 = vdwg.mxu0
      %v3380 = vadd.f32 %v3046, %v3238
      %v3381 = vadd.f32 %v3047, %v3241
      %v3382 = vadd.f32 %v3048, %v3246
      %v3383 = vadd.f32 %v3049, %v3249
      %v3384 = vadd.f32 %v3050, %v3254
      %v3385 = vadd.f32 %v3051, %v3257
      %v3386 = vadd.f32 %v3052, %v3262
      %v3387 = vadd.f32 %v3053, %v3265
      %v3388 = vadd.f32 %v3054, %v3270
      %v3389 = vadd.f32 %v3055, %v3273
      %v3390 = vadd.f32 %v3056, %v3278
      %v3391 = vadd.f32 %v3057, %v3281
      %v3392 = vadd.f32 %v3058, %v3286
      %v3393 = vadd.f32 %v3059, %v3289
      %v3394 = vadd.f32 %v3060, %v3294
      %v3395 = vadd.f32 %v3061, %v3297
      %v3396 = vadd.f32 %v3062, %v3302
      %v3397 = vadd.f32 %v3063, %v3305
      %v3398 = vadd.f32 %v3064, %v3310
      %v3399 = vadd.f32 %v3065, %v3313
      %v3400 = vadd.f32 %v3066, %v3318
      %v3401 = vadd.f32 %v3067, %v3321
      %v3402 = vadd.f32 %v3068, %v3326
      %v3403 = vadd.f32 %v3069, %v3329
      %v3404 = vadd.f32 %v3070, %v3334
      %v3405 = vadd.f32 %v3071, %v3337
      %v3406 = vadd.f32 %v3072, %v3342
      %v3407 = vadd.f32 %v3073, %v3345
      %v3408 = vadd.f32 %v3074, %v3350
      %v3409 = vadd.f32 %v3075, %v3353
      %v3410 = vadd.f32 %v3076, %v3358
      %v3411 = vadd.f32 %v3077, %v3361
      %v3412 = vadd.f32 %v3078, %v3366
      %v3413 = vadd.f32 %v3079, %v3369
      %v3414 = vadd.f32 %v3080, %v3374
      %v3415 = vadd.f32 %v3081, %v3377
      %v3416 = vpack.c.bf16 %v3381, %v3380
      %v3417 = vpack.c.bf16 %v3383, %v3382
      %v3418 = vpack.c.bf16 %v3385, %v3384
      %v3419 = vpack.c.bf16 %v3387, %v3386
      %v3420 = vpack.c.bf16 %v3389, %v3388
      %v3421 = vpack.c.bf16 %v3391, %v3390
      %v3422 = vpack.c.bf16 %v3393, %v3392
      %v3423 = vpack.c.bf16 %v3395, %v3394
      %v3424 = vpack.c.bf16 %v3397, %v3396
      %v3425 = vpack.c.bf16 %v3399, %v3398
      %v3426 = vpack.c.bf16 %v3401, %v3400
      %v3427 = vpack.c.bf16 %v3403, %v3402
      %v3428 = vpack.c.bf16 %v3405, %v3404
      %v3429 = vpack.c.bf16 %v3407, %v3406
      %v3430 = vpack.c.bf16 %v3409, %v3408
      %v3431 = vpack.c.bf16 %v3411, %v3410
      %v3432 = vpack.c.bf16 %v3413, %v3412
      %v3433 = vpack.c.bf16 %v3415, %v3414
      %v3452 = vunpack.c.l.b16 %v3416
      %v3453 = vunpack.c.h.b16 %v3416
      %v3454 = vunpack.c.l.b16 %v3417
      %v3455 = vunpack.c.h.b16 %v3417
      %v3456 = vunpack.c.l.b16 %v3418
      %v3457 = vunpack.c.h.b16 %v3418
      %v3458 = vunpack.c.l.b16 %v3419
      %v3459 = vunpack.c.h.b16 %v3419
      %v3460 = vunpack.c.l.b16 %v3420
      %v3461 = vunpack.c.h.b16 %v3420
      %v3462 = vunpack.c.l.b16 %v3421
      %v3463 = vunpack.c.h.b16 %v3421
      %v3464 = vunpack.c.l.b16 %v3422
      %v3465 = vunpack.c.h.b16 %v3422
      %v3466 = vunpack.c.l.b16 %v3423
      %v3467 = vunpack.c.h.b16 %v3423
      %v3468 = vunpack.c.l.b16 %v3424
      %v3469 = vunpack.c.h.b16 %v3424
      %v3470 = vunpack.c.l.b16 %v3425
      %v3471 = vunpack.c.h.b16 %v3425
      %v3472 = vunpack.c.l.b16 %v3426
      %v3473 = vunpack.c.h.b16 %v3426
      %v3474 = vunpack.c.l.b16 %v3427
      %v3475 = vunpack.c.h.b16 %v3427
      %v3476 = vunpack.c.l.b16 %v3428
      %v3477 = vunpack.c.h.b16 %v3428
      %v3478 = vunpack.c.l.b16 %v3429
      %v3479 = vunpack.c.h.b16 %v3429
      %v3480 = vunpack.c.l.b16 %v3430
      %v3481 = vunpack.c.h.b16 %v3430
      %v3482 = vunpack.c.l.b16 %v3431
      %v3483 = vunpack.c.h.b16 %v3431
      %v3484 = vunpack.c.l.b16 %v3432
      %v3485 = vunpack.c.h.b16 %v3432
      %v3486 = vunpack.c.l.b16 %v3433
      %v3487 = vunpack.c.h.b16 %v3433
      %v3488 = vpack.c.b16 %v3452, %v3452
      %v3489 = vpack.c.b16 %v3453, %v3453
      %v3490 = vpack.c.b16 %v3454, %v3454
      %v3491 = vpack.c.b16 %v3455, %v3455
      %v3492 = vpack.c.b16 %v3456, %v3456
      %v3493 = vpack.c.b16 %v3457, %v3457
      %v3494 = vpack.c.b16 %v3458, %v3458
      %v3495 = vpack.c.b16 %v3459, %v3459
      %v3496 = vpack.c.b16 %v3460, %v3460
      %v3497 = vpack.c.b16 %v3461, %v3461
      %v3498 = vpack.c.b16 %v3462, %v3462
      %v3499 = vpack.c.b16 %v3463, %v3463
      %v3500 = vpack.c.b16 %v3464, %v3464
      %v3501 = vpack.c.b16 %v3465, %v3465
      %v3502 = vpack.c.b16 %v3466, %v3466
      %v3503 = vpack.c.b16 %v3467, %v3467
      %v3504 = vpack.c.b16 %v3468, %v3468
      %v3505 = vpack.c.b16 %v3469, %v3469
      %v3506 = vpack.c.b16 %v3470, %v3470
      %v3507 = vpack.c.b16 %v3471, %v3471
      %v3508 = vpack.c.b16 %v3472, %v3472
      %v3509 = vpack.c.b16 %v3473, %v3473
      %v3510 = vpack.c.b16 %v3474, %v3474
      %v3511 = vpack.c.b16 %v3475, %v3475
      %v3512 = vpack.c.b16 %v3476, %v3476
      %v3513 = vpack.c.b16 %v3477, %v3477
      %v3514 = vpack.c.b16 %v3478, %v3478
      %v3515 = vpack.c.b16 %v3479, %v3479
      %v3516 = vpack.c.b16 %v3480, %v3480
      %v3517 = vpack.c.b16 %v3481, %v3481
      %v3518 = vpack.c.b16 %v3482, %v3482
      %v3519 = vpack.c.b16 %v3483, %v3483
      %v3520 = vpack.c.b16 %v3484, %v3484
      %v3521 = vpack.c.b16 %v3485, %v3485
      %v3522 = vpack.c.b16 %v3486, %v3486
      %v3523 = vpack.c.b16 %v3487, %v3487
      %3560 = vst [vmem:[%s253] sm:$0xf] %v3488
      %3561 = vst [vmem:[%s253 + $0x4] sm:$0xf] %v3489
      %3562 = vst [vmem:[%s253 + $0x8] sm:$0xf] %v3490
      %3563 = vst [vmem:[%s253 + $0xc] sm:$0xf] %v3491
      %3564 = vst [vmem:[%s253 + $0x10] sm:$0xf] %v3492
      %3565 = vst [vmem:[%s253 + $0x14] sm:$0xf] %v3493
      %3566 = vst [vmem:[%s253 + $0x18] sm:$0xf] %v3494
      %3567 = vst [vmem:[%s253 + $0x1c] sm:$0xf] %v3495
      %3568 = vst [vmem:[%s253 + $0x20] sm:$0xf] %v3496
      %3569 = vst [vmem:[%s253 + $0x24] sm:$0xf] %v3497
      %3570 = vst [vmem:[%s253 + $0x28] sm:$0xf] %v3498
      %3571 = vst [vmem:[%s253 + $0x2c] sm:$0xf] %v3499
      %3572 = vst [vmem:[%s253 + $0x30] sm:$0xf] %v3500
      %3573 = vst [vmem:[%s253 + $0x34] sm:$0xf] %v3501
      %3574 = vst [vmem:[%s253 + $0x38] sm:$0xf] %v3502
      %3575 = vst [vmem:[%s253 + $0x3c] sm:$0xf] %v3503
      %3576 = vst [vmem:[%s253 + $0x40] sm:$0xf] %v3504
      %3577 = vst [vmem:[%s253 + $0x44] sm:$0xf] %v3505
      %3578 = vst [vmem:[%s253 + $0x48] sm:$0xf] %v3506
      %3579 = vst [vmem:[%s253 + $0x4c] sm:$0xf] %v3507
      %3580 = vst [vmem:[%s253 + $0x50] sm:$0xf] %v3508
      %3581 = vst [vmem:[%s253 + $0x54] sm:$0xf] %v3509
      %3582 = vst [vmem:[%s253 + $0x58] sm:$0xf] %v3510
      %3583 = vst [vmem:[%s253 + $0x5c] sm:$0xf] %v3511
      %3584 = vst [vmem:[%s253 + $0x60] sm:$0xf] %v3512
      %3585 = vst [vmem:[%s253 + $0x64] sm:$0xf] %v3513
      %3586 = vst [vmem:[%s253 + $0x68] sm:$0xf] %v3514
      %3587 = vst [vmem:[%s253 + $0x6c] sm:$0xf] %v3515
      %3588 = vst [vmem:[%s253 + $0x70] sm:$0xf] %v3516
      %3589 = vst [vmem:[%s253 + $0x74] sm:$0xf] %v3517
      %3590 = vst [vmem:[%s253 + $0x78] sm:$0xf] %v3518
      %3591 = vst [vmem:[%s253 + $0x7c] sm:$0xf] %v3519
      %3592 = vst [vmem:[%s253 + $0x80] sm:$0xf] %v3520
      %3593 = vst [vmem:[%s253 + $0x84] sm:$0xf] %v3521
      %3594 = vst [vmem:[%s253 + $0x88] sm:$0xf] %v3522
      %3595 = vst [vmem:[%s253 + $0x8c] sm:$0xf] %v3523
      %v3596 = vld [vmem:[%s243] sm:$0xff]
      %v3597 = vld [vmem:[%s243 + $0x8] sm:$0xff]
      %v3598 = vld [vmem:[%s243 + $0x10] sm:$0xff]
      %v3599 = vld [vmem:[%s243 + $0x18] sm:$0xff]
      %v3600 = vld [vmem:[%s243 + $0x20] sm:$0xff]
      %v3601 = vld [vmem:[%s243 + $0x28] sm:$0xff]
      %v3602 = vld [vmem:[%s243 + $0x30] sm:$0xff]
      %v3603 = vld [vmem:[%s243 + $0x38] sm:$0xff]
      %v3604 = vld [vmem:[%s243 + $0x40] sm:$0xff]
      %v3605 = vld [vmem:[%s243 + $0x48] sm:$0xff]
      %v3606 = vld [vmem:[%s243 + $0x50] sm:$0xff]
      %v3607 = vld [vmem:[%s243 + $0x58] sm:$0xff]
      %v3608 = vld [vmem:[%s243 + $0x60] sm:$0xff]
      %v3609 = vld [vmem:[%s243 + $0x68] sm:$0xff]
      %v3610 = vld [vmem:[%s243 + $0x70] sm:$0xff]
      %v3611 = vld [vmem:[%s243 + $0x78] sm:$0xff]
      %v3612 = vld [vmem:[%s243 + $0x80] sm:$0xff]
      %v3613 = vld [vmem:[%s243 + $0x88] sm:$0xff]
      %v3614 = vld [vmem:[%s243 + $0x90] sm:$0xff]
      %v3615 = vld [vmem:[%s243 + $0x98] sm:$0xff]
      %v3616 = vld [vmem:[%s243 + $0xa0] sm:$0xff]
      %v3617 = vld [vmem:[%s243 + $0xa8] sm:$0xff]
      %v3618 = vld [vmem:[%s243 + $0xb0] sm:$0xff]
      %v3619 = vld [vmem:[%s243 + $0xb8] sm:$0xff]
      %v3620 = vld [vmem:[%s243 + $0xc0] sm:$0xff]
      %v3621 = vld [vmem:[%s243 + $0xc8] sm:$0xff]
      %v3622 = vld [vmem:[%s243 + $0xd0] sm:$0xff]
      %v3623 = vld [vmem:[%s243 + $0xd8] sm:$0xff]
      %v3624 = vld [vmem:[%s243 + $0xe0] sm:$0xff]
      %v3625 = vld [vmem:[%s243 + $0xe8] sm:$0xff]
      %v3626 = vld [vmem:[%s243 + $0xf0] sm:$0xff]
      %v3627 = vld [vmem:[%s243 + $0xf8] sm:$0xff]
      %v3628 = vld [vmem:[%s243 + $0x100] sm:$0xff]
      %v3629 = vld [vmem:[%s243 + $0x108] sm:$0xff]
      %v3630 = vld [vmem:[%s243 + $0x110] sm:$0xff]
      %v3631 = vld [vmem:[%s243 + $0x118] sm:$0xff]
      %3633 = vset.pattern.permute.xlu0 0
      %3634 = vperm.xlu0 %3633, %v3596
      %v3635 = vpop.permute.xlu0 %3634
      %3638 = vset.pattern.permute.xlu0 0
      %3639 = vperm.xlu0 %3638, %v3597
      %v3640 = vpop.permute.xlu0 %3639
      %3643 = vset.pattern.permute.xlu0 0
      %3644 = vperm.xlu0 %3643, %v3598
      %v3645 = vpop.permute.xlu0 %3644
      %3648 = vset.pattern.permute.xlu0 0
      %3649 = vperm.xlu0 %3648, %v3599
      %v3650 = vpop.permute.xlu0 %3649
      %3653 = vset.pattern.permute.xlu0 0
      %3654 = vperm.xlu0 %3653, %v3600
      %v3655 = vpop.permute.xlu0 %3654
      %3658 = vset.pattern.permute.xlu0 0
      %3659 = vperm.xlu0 %3658, %v3601
      %v3660 = vpop.permute.xlu0 %3659
      %3663 = vset.pattern.permute.xlu0 0
      %3664 = vperm.xlu0 %3663, %v3602
      %v3665 = vpop.permute.xlu0 %3664
      %3668 = vset.pattern.permute.xlu0 0
      %3669 = vperm.xlu0 %3668, %v3603
      %v3670 = vpop.permute.xlu0 %3669
      %3673 = vset.pattern.permute.xlu0 0
      %3674 = vperm.xlu0 %3673, %v3604
      %v3675 = vpop.permute.xlu0 %3674
      %3678 = vset.pattern.permute.xlu0 0
      %3679 = vperm.xlu0 %3678, %v3605
      %v3680 = vpop.permute.xlu0 %3679
      %3683 = vset.pattern.permute.xlu0 0
      %3684 = vperm.xlu0 %3683, %v3606
      %v3685 = vpop.permute.xlu0 %3684
      %3688 = vset.pattern.permute.xlu0 0
      %3689 = vperm.xlu0 %3688, %v3607
      %v3690 = vpop.permute.xlu0 %3689
      %3693 = vset.pattern.permute.xlu0 0
      %3694 = vperm.xlu0 %3693, %v3608
      %v3695 = vpop.permute.xlu0 %3694
      %3698 = vset.pattern.permute.xlu0 0
      %3699 = vperm.xlu0 %3698, %v3609
      %v3700 = vpop.permute.xlu0 %3699
      %3703 = vset.pattern.permute.xlu0 0
      %3704 = vperm.xlu0 %3703, %v3610
      %v3705 = vpop.permute.xlu0 %3704
      %3708 = vset.pattern.permute.xlu0 0
      %3709 = vperm.xlu0 %3708, %v3611
      %v3710 = vpop.permute.xlu0 %3709
      %3713 = vset.pattern.permute.xlu0 0
      %3714 = vperm.xlu0 %3713, %v3612
      %v3715 = vpop.permute.xlu0 %3714
      %3718 = vset.pattern.permute.xlu0 0
      %3719 = vperm.xlu0 %3718, %v3613
      %v3720 = vpop.permute.xlu0 %3719
      %3723 = vset.pattern.permute.xlu0 0
      %3724 = vperm.xlu0 %3723, %v3614
      %v3725 = vpop.permute.xlu0 %3724
      %3728 = vset.pattern.permute.xlu0 0
      %3729 = vperm.xlu0 %3728, %v3615
      %v3730 = vpop.permute.xlu0 %3729
      %3733 = vset.pattern.permute.xlu0 0
      %3734 = vperm.xlu0 %3733, %v3616
      %v3735 = vpop.permute.xlu0 %3734
      %3738 = vset.pattern.permute.xlu0 0
      %3739 = vperm.xlu0 %3738, %v3617
      %v3740 = vpop.permute.xlu0 %3739
      %3743 = vset.pattern.permute.xlu0 0
      %3744 = vperm.xlu0 %3743, %v3618
      %v3745 = vpop.permute.xlu0 %3744
      %3748 = vset.pattern.permute.xlu0 0
      %3749 = vperm.xlu0 %3748, %v3619
      %v3750 = vpop.permute.xlu0 %3749
      %3753 = vset.pattern.permute.xlu0 0
      %3754 = vperm.xlu0 %3753, %v3620
      %v3755 = vpop.permute.xlu0 %3754
      %3758 = vset.pattern.permute.xlu0 0
      %3759 = vperm.xlu0 %3758, %v3621
      %v3760 = vpop.permute.xlu0 %3759
      %3763 = vset.pattern.permute.xlu0 0
      %3764 = vperm.xlu0 %3763, %v3622
      %v3765 = vpop.permute.xlu0 %3764
      %3768 = vset.pattern.permute.xlu0 0
      %3769 = vperm.xlu0 %3768, %v3623
      %v3770 = vpop.permute.xlu0 %3769
      %3773 = vset.pattern.permute.xlu0 0
      %3774 = vperm.xlu0 %3773, %v3624
      %v3775 = vpop.permute.xlu0 %3774
      %3778 = vset.pattern.permute.xlu0 0
      %3779 = vperm.xlu0 %3778, %v3625
      %v3780 = vpop.permute.xlu0 %3779
      %3783 = vset.pattern.permute.xlu0 0
      %3784 = vperm.xlu0 %3783, %v3626
      %v3785 = vpop.permute.xlu0 %3784
      %3788 = vset.pattern.permute.xlu0 0
      %3789 = vperm.xlu0 %3788, %v3627
      %v3790 = vpop.permute.xlu0 %3789
      %3793 = vset.pattern.permute.xlu0 0
      %3794 = vperm.xlu0 %3793, %v3628
      %v3795 = vpop.permute.xlu0 %3794
      %3798 = vset.pattern.permute.xlu0 0
      %3799 = vperm.xlu0 %3798, %v3629
      %v3800 = vpop.permute.xlu0 %3799
      %3803 = vset.pattern.permute.xlu0 0
      %3804 = vperm.xlu0 %3803, %v3630
      %v3805 = vpop.permute.xlu0 %3804
      %3808 = vset.pattern.permute.xlu0 0
      %3809 = vperm.xlu0 %3808, %v3631
      %v3810 = vpop.permute.xlu0 %3809
      %v3812 = vmul.f32 %v3380, %v3635
      %v3813 = vmul.f32 %v3381, %v3640
      %v3814 = vmul.f32 %v3382, %v3645
      %v3815 = vmul.f32 %v3383, %v3650
      %v3816 = vmul.f32 %v3384, %v3655
      %v3817 = vmul.f32 %v3385, %v3660
      %v3818 = vmul.f32 %v3386, %v3665
      %v3819 = vmul.f32 %v3387, %v3670
      %v3820 = vmul.f32 %v3388, %v3675
      %v3821 = vmul.f32 %v3389, %v3680
      %v3822 = vmul.f32 %v3390, %v3685
      %v3823 = vmul.f32 %v3391, %v3690
      %v3824 = vmul.f32 %v3392, %v3695
      %v3825 = vmul.f32 %v3393, %v3700
      %v3826 = vmul.f32 %v3394, %v3705
      %v3827 = vmul.f32 %v3395, %v3710
      %v3828 = vmul.f32 %v3396, %v3715
      %v3829 = vmul.f32 %v3397, %v3720
      %v3830 = vmul.f32 %v3398, %v3725
      %v3831 = vmul.f32 %v3399, %v3730
      %v3832 = vmul.f32 %v3400, %v3735
      %v3833 = vmul.f32 %v3401, %v3740
      %v3834 = vmul.f32 %v3402, %v3745
      %v3835 = vmul.f32 %v3403, %v3750
      %v3836 = vmul.f32 %v3404, %v3755
      %v3837 = vmul.f32 %v3405, %v3760
      %v3838 = vmul.f32 %v3406, %v3765
      %v3839 = vmul.f32 %v3407, %v3770
      %v3840 = vmul.f32 %v3408, %v3775
      %v3841 = vmul.f32 %v3409, %v3780
      %v3842 = vmul.f32 %v3410, %v3785
      %v3843 = vmul.f32 %v3411, %v3790
      %v3844 = vmul.f32 %v3412, %v3795
      %v3845 = vmul.f32 %v3413, %v3800
      %v3846 = vmul.f32 %v3414, %v3805
      %v3847 = vmul.f32 %v3415, %v3810
      %v3848 = vadd.f32 %v3812, %v3813
      %v3849 = vadd.f32 %v3848, %v3814
      %v3850 = vadd.f32 %v3849, %v3815
      %v3851 = vadd.f32 %v3850, %v3816
      %v3852 = vadd.f32 %v3851, %v3817
      %v3853 = vadd.f32 %v3852, %v3818
      %v3854 = vadd.f32 %v3853, %v3819
      %v3855 = vadd.f32 %v3854, %v3820
      %v3856 = vadd.f32 %v3855, %v3821
      %v3857 = vadd.f32 %v3856, %v3822
      %v3858 = vadd.f32 %v3857, %v3823
      %v3859 = vadd.f32 %v3858, %v3824
      %v3860 = vadd.f32 %v3859, %v3825
      %v3861 = vadd.f32 %v3860, %v3826
      %v3862 = vadd.f32 %v3861, %v3827
      %v3863 = vadd.f32 %v3862, %v3828
      %v3864 = vadd.f32 %v3863, %v3829
      %v3865 = vadd.f32 %v3864, %v3830
      %v3866 = vadd.f32 %v3865, %v3831
      %v3867 = vadd.f32 %v3866, %v3832
      %v3868 = vadd.f32 %v3867, %v3833
      %v3869 = vadd.f32 %v3868, %v3834
      %v3870 = vadd.f32 %v3869, %v3835
      %v3871 = vadd.f32 %v3870, %v3836
      %v3872 = vadd.f32 %v3871, %v3837
      %v3873 = vadd.f32 %v3872, %v3838
      %v3874 = vadd.f32 %v3873, %v3839
      %v3875 = vadd.f32 %v3874, %v3840
      %v3876 = vadd.f32 %v3875, %v3841
      %v3877 = vadd.f32 %v3876, %v3842
      %v3878 = vadd.f32 %v3877, %v3843
      %v3879 = vadd.f32 %v3878, %v3844
      %v3880 = vadd.f32 %v3879, %v3845
      %v3881 = vadd.f32 %v3880, %v3846
      %v3882 = vadd.f32 %v3881, %v3847
      %v3883 = vrot.slane %v3882, 4
      %v3884 = vadd.f32 %v3882, %v3883
      %v3885 = vrot.slane %v3884, 2
      %v3886 = vadd.f32 %v3884, %v3885
      %v3887 = vrot.slane %v3886, 1
      %v3888 = vadd.f32 %v3886, %v3887
      %3889 = vst [vmem:[%s261] sm:$0x1] %v3888
      %v3890 = vmul.f32 %v3812, %v3380
      %v3891 = vmul.f32 %v3813, %v3381
      %v3892 = vmul.f32 %v3814, %v3382
      %v3893 = vmul.f32 %v3815, %v3383
      %v3894 = vmul.f32 %v3816, %v3384
      %v3895 = vmul.f32 %v3817, %v3385
      %v3896 = vmul.f32 %v3818, %v3386
      %v3897 = vmul.f32 %v3819, %v3387
      %v3898 = vmul.f32 %v3820, %v3388
      %v3899 = vmul.f32 %v3821, %v3389
      %v3900 = vmul.f32 %v3822, %v3390
      %v3901 = vmul.f32 %v3823, %v3391
      %v3902 = vmul.f32 %v3824, %v3392
      %v3903 = vmul.f32 %v3825, %v3393
      %v3904 = vmul.f32 %v3826, %v3394
      %v3905 = vmul.f32 %v3827, %v3395
      %v3906 = vmul.f32 %v3828, %v3396
      %v3907 = vmul.f32 %v3829, %v3397
      %v3908 = vmul.f32 %v3830, %v3398
      %v3909 = vmul.f32 %v3831, %v3399
      %v3910 = vmul.f32 %v3832, %v3400
      %v3911 = vmul.f32 %v3833, %v3401
      %v3912 = vmul.f32 %v3834, %v3402
      %v3913 = vmul.f32 %v3835, %v3403
      %v3914 = vmul.f32 %v3836, %v3404
      %v3915 = vmul.f32 %v3837, %v3405
      %v3916 = vmul.f32 %v3838, %v3406
      %v3917 = vmul.f32 %v3839, %v3407
      %v3918 = vmul.f32 %v3840, %v3408
      %v3919 = vmul.f32 %v3841, %v3409
      %v3920 = vmul.f32 %v3842, %v3410
      %v3921 = vmul.f32 %v3843, %v3411
      %v3922 = vmul.f32 %v3844, %v3412
      %v3923 = vmul.f32 %v3845, %v3413
      %v3924 = vmul.f32 %v3846, %v3414
      %v3925 = vmul.f32 %v3847, %v3415
      %v3926 = vadd.f32 %v3890, %v3891
      %v3927 = vadd.f32 %v3926, %v3892
      %v3928 = vadd.f32 %v3927, %v3893
      %v3929 = vadd.f32 %v3928, %v3894
      %v3930 = vadd.f32 %v3929, %v3895
      %v3931 = vadd.f32 %v3930, %v3896
      %v3932 = vadd.f32 %v3931, %v3897
      %v3933 = vadd.f32 %v3932, %v3898
      %v3934 = vadd.f32 %v3933, %v3899
      %v3935 = vadd.f32 %v3934, %v3900
      %v3936 = vadd.f32 %v3935, %v3901
      %v3937 = vadd.f32 %v3936, %v3902
      %v3938 = vadd.f32 %v3937, %v3903
      %v3939 = vadd.f32 %v3938, %v3904
      %v3940 = vadd.f32 %v3939, %v3905
      %v3941 = vadd.f32 %v3940, %v3906
      %v3942 = vadd.f32 %v3941, %v3907
      %v3943 = vadd.f32 %v3942, %v3908
      %v3944 = vadd.f32 %v3943, %v3909
      %v3945 = vadd.f32 %v3944, %v3910
      %v3946 = vadd.f32 %v3945, %v3911
      %v3947 = vadd.f32 %v3946, %v3912
      %v3948 = vadd.f32 %v3947, %v3913
      %v3949 = vadd.f32 %v3948, %v3914
      %v3950 = vadd.f32 %v3949, %v3915
      %v3951 = vadd.f32 %v3950, %v3916
      %v3952 = vadd.f32 %v3951, %v3917
      %v3953 = vadd.f32 %v3952, %v3918
      %v3954 = vadd.f32 %v3953, %v3919
      %v3955 = vadd.f32 %v3954, %v3920
      %v3956 = vadd.f32 %v3955, %v3921
      %v3957 = vadd.f32 %v3956, %v3922
      %v3958 = vadd.f32 %v3957, %v3923
      %v3959 = vadd.f32 %v3958, %v3924
      %v3960 = vadd.f32 %v3959, %v3925
      %v3961 = vrot.slane %v3960, 4
      %v3962 = vadd.f32 %v3960, %v3961
      %v3963 = vrot.slane %v3962, 2
      %v3964 = vadd.f32 %v3962, %v3963
      %v3965 = vrot.slane %v3964, 1
      %v3966 = vadd.f32 %v3964, %v3965
      %3967 = vst [vmem:[%s261 + $0x1] sm:$0x1] %v3966
      %s3968 = smul.u32 36, %s21
      %p3969 = scmp.lt.s32.totalorder %s20, 1
      %s3970 = scalar_select %p3969, %s20, 1
      %p3971 = scmp.lt.s32.totalorder %s3968, 35
      %s3972 = scalar_select %p3971, %s3968, 35
      %s3973 = smul.addr %s3970, 36
      %s3974 = sadd.s32 %s3972, %s3973
      %s3975 = smul.addr %s3974, 4
      %s3976 = scalar_lea.vmem %s3, %s3975
      %p3977 = scmp.lt.s32.totalorder %s20, 1
      %s3978 = scalar_select %p3977, %s20, 1
      %p3979 = scmp.lt.s32.totalorder %s21, 0
      %s3980 = scalar_select %p3979, %s21, 0
      %s3981 = sadd.s32 %s3980, %s3978
      %s3982 = smul.addr %s3981, 2
      %s3983 = scalar_lea.vmem %s4, %s3982
      // Predicated region
      $region33: #{conv_block.2} parent=31 // pred_check
        %p3984 = pneg %p121
      $region34: #{conv_block.2} parent=31 // pred_check_branch
        %3986 = sbr.rel (%p3984) target = $region36
      $region35: #{conv_block.2} parent=31 // pred_region
        %s3987 = smul.u32 36, %s21
      $region36: #{conv_block.2} parent=31 // pred_fallthru
        _
      // Predicated region
      $region37: #{conv_block.2} parent=31 // pred_check
        %p3988 = pneg %p149
      $region38: #{conv_block.2} parent=31 // pred_check_branch
        %3990 = sbr.rel (%p3988) target = $region40
      $region39: #{conv_block.2} parent=31 // pred_region
        _
      $region40: #{conv_block.2} parent=31 // pred_fallthru
        _
    $region32: #{conv_block.2} parent=5 // pred_fallthru
      _
    %p3991 = scmp.le.s32.totalorder 2, %s11
    // Predicated region
    $region41: #{conv_block.2} parent=5 // pred_check
      %p3992 = pneg %p3991
    $region42: #{conv_block.2} parent=5 // pred_check_branch
      %3994 = sbr.rel (%p3992) target = $region44
    $region43: #{conv_block.2} parent=5 // pred_region
      %s3995 = ssub.s32 %s11, 2
      // Predicated region
      $region45: #{conv_block.2} parent=43 // pred_check
        %p3996 = pneg %p127
      $region46: #{conv_block.2} parent=43 // pred_check_branch
        %3998 = sbr.rel (%p3996) target = $region48
      $region47: #{conv_block.2} parent=43 // pred_region
        %s3999 = smul.u32 36, %s23
        %p4000 = scmp.lt.s32.totalorder %s22, 1
        %s4001 = scalar_select %p4000, %s22, 1
        %p4002 = scmp.lt.s32.totalorder %s3999, 35
        %s4003 = scalar_select %p4002, %s3999, 35
        %s4004 = smul.addr %s4001, 36
        %s4005 = sadd.s32 %s4003, %s4004
        %s4006 = smul.addr %s4005, 4
        %s4007 = scalar_lea.vmem %s3, %s4006
      $region48: #{conv_block.2} parent=43 // pred_fallthru
        _
      // Predicated region
      $region49: #{conv_block.2} parent=43 // pred_check
        %p4008 = pneg %p155
      $region50: #{conv_block.2} parent=43 // pred_check_branch
        %4010 = sbr.rel (%p4008) target = $region52
      $region51: #{conv_block.2} parent=43 // pred_region
        %p4011 = scmp.lt.s32.totalorder %s22, 1
        %s4012 = scalar_select %p4011, %s22, 1
        %p4013 = scmp.lt.s32.totalorder %s23, 0
        %s4014 = scalar_select %p4013, %s23, 0
        %s4015 = sadd.s32 %s4014, %s4012
        %s4016 = smul.addr %s4015, 2
        %s4017 = scalar_lea.vmem %s4, %s4016
      $region52: #{conv_block.2} parent=43 // pred_fallthru
        _
    $region44: #{conv_block.2} parent=5 // pred_fallthru
      _
  $region6: #{conv_block.2} parent=0 // loop_footer
    %s15 = sadd.s32 1, %s11
  $region7: #{conv_block.2} parent=0 // loop_footer_branch
    %10 = sbr.rel target = $region3
  $region8: #{conv_block.2} parent=0 // loop_exit
    _

</llo_original>
